<compile_context>
chip_gen: v5e
topology: v5e:2x2
jax: 0.10.0
libtpu: 0.0.40
codegen_flags: <defaults>
</compile_context>

<pallas_src>
import jax
import jax.numpy as jnp
from jax.experimental import pallas as pl
from jax.experimental.pallas import tpu as pltpu


def _se_gate_kernel(scale_ref, x_ref, o_ref):
    # scale_ref: (TM, 1)   x_ref / o_ref: (TM, THW)
    # Gate computed in f32 on the EUP (only TM elements); the multiply stays
    # in the feature-map storage dtype so bf16 inputs stay bf16 end-to-end
    # (halves HBM traffic) and f32 inputs match the reference exactly.
    gate = jax.nn.sigmoid(scale_ref[...].astype(jnp.float32))
    o_ref[...] = (gate.astype(x_ref.dtype) * x_ref[...]).astype(o_ref.dtype)


def _round_up(x, m):
    return (x + m - 1) // m * m


def _row_granularity(dtype):
    """Sublane packing granularity: 8 for 32-bit, 16 for 16-bit, 32 for 8-bit."""
    size = jnp.dtype(dtype).itemsize
    if size >= 4:
        return 8
    if size == 2:
        return 16
    return 32


def _vmem_budget_bytes():
    """Per-generation VMEM budget for the pipeline buffers."""
    cap = 64 << 20  # conservative default if the query fails
    try:
        info = pltpu.get_tpu_info()
        cap = int(getattr(info, "vmem_capacity_bytes", cap))
    except Exception:
        pass
    if cap <= (64 << 20):      # v7x-class: 64 MiB physical per TensorCore
        return 24 << 20
    return 64 << 20            # v5e / v6e: 128 MiB physical


def _pick_tiles(nc, hw, dtype, budget):
    """Largest (TM, THW) block fitting `budget`, preferring the fewest grid steps."""
    g = _row_granularity(dtype)
    dsize = jnp.dtype(dtype).itemsize

    def block_bytes(tm, thw):
        # double-buffered input + output feature-map tiles (gate tile is ~free)
        return 4 * tm * _round_up(min(thw, hw), 128) * dsize

    total_bytes = 2 * nc * hw * dsize          # HBM read + write
    if total_bytes > (4 << 20) and nc > 2 * g:
        # Big enough that a 2-way "parallel" row split pays on v7x's 2 TCs.
        tm = _round_up(-(-nc // 2), g)
    else:
        tm = nc                                # whole-slab row block, grid=(1, .)

    thw = hw                                   # full spatial extent per block
    if block_bytes(tm, thw) > budget:
        # Keep rows large; only shrink rows until a single 128-lane column
        # tile fits, then tile H*W in 128-lane multiples (lane-dense stores).
        while tm > g and block_bytes(tm, 128) > budget:
            tm = max(g, _round_up(-(-tm // 2), g))
        max_thw = (budget // (4 * tm * dsize)) // 128 * 128
        thw = int(min(hw, max(128, max_thw)))
    return int(tm), int(thw)


def sigmoid_mul(x199, x195):
    """Computes sigmoid(x199) * x195 with NCHW broadcasting.

    x199: (N, C, 1, 1)   per-channel gate logits
    x195: (N, C, H, W)   feature map
    returns (N, C, H, W)
    """
    N, C, H, W = x195.shape
    assert x199.shape == (N, C, 1, 1)
    NC, HW = N * C, H * W
    dsize = jnp.dtype(x195.dtype).itemsize

    scale2d = x199.reshape(NC, 1)
    x2d = x195.reshape(NC, HW)

    budget = _vmem_budget_bytes()
    TM, THW = _pick_tiles(NC, HW, x195.dtype, budget)
    grid = (pl.cdiv(NC, TM), pl.cdiv(HW, THW))

    # Actual VMEM needed: double-buffered in/out feature tiles + gate tile.
    needed = (4 * TM * _round_up(min(THW, HW), 128) + 4 * _round_up(TM, 8) * 128) * dsize
    vmem_limit = int(max(32 << 20, needed + (4 << 20)))   # <= ~68 MiB worst case

    out2d = pl.pallas_call(
        _se_gate_kernel,
        out_shape=jax.ShapeDtypeStruct((NC, HW), x195.dtype),
        grid=grid,
        in_specs=[
            pl.BlockSpec((TM, 1), lambda i, j: (i, 0)),     # gate ignores the HW axis
            pl.BlockSpec((TM, THW), lambda i, j: (i, j)),
        ],
        out_specs=pl.BlockSpec((TM, THW), lambda i, j: (i, j)),
        input_output_aliases={1: 0},                        # gate the feature map in place
        cost_estimate=pl.CostEstimate(
            flops=NC * HW,                                   # one multiply per element
            transcendentals=NC,                              # one sigmoid per channel
            bytes_accessed=2 * NC * HW * dsize + NC * dsize,
        ),
        compiler_params=pltpu.CompilerParams(
            dimension_semantics=("parallel", "parallel"),
            vmem_limit_bytes=vmem_limit,
        ),
    )(scale2d, x2d)

    return out2d.reshape(N, C, H, W)


if __name__ == "__main__":
    key = jax.random.PRNGKey(0)
    k1, k2 = jax.random.split(key)

    # Shapes implied by the module: x195 = (1, 960, 14, 14), x199 = (1, 960, 1, 1)
    x195 = jax.random.normal(k1, (1, 960, 14, 14), dtype=jnp.float32)
    x199 = jax.random.normal(k2, (1, 960, 1, 1), dtype=jnp.float32)

    out = sigmoid_mul(x199, x195)
    jax.block_until_ready(out)

    ref = jax.nn.sigmoid(x199) * x195
    assert out.shape == (1, 960, 14, 14)
    assert jnp.allclose(out, ref, atol=1e-6, rtol=1e-6)

    # Small bf16 sanity check (exercises the dtype-aware sublane granularity).
    xb = jax.random.normal(k1, (2, 32, 16, 16), dtype=jnp.bfloat16)
    sb = jax.random.normal(k2, (2, 32, 1, 1), dtype=jnp.bfloat16)
    outb = sigmoid_mul(sb, xb)
    jax.block_until_ready(outb)
    refb = jax.nn.sigmoid(sb.astype(jnp.float32)).astype(jnp.bfloat16) * xb
    assert jnp.allclose(outb.astype(jnp.float32), refb.astype(jnp.float32),
                        atol=1e-2, rtol=1e-2)

    print("KERNEL_OK")
</pallas_src>

<mosaic_0001>
module attributes {stable_mosaic.version = 11 : i64} {
  func.func @_se_gate_kernel(%arg0: i32, %arg1: i32, %arg2: memref<960x1xf32, #tpu.memory_space<vmem>>, %arg3: memref<960x196xf32, #tpu.memory_space<vmem>>, %arg4: memref<960x196xf32, #tpu.memory_space<vmem>>) attributes {dimension_semantics = [#tpu.dimension_semantics<parallel>, #tpu.dimension_semantics<parallel>], iteration_bounds = array<i64: 1, 1>, scalar_prefetch = 0 : i64, scratch_operands = 0 : i64, tpu.core_type = #tpu.core_type<tc>, window_params = [{transform_indices = @transform_0, window_bounds = array<i64: 960, 1>}, {transform_indices = @transform_1, window_bounds = array<i64: 960, 196>}, {transform_indices = @transform_2, window_bounds = array<i64: 960, 196>}]} {
    %c0 = arith.constant 0 : index
    %c0_0 = arith.constant 0 : index
    %0 = vector.load %arg2[%c0, %c0_0] : memref<960x1xf32, #tpu.memory_space<vmem>>, vector<960x1xf32>
    %1 = arith.negf %0 : vector<960x1xf32>
    %2 = math.exp %1 : vector<960x1xf32>
    %cst = arith.constant 1.000000e+00 : f32
    %3 = vector.broadcast %cst : f32 to vector<960x1xf32>
    %4 = arith.addf %3, %2 : vector<960x1xf32>
    %5 = arith.divf %3, %4 : vector<960x1xf32>
    %c0_1 = arith.constant 0 : index
    %c0_2 = arith.constant 0 : index
    %6 = vector.load %arg3[%c0_1, %c0_2] : memref<960x196xf32, #tpu.memory_space<vmem>>, vector<960x196xf32>
    %7 = vector.broadcast %5 : vector<960x1xf32> to vector<960x196xf32>
    %8 = arith.mulf %7, %6 : vector<960x196xf32>
    %c0_3 = arith.constant 0 : index
    %c0_4 = arith.constant 0 : index
    %9 = vector.load %arg4[%c0_3, %c0_4] : memref<960x196xf32, #tpu.memory_space<vmem>>, vector<960x196xf32>
    tpu.vector_store %arg4[%c0_3, %c0_4], %8 {strides = array<i32>} : memref<960x196xf32, #tpu.memory_space<vmem>>, vector<960x196xf32>,
    return
  }
  func.func @transform_0(%arg0: i32, %arg1: i32) -> (i32, i32) {
    %c0_i32 = arith.constant 0 : i32
    %c0_i32_0 = arith.constant 0 : i32
    return %arg0, %c0_i32 : i32, i32
  }
  func.func @transform_1(%arg0: i32, %arg1: i32) -> (i32, i32) {
    %c0_i32 = arith.constant 0 : i32
    return %arg0, %arg1 : i32, i32
  }
  func.func @transform_2(%arg0: i32, %arg1: i32) -> (i32, i32) {
    %c0_i32 = arith.constant 0 : i32
    return %arg0, %arg1 : i32, i32
  }
}

</mosaic_0001>

<llo_original>
// kernel: tpu_custom_call.1
$region0: #{tpu_custom_call.1}
  #allocation0 [shape = 'u32[]', space=smem, size = 0x4, offset = 0x4, fixed_abs, tag = 'smem constant byte address 0x4 - core index']
  #allocation1 [shape = 'u32[72,128]{1,0:T(1,128)}', space=vmem, size = 0x9000, scoped, tag = 'internal scratch']
  %s0 = inlined_call_operand.vmem [shape: f32[960,1], index: 0, kind: input, shape index: {}]
  %s1 = inlined_call_operand.vmem [shape: f32[960,196], index: 1, kind: input, shape index: {}, may-alias: {1,2}]
  %s2 = inlined_call_operand.vmem [shape: f32[960,196], index: 2, kind: output, shape index: {}, may-alias: {1,2}]
  %s3 = sld [smem:[#allocation0]]
  $region18: #{tpu_custom_call.1} parent=0
    _
  %s5 = ssub.s32 1, %s3
  %s6 = scalar_select 0, %s5, %s3
  // Predicated region
  $region2: #{tpu_custom_call.1} parent=0 // pred_check
    _
  $region3: #{tpu_custom_call.1} parent=0 // pred_check_branch
    %8 = sbr.rel (0) target = $region5
  $region4: #{tpu_custom_call.1} parent=0 // pred_region
    _
  $region5: #{tpu_custom_call.1} parent=0 // pred_fallthru
    _
  // Predicated region
  $region6: #{tpu_custom_call.1} parent=0 // pred_check
    _
  $region7: #{tpu_custom_call.1} parent=0 // pred_check_branch
    %10 = sbr.rel (0) target = $region9
  $region8: #{tpu_custom_call.1} parent=0 // pred_region
    _
  $region9: #{tpu_custom_call.1} parent=0 // pred_fallthru
    _
  %v11 = vld [vmem:[%s0] sm:$0xff]
  %v12 = vld [vmem:[%s0 + $0x8] sm:$0xff]
  %v13 = vld [vmem:[%s0 + $0x10] sm:$0xff]
  %v14 = vld [vmem:[%s0 + $0x18] sm:$0xff]
  %v15 = vld [vmem:[%s0 + $0x20] sm:$0xff]
  %v16 = vld [vmem:[%s0 + $0x28] sm:$0xff]
  %v17 = vld [vmem:[%s0 + $0x30] sm:$0xff]
  %v18 = vld [vmem:[%s0 + $0x38] sm:$0xff]
  %v19 = vld [vmem:[%s0 + $0x40] sm:$0xff]
  %v20 = vld [vmem:[%s0 + $0x48] sm:$0xff]
  %v21 = vld [vmem:[%s0 + $0x50] sm:$0xff]
  %v22 = vld [vmem:[%s0 + $0x58] sm:$0xff]
  %v23 = vld [vmem:[%s0 + $0x60] sm:$0xff]
  %v24 = vld [vmem:[%s0 + $0x68] sm:$0xff]
  %v25 = vld [vmem:[%s0 + $0x70] sm:$0xff]
  %v26 = vld [vmem:[%s0 + $0x78] sm:$0xff]
  %v27 = vld [vmem:[%s0 + $0x80] sm:$0xff]
  %v28 = vld [vmem:[%s0 + $0x88] sm:$0xff]
  %v29 = vld [vmem:[%s0 + $0x90] sm:$0xff]
  %v30 = vld [vmem:[%s0 + $0x98] sm:$0xff]
  %v31 = vld [vmem:[%s0 + $0xa0] sm:$0xff]
  %v32 = vld [vmem:[%s0 + $0xa8] sm:$0xff]
  %v33 = vld [vmem:[%s0 + $0xb0] sm:$0xff]
  %v34 = vld [vmem:[%s0 + $0xb8] sm:$0xff]
  %v35 = vld [vmem:[%s0 + $0xc0] sm:$0xff]
  %v36 = vld [vmem:[%s0 + $0xc8] sm:$0xff]
  %v37 = vld [vmem:[%s0 + $0xd0] sm:$0xff]
  %v38 = vld [vmem:[%s0 + $0xd8] sm:$0xff]
  %v39 = vld [vmem:[%s0 + $0xe0] sm:$0xff]
  %v40 = vld [vmem:[%s0 + $0xe8] sm:$0xff]
  %v41 = vld [vmem:[%s0 + $0xf0] sm:$0xff]
  %v42 = vld [vmem:[%s0 + $0xf8] sm:$0xff]
  %v43 = vld [vmem:[%s0 + $0x100] sm:$0xff]
  %v44 = vld [vmem:[%s0 + $0x108] sm:$0xff]
  %v45 = vld [vmem:[%s0 + $0x110] sm:$0xff]
  %v46 = vld [vmem:[%s0 + $0x118] sm:$0xff]
  %v47 = vld [vmem:[%s0 + $0x120] sm:$0xff]
  %v48 = vld [vmem:[%s0 + $0x128] sm:$0xff]
  %v49 = vld [vmem:[%s0 + $0x130] sm:$0xff]
  %v50 = vld [vmem:[%s0 + $0x138] sm:$0xff]
  %v51 = vld [vmem:[%s0 + $0x140] sm:$0xff]
  %v52 = vld [vmem:[%s0 + $0x148] sm:$0xff]
  %v53 = vld [vmem:[%s0 + $0x150] sm:$0xff]
  %v54 = vld [vmem:[%s0 + $0x158] sm:$0xff]
  %v55 = vld [vmem:[%s0 + $0x160] sm:$0xff]
  %v56 = vld [vmem:[%s0 + $0x168] sm:$0xff]
  %v57 = vld [vmem:[%s0 + $0x170] sm:$0xff]
  %v58 = vld [vmem:[%s0 + $0x178] sm:$0xff]
  %v59 = vld [vmem:[%s0 + $0x180] sm:$0xff]
  %v60 = vld [vmem:[%s0 + $0x188] sm:$0xff]
  %v61 = vld [vmem:[%s0 + $0x190] sm:$0xff]
  %v62 = vld [vmem:[%s0 + $0x198] sm:$0xff]
  %v63 = vld [vmem:[%s0 + $0x1a0] sm:$0xff]
  %v64 = vld [vmem:[%s0 + $0x1a8] sm:$0xff]
  %v65 = vld [vmem:[%s0 + $0x1b0] sm:$0xff]
  %v66 = vld [vmem:[%s0 + $0x1b8] sm:$0xff]
  %v67 = vld [vmem:[%s0 + $0x1c0] sm:$0xff]
  %v68 = vld [vmem:[%s0 + $0x1c8] sm:$0xff]
  %v69 = vld [vmem:[%s0 + $0x1d0] sm:$0xff]
  %v70 = vld [vmem:[%s0 + $0x1d8] sm:$0xff]
  %v71 = vld [vmem:[%s0 + $0x1e0] sm:$0xff]
  %v72 = vld [vmem:[%s0 + $0x1e8] sm:$0xff]
  %v73 = vld [vmem:[%s0 + $0x1f0] sm:$0xff]
  %v74 = vld [vmem:[%s0 + $0x1f8] sm:$0xff]
  %v75 = vld [vmem:[%s0 + $0x200] sm:$0xff]
  %v76 = vld [vmem:[%s0 + $0x208] sm:$0xff]
  %v77 = vld [vmem:[%s0 + $0x210] sm:$0xff]
  %v78 = vld [vmem:[%s0 + $0x218] sm:$0xff]
  %v79 = vld [vmem:[%s0 + $0x220] sm:$0xff]
  %v80 = vld [vmem:[%s0 + $0x228] sm:$0xff]
  %v81 = vld [vmem:[%s0 + $0x230] sm:$0xff]
  %v82 = vld [vmem:[%s0 + $0x238] sm:$0xff]
  %v83 = vld [vmem:[%s0 + $0x240] sm:$0xff]
  %v84 = vld [vmem:[%s0 + $0x248] sm:$0xff]
  %v85 = vld [vmem:[%s0 + $0x250] sm:$0xff]
  %v86 = vld [vmem:[%s0 + $0x258] sm:$0xff]
  %v87 = vld [vmem:[%s0 + $0x260] sm:$0xff]
  %v88 = vld [vmem:[%s0 + $0x268] sm:$0xff]
  %v89 = vld [vmem:[%s0 + $0x270] sm:$0xff]
  %v90 = vld [vmem:[%s0 + $0x278] sm:$0xff]
  %v91 = vld [vmem:[%s0 + $0x280] sm:$0xff]
  %v92 = vld [vmem:[%s0 + $0x288] sm:$0xff]
  %v93 = vld [vmem:[%s0 + $0x290] sm:$0xff]
  %v94 = vld [vmem:[%s0 + $0x298] sm:$0xff]
  %v95 = vld [vmem:[%s0 + $0x2a0] sm:$0xff]
  %v96 = vld [vmem:[%s0 + $0x2a8] sm:$0xff]
  %v97 = vld [vmem:[%s0 + $0x2b0] sm:$0xff]
  %v98 = vld [vmem:[%s0 + $0x2b8] sm:$0xff]
  %v99 = vld [vmem:[%s0 + $0x2c0] sm:$0xff]
  %v100 = vld [vmem:[%s0 + $0x2c8] sm:$0xff]
  %v101 = vld [vmem:[%s0 + $0x2d0] sm:$0xff]
  %v102 = vld [vmem:[%s0 + $0x2d8] sm:$0xff]
  %v103 = vld [vmem:[%s0 + $0x2e0] sm:$0xff]
  %v104 = vld [vmem:[%s0 + $0x2e8] sm:$0xff]
  %v105 = vld [vmem:[%s0 + $0x2f0] sm:$0xff]
  %v106 = vld [vmem:[%s0 + $0x2f8] sm:$0xff]
  %v107 = vld [vmem:[%s0 + $0x300] sm:$0xff]
  %v108 = vld [vmem:[%s0 + $0x308] sm:$0xff]
  %v109 = vld [vmem:[%s0 + $0x310] sm:$0xff]
  %v110 = vld [vmem:[%s0 + $0x318] sm:$0xff]
  %v111 = vld [vmem:[%s0 + $0x320] sm:$0xff]
  %v112 = vld [vmem:[%s0 + $0x328] sm:$0xff]
  %v113 = vld [vmem:[%s0 + $0x330] sm:$0xff]
  %v114 = vld [vmem:[%s0 + $0x338] sm:$0xff]
  %v115 = vld [vmem:[%s0 + $0x340] sm:$0xff]
  %v116 = vld [vmem:[%s0 + $0x348] sm:$0xff]
  %v117 = vld [vmem:[%s0 + $0x350] sm:$0xff]
  %v118 = vld [vmem:[%s0 + $0x358] sm:$0xff]
  %v119 = vld [vmem:[%s0 + $0x360] sm:$0xff]
  %v120 = vld [vmem:[%s0 + $0x368] sm:$0xff]
  %v121 = vld [vmem:[%s0 + $0x370] sm:$0xff]
  %v122 = vld [vmem:[%s0 + $0x378] sm:$0xff]
  %v123 = vld [vmem:[%s0 + $0x380] sm:$0xff]
  %v124 = vld [vmem:[%s0 + $0x388] sm:$0xff]
  %v125 = vld [vmem:[%s0 + $0x390] sm:$0xff]
  %v126 = vld [vmem:[%s0 + $0x398] sm:$0xff]
  %v127 = vld [vmem:[%s0 + $0x3a0] sm:$0xff]
  %v128 = vld [vmem:[%s0 + $0x3a8] sm:$0xff]
  %v129 = vld [vmem:[%s0 + $0x3b0] sm:$0xff]
  %v130 = vld [vmem:[%s0 + $0x3b8] sm:$0xff]
  %v131 = vxor.u32 %v11, 2147483648
  %v132 = vxor.u32 %v12, 2147483648
  %v133 = vxor.u32 %v13, 2147483648
  %v134 = vxor.u32 %v14, 2147483648
  %v135 = vxor.u32 %v15, 2147483648
  %v136 = vxor.u32 %v16, 2147483648
  %v137 = vxor.u32 %v17, 2147483648
  %v138 = vxor.u32 %v18, 2147483648
  %v139 = vxor.u32 %v19, 2147483648
  %v140 = vxor.u32 %v20, 2147483648
  %v141 = vxor.u32 %v21, 2147483648
  %v142 = vxor.u32 %v22, 2147483648
  %v143 = vxor.u32 %v23, 2147483648
  %v144 = vxor.u32 %v24, 2147483648
  %v145 = vxor.u32 %v25, 2147483648
  %v146 = vxor.u32 %v26, 2147483648
  %v147 = vxor.u32 %v27, 2147483648
  %v148 = vxor.u32 %v28, 2147483648
  %v149 = vxor.u32 %v29, 2147483648
  %v150 = vxor.u32 %v30, 2147483648
  %v151 = vxor.u32 %v31, 2147483648
  %v152 = vxor.u32 %v32, 2147483648
  %v153 = vxor.u32 %v33, 2147483648
  %v154 = vxor.u32 %v34, 2147483648
  %v155 = vxor.u32 %v35, 2147483648
  %v156 = vxor.u32 %v36, 2147483648
  %v157 = vxor.u32 %v37, 2147483648
  %v158 = vxor.u32 %v38, 2147483648
  %v159 = vxor.u32 %v39, 2147483648
  %v160 = vxor.u32 %v40, 2147483648
  %v161 = vxor.u32 %v41, 2147483648
  %v162 = vxor.u32 %v42, 2147483648
  %v163 = vxor.u32 %v43, 2147483648
  %v164 = vxor.u32 %v44, 2147483648
  %v165 = vxor.u32 %v45, 2147483648
  %v166 = vxor.u32 %v46, 2147483648
  %v167 = vxor.u32 %v47, 2147483648
  %v168 = vxor.u32 %v48, 2147483648
  %v169 = vxor.u32 %v49, 2147483648
  %v170 = vxor.u32 %v50, 2147483648
  %v171 = vxor.u32 %v51, 2147483648
  %v172 = vxor.u32 %v52, 2147483648
  %v173 = vxor.u32 %v53, 2147483648
  %v174 = vxor.u32 %v54, 2147483648
  %v175 = vxor.u32 %v55, 2147483648
  %v176 = vxor.u32 %v56, 2147483648
  %v177 = vxor.u32 %v57, 2147483648
  %v178 = vxor.u32 %v58, 2147483648
  %v179 = vxor.u32 %v59, 2147483648
  %v180 = vxor.u32 %v60, 2147483648
  %v181 = vxor.u32 %v61, 2147483648
  %v182 = vxor.u32 %v62, 2147483648
  %v183 = vxor.u32 %v63, 2147483648
  %v184 = vxor.u32 %v64, 2147483648
  %v185 = vxor.u32 %v65, 2147483648
  %v186 = vxor.u32 %v66, 2147483648
  %v187 = vxor.u32 %v67, 2147483648
  %v188 = vxor.u32 %v68, 2147483648
  %v189 = vxor.u32 %v69, 2147483648
  %v190 = vxor.u32 %v70, 2147483648
  %v191 = vxor.u32 %v71, 2147483648
  %v192 = vxor.u32 %v72, 2147483648
  %v193 = vxor.u32 %v73, 2147483648
  %v194 = vxor.u32 %v74, 2147483648
  %v195 = vxor.u32 %v75, 2147483648
  %v196 = vxor.u32 %v76, 2147483648
  %v197 = vxor.u32 %v77, 2147483648
  %v198 = vxor.u32 %v78, 2147483648
  %v199 = vxor.u32 %v79, 2147483648
  %v200 = vxor.u32 %v80, 2147483648
  %v201 = vxor.u32 %v81, 2147483648
  %v202 = vxor.u32 %v82, 2147483648
  %v203 = vxor.u32 %v83, 2147483648
  %v204 = vxor.u32 %v84, 2147483648
  %v205 = vxor.u32 %v85, 2147483648
  %v206 = vxor.u32 %v86, 2147483648
  %v207 = vxor.u32 %v87, 2147483648
  %v208 = vxor.u32 %v88, 2147483648
  %v209 = vxor.u32 %v89, 2147483648
  %v210 = vxor.u32 %v90, 2147483648
  %v211 = vxor.u32 %v91, 2147483648
  %v212 = vxor.u32 %v92, 2147483648
  %v213 = vxor.u32 %v93, 2147483648
  %v214 = vxor.u32 %v94, 2147483648
  %v215 = vxor.u32 %v95, 2147483648
  %v216 = vxor.u32 %v96, 2147483648
  %v217 = vxor.u32 %v97, 2147483648
  %v218 = vxor.u32 %v98, 2147483648
  %v219 = vxor.u32 %v99, 2147483648
  %v220 = vxor.u32 %v100, 2147483648
  %v221 = vxor.u32 %v101, 2147483648
  %v222 = vxor.u32 %v102, 2147483648
  %v223 = vxor.u32 %v103, 2147483648
  %v224 = vxor.u32 %v104, 2147483648
  %v225 = vxor.u32 %v105, 2147483648
  %v226 = vxor.u32 %v106, 2147483648
  %v227 = vxor.u32 %v107, 2147483648
  %v228 = vxor.u32 %v108, 2147483648
  %v229 = vxor.u32 %v109, 2147483648
  %v230 = vxor.u32 %v110, 2147483648
  %v231 = vxor.u32 %v111, 2147483648
  %v232 = vxor.u32 %v112, 2147483648
  %v233 = vxor.u32 %v113, 2147483648
  %v234 = vxor.u32 %v114, 2147483648
  %v235 = vxor.u32 %v115, 2147483648
  %v236 = vxor.u32 %v116, 2147483648
  %v237 = vxor.u32 %v117, 2147483648
  %v238 = vxor.u32 %v118, 2147483648
  %v239 = vxor.u32 %v119, 2147483648
  %v240 = vxor.u32 %v120, 2147483648
  %v241 = vxor.u32 %v121, 2147483648
  %v242 = vxor.u32 %v122, 2147483648
  %v243 = vxor.u32 %v123, 2147483648
  %v244 = vxor.u32 %v124, 2147483648
  %v245 = vxor.u32 %v125, 2147483648
  %v246 = vxor.u32 %v126, 2147483648
  %v247 = vxor.u32 %v127, 2147483648
  %v248 = vxor.u32 %v128, 2147483648
  %v249 = vxor.u32 %v129, 2147483648
  %v250 = vxor.u32 %v130, 2147483648
  %v251 = vmul.f32 %v131, 1.442695
  %v252 = vpow.pop %v251
  %v253 = vmul.f32 %v132, 1.442695
  %v254 = vpow.pop %v253
  %v255 = vmul.f32 %v133, 1.442695
  %v256 = vpow.pop %v255
  %v257 = vmul.f32 %v134, 1.442695
  %v258 = vpow.pop %v257
  %v259 = vmul.f32 %v135, 1.442695
  %v260 = vpow.pop %v259
  %v261 = vmul.f32 %v136, 1.442695
  %v262 = vpow.pop %v261
  %v263 = vmul.f32 %v137, 1.442695
  %v264 = vpow.pop %v263
  %v265 = vmul.f32 %v138, 1.442695
  %v266 = vpow.pop %v265
  %v267 = vmul.f32 %v139, 1.442695
  %v268 = vpow.pop %v267
  %v269 = vmul.f32 %v140, 1.442695
  %v270 = vpow.pop %v269
  %v271 = vmul.f32 %v141, 1.442695
  %v272 = vpow.pop %v271
  %v273 = vmul.f32 %v142, 1.442695
  %v274 = vpow.pop %v273
  %v275 = vmul.f32 %v143, 1.442695
  %v276 = vpow.pop %v275
  %v277 = vmul.f32 %v144, 1.442695
  %v278 = vpow.pop %v277
  %v279 = vmul.f32 %v145, 1.442695
  %v280 = vpow.pop %v279
  %v281 = vmul.f32 %v146, 1.442695
  %v282 = vpow.pop %v281
  %v283 = vmul.f32 %v147, 1.442695
  %v284 = vpow.pop %v283
  %v285 = vmul.f32 %v148, 1.442695
  %v286 = vpow.pop %v285
  %v287 = vmul.f32 %v149, 1.442695
  %v288 = vpow.pop %v287
  %v289 = vmul.f32 %v150, 1.442695
  %v290 = vpow.pop %v289
  %v291 = vmul.f32 %v151, 1.442695
  %v292 = vpow.pop %v291
  %v293 = vmul.f32 %v152, 1.442695
  %v294 = vpow.pop %v293
  %v295 = vmul.f32 %v153, 1.442695
  %v296 = vpow.pop %v295
  %v297 = vmul.f32 %v154, 1.442695
  %v298 = vpow.pop %v297
  %v299 = vmul.f32 %v155, 1.442695
  %v300 = vpow.pop %v299
  %v301 = vmul.f32 %v156, 1.442695
  %v302 = vpow.pop %v301
  %v303 = vmul.f32 %v157, 1.442695
  %v304 = vpow.pop %v303
  %v305 = vmul.f32 %v158, 1.442695
  %v306 = vpow.pop %v305
  %v307 = vmul.f32 %v159, 1.442695
  %v308 = vpow.pop %v307
  %v309 = vmul.f32 %v160, 1.442695
  %v310 = vpow.pop %v309
  %v311 = vmul.f32 %v161, 1.442695
  %v312 = vpow.pop %v311
  %v313 = vmul.f32 %v162, 1.442695
  %v314 = vpow.pop %v313
  %v315 = vmul.f32 %v163, 1.442695
  %v316 = vpow.pop %v315
  %v317 = vmul.f32 %v164, 1.442695
  %v318 = vpow.pop %v317
  %v319 = vmul.f32 %v165, 1.442695
  %v320 = vpow.pop %v319
  %v321 = vmul.f32 %v166, 1.442695
  %v322 = vpow.pop %v321
  %v323 = vmul.f32 %v167, 1.442695
  %v324 = vpow.pop %v323
  %v325 = vmul.f32 %v168, 1.442695
  %v326 = vpow.pop %v325
  %v327 = vmul.f32 %v169, 1.442695
  %v328 = vpow.pop %v327
  %v329 = vmul.f32 %v170, 1.442695
  %v330 = vpow.pop %v329
  %v331 = vmul.f32 %v171, 1.442695
  %v332 = vpow.pop %v331
  %v333 = vmul.f32 %v172, 1.442695
  %v334 = vpow.pop %v333
  %v335 = vmul.f32 %v173, 1.442695
  %v336 = vpow.pop %v335
  %v337 = vmul.f32 %v174, 1.442695
  %v338 = vpow.pop %v337
  %v339 = vmul.f32 %v175, 1.442695
  %v340 = vpow.pop %v339
  %v341 = vmul.f32 %v176, 1.442695
  %v342 = vpow.pop %v341
  %v343 = vmul.f32 %v177, 1.442695
  %v344 = vpow.pop %v343
  %v345 = vmul.f32 %v178, 1.442695
  %v346 = vpow.pop %v345
  %v347 = vmul.f32 %v179, 1.442695
  %v348 = vpow.pop %v347
  %v349 = vmul.f32 %v180, 1.442695
  %v350 = vpow.pop %v349
  %v351 = vmul.f32 %v181, 1.442695
  %v352 = vpow.pop %v351
  %v353 = vmul.f32 %v182, 1.442695
  %v354 = vpow.pop %v353
  %v355 = vmul.f32 %v183, 1.442695
  %v356 = vpow.pop %v355
  %v357 = vmul.f32 %v184, 1.442695
  %v358 = vpow.pop %v357
  %v359 = vmul.f32 %v185, 1.442695
  %v360 = vpow.pop %v359
  %v361 = vmul.f32 %v186, 1.442695
  %v362 = vpow.pop %v361
  %v363 = vmul.f32 %v187, 1.442695
  %v364 = vpow.pop %v363
  %v365 = vmul.f32 %v188, 1.442695
  %v366 = vpow.pop %v365
  %v367 = vmul.f32 %v189, 1.442695
  %v368 = vpow.pop %v367
  %v369 = vmul.f32 %v190, 1.442695
  %v370 = vpow.pop %v369
  %v371 = vmul.f32 %v191, 1.442695
  %v372 = vpow.pop %v371
  %v373 = vmul.f32 %v192, 1.442695
  %v374 = vpow.pop %v373
  %v375 = vmul.f32 %v193, 1.442695
  %v376 = vpow.pop %v375
  %v377 = vmul.f32 %v194, 1.442695
  %v378 = vpow.pop %v377
  %v379 = vmul.f32 %v195, 1.442695
  %v380 = vpow.pop %v379
  %v381 = vmul.f32 %v196, 1.442695
  %v382 = vpow.pop %v381
  %v383 = vmul.f32 %v197, 1.442695
  %v384 = vpow.pop %v383
  %v385 = vmul.f32 %v198, 1.442695
  %v386 = vpow.pop %v385
  %v387 = vmul.f32 %v199, 1.442695
  %v388 = vpow.pop %v387
  %v389 = vmul.f32 %v200, 1.442695
  %v390 = vpow.pop %v389
  %v391 = vmul.f32 %v201, 1.442695
  %v392 = vpow.pop %v391
  %v393 = vmul.f32 %v202, 1.442695
  %v394 = vpow.pop %v393
  %v395 = vmul.f32 %v203, 1.442695
  %v396 = vpow.pop %v395
  %v397 = vmul.f32 %v204, 1.442695
  %v398 = vpow.pop %v397
  %v399 = vmul.f32 %v205, 1.442695
  %v400 = vpow.pop %v399
  %v401 = vmul.f32 %v206, 1.442695
  %v402 = vpow.pop %v401
  %v403 = vmul.f32 %v207, 1.442695
  %v404 = vpow.pop %v403
  %v405 = vmul.f32 %v208, 1.442695
  %v406 = vpow.pop %v405
  %v407 = vmul.f32 %v209, 1.442695
  %v408 = vpow.pop %v407
  %v409 = vmul.f32 %v210, 1.442695
  %v410 = vpow.pop %v409
  %v411 = vmul.f32 %v211, 1.442695
  %v412 = vpow.pop %v411
  %v413 = vmul.f32 %v212, 1.442695
  %v414 = vpow.pop %v413
  %v415 = vmul.f32 %v213, 1.442695
  %v416 = vpow.pop %v415
  %v417 = vmul.f32 %v214, 1.442695
  %v418 = vpow.pop %v417
  %v419 = vmul.f32 %v215, 1.442695
  %v420 = vpow.pop %v419
  %v421 = vmul.f32 %v216, 1.442695
  %v422 = vpow.pop %v421
  %v423 = vmul.f32 %v217, 1.442695
  %v424 = vpow.pop %v423
  %v425 = vmul.f32 %v218, 1.442695
  %v426 = vpow.pop %v425
  %v427 = vmul.f32 %v219, 1.442695
  %v428 = vpow.pop %v427
  %v429 = vmul.f32 %v220, 1.442695
  %v430 = vpow.pop %v429
  %v431 = vmul.f32 %v221, 1.442695
  %v432 = vpow.pop %v431
  %v433 = vmul.f32 %v222, 1.442695
  %v434 = vpow.pop %v433
  %v435 = vmul.f32 %v223, 1.442695
  %v436 = vpow.pop %v435
  %v437 = vmul.f32 %v224, 1.442695
  %v438 = vpow.pop %v437
  %v439 = vmul.f32 %v225, 1.442695
  %v440 = vpow.pop %v439
  %v441 = vmul.f32 %v226, 1.442695
  %v442 = vpow.pop %v441
  %v443 = vmul.f32 %v227, 1.442695
  %v444 = vpow.pop %v443
  %v445 = vmul.f32 %v228, 1.442695
  %v446 = vpow.pop %v445
  %v447 = vmul.f32 %v229, 1.442695
  %v448 = vpow.pop %v447
  %v449 = vmul.f32 %v230, 1.442695
  %v450 = vpow.pop %v449
  %v451 = vmul.f32 %v231, 1.442695
  %v452 = vpow.pop %v451
  %v453 = vmul.f32 %v232, 1.442695
  %v454 = vpow.pop %v453
  %v455 = vmul.f32 %v233, 1.442695
  %v456 = vpow.pop %v455
  %v457 = vmul.f32 %v234, 1.442695
  %v458 = vpow.pop %v457
  %v459 = vmul.f32 %v235, 1.442695
  %v460 = vpow.pop %v459
  %v461 = vmul.f32 %v236, 1.442695
  %v462 = vpow.pop %v461
  %v463 = vmul.f32 %v237, 1.442695
  %v464 = vpow.pop %v463
  %v465 = vmul.f32 %v238, 1.442695
  %v466 = vpow.pop %v465
  %v467 = vmul.f32 %v239, 1.442695
  %v468 = vpow.pop %v467
  %v469 = vmul.f32 %v240, 1.442695
  %v470 = vpow.pop %v469
  %v471 = vmul.f32 %v241, 1.442695
  %v472 = vpow.pop %v471
  %v473 = vmul.f32 %v242, 1.442695
  %v474 = vpow.pop %v473
  %v475 = vmul.f32 %v243, 1.442695
  %v476 = vpow.pop %v475
  %v477 = vmul.f32 %v244, 1.442695
  %v478 = vpow.pop %v477
  %v479 = vmul.f32 %v245, 1.442695
  %v480 = vpow.pop %v479
  %v481 = vmul.f32 %v246, 1.442695
  %v482 = vpow.pop %v481
  %v483 = vmul.f32 %v247, 1.442695
  %v484 = vpow.pop %v483
  %v485 = vmul.f32 %v248, 1.442695
  %v486 = vpow.pop %v485
  %v487 = vmul.f32 %v249, 1.442695
  %v488 = vpow.pop %v487
  %v489 = vmul.f32 %v250, 1.442695
  %v490 = vpow.pop %v489
  %v491 = vadd.f32 %v252, 1.0
  %v492 = vadd.f32 %v254, 1.0
  %v493 = vadd.f32 %v256, 1.0
  %v494 = vadd.f32 %v258, 1.0
  %v495 = vadd.f32 %v260, 1.0
  %v496 = vadd.f32 %v262, 1.0
  %v497 = vadd.f32 %v264, 1.0
  %v498 = vadd.f32 %v266, 1.0
  %v499 = vadd.f32 %v268, 1.0
  %v500 = vadd.f32 %v270, 1.0
  %v501 = vadd.f32 %v272, 1.0
  %v502 = vadd.f32 %v274, 1.0
  %v503 = vadd.f32 %v276, 1.0
  %v504 = vadd.f32 %v278, 1.0
  %v505 = vadd.f32 %v280, 1.0
  %v506 = vadd.f32 %v282, 1.0
  %v507 = vadd.f32 %v284, 1.0
  %v508 = vadd.f32 %v286, 1.0
  %v509 = vadd.f32 %v288, 1.0
  %v510 = vadd.f32 %v290, 1.0
  %v511 = vadd.f32 %v292, 1.0
  %v512 = vadd.f32 %v294, 1.0
  %v513 = vadd.f32 %v296, 1.0
  %v514 = vadd.f32 %v298, 1.0
  %v515 = vadd.f32 %v300, 1.0
  %v516 = vadd.f32 %v302, 1.0
  %v517 = vadd.f32 %v304, 1.0
  %v518 = vadd.f32 %v306, 1.0
  %v519 = vadd.f32 %v308, 1.0
  %v520 = vadd.f32 %v310, 1.0
  %v521 = vadd.f32 %v312, 1.0
  %v522 = vadd.f32 %v314, 1.0
  %v523 = vadd.f32 %v316, 1.0
  %v524 = vadd.f32 %v318, 1.0
  %v525 = vadd.f32 %v320, 1.0
  %v526 = vadd.f32 %v322, 1.0
  %v527 = vadd.f32 %v324, 1.0
  %v528 = vadd.f32 %v326, 1.0
  %v529 = vadd.f32 %v328, 1.0
  %v530 = vadd.f32 %v330, 1.0
  %v531 = vadd.f32 %v332, 1.0
  %v532 = vadd.f32 %v334, 1.0
  %v533 = vadd.f32 %v336, 1.0
  %v534 = vadd.f32 %v338, 1.0
  %v535 = vadd.f32 %v340, 1.0
  %v536 = vadd.f32 %v342, 1.0
  %v537 = vadd.f32 %v344, 1.0
  %v538 = vadd.f32 %v346, 1.0
  %v539 = vadd.f32 %v348, 1.0
  %v540 = vadd.f32 %v350, 1.0
  %v541 = vadd.f32 %v352, 1.0
  %v542 = vadd.f32 %v354, 1.0
  %v543 = vadd.f32 %v356, 1.0
  %v544 = vadd.f32 %v358, 1.0
  %v545 = vadd.f32 %v360, 1.0
  %v546 = vadd.f32 %v362, 1.0
  %v547 = vadd.f32 %v364, 1.0
  %v548 = vadd.f32 %v366, 1.0
  %v549 = vadd.f32 %v368, 1.0
  %v550 = vadd.f32 %v370, 1.0
  %v551 = vadd.f32 %v372, 1.0
  %v552 = vadd.f32 %v374, 1.0
  %v553 = vadd.f32 %v376, 1.0
  %v554 = vadd.f32 %v378, 1.0
  %v555 = vadd.f32 %v380, 1.0
  %v556 = vadd.f32 %v382, 1.0
  %v557 = vadd.f32 %v384, 1.0
  %v558 = vadd.f32 %v386, 1.0
  %v559 = vadd.f32 %v388, 1.0
  %v560 = vadd.f32 %v390, 1.0
  %v561 = vadd.f32 %v392, 1.0
  %v562 = vadd.f32 %v394, 1.0
  %v563 = vadd.f32 %v396, 1.0
  %v564 = vadd.f32 %v398, 1.0
  %v565 = vadd.f32 %v400, 1.0
  %v566 = vadd.f32 %v402, 1.0
  %v567 = vadd.f32 %v404, 1.0
  %v568 = vadd.f32 %v406, 1.0
  %v569 = vadd.f32 %v408, 1.0
  %v570 = vadd.f32 %v410, 1.0
  %v571 = vadd.f32 %v412, 1.0
  %v572 = vadd.f32 %v414, 1.0
  %v573 = vadd.f32 %v416, 1.0
  %v574 = vadd.f32 %v418, 1.0
  %v575 = vadd.f32 %v420, 1.0
  %v576 = vadd.f32 %v422, 1.0
  %v577 = vadd.f32 %v424, 1.0
  %v578 = vadd.f32 %v426, 1.0
  %v579 = vadd.f32 %v428, 1.0
  %v580 = vadd.f32 %v430, 1.0
  %v581 = vadd.f32 %v432, 1.0
  %v582 = vadd.f32 %v434, 1.0
  %v583 = vadd.f32 %v436, 1.0
  %v584 = vadd.f32 %v438, 1.0
  %v585 = vadd.f32 %v440, 1.0
  %v586 = vadd.f32 %v442, 1.0
  %v587 = vadd.f32 %v444, 1.0
  %v588 = vadd.f32 %v446, 1.0
  %v589 = vadd.f32 %v448, 1.0
  %v590 = vadd.f32 %v450, 1.0
  %v591 = vadd.f32 %v452, 1.0
  %v592 = vadd.f32 %v454, 1.0
  %v593 = vadd.f32 %v456, 1.0
  %v594 = vadd.f32 %v458, 1.0
  %v595 = vadd.f32 %v460, 1.0
  %v596 = vadd.f32 %v462, 1.0
  %v597 = vadd.f32 %v464, 1.0
  %v598 = vadd.f32 %v466, 1.0
  %v599 = vadd.f32 %v468, 1.0
  %v600 = vadd.f32 %v470, 1.0
  %v601 = vadd.f32 %v472, 1.0
  %v602 = vadd.f32 %v474, 1.0
  %v603 = vadd.f32 %v476, 1.0
  %v604 = vadd.f32 %v478, 1.0
  %v605 = vadd.f32 %v480, 1.0
  %v606 = vadd.f32 %v482, 1.0
  %v607 = vadd.f32 %v484, 1.0
  %v608 = vadd.f32 %v486, 1.0
  %v609 = vadd.f32 %v488, 1.0
  %v610 = vadd.f32 %v490, 1.0
  %v611 = vrcp.pop %v491
  %v612 = vmul.f32 %v491, %v611
  %v613 = vsub.f32 1.0, %v612
  %v614 = vmul.f32 %v611, %v613
  %v615 = vadd.f32 %v611, %v614
  %vm616 = vweird.f32 %v491
  %vm617 = vweird.f32 %v611
  %vm618 = vmor %vm616, %vm617
  %v619 = vsel %vm618, %v611, %v615
  %v620 = vand.u32 2147483647, %v491
  %vm621 = vcmp.eq.f32.partialorder %v620, 8.507059e+37
  %v622 = vand.u32 %v491, 2147483648
  %v623 = vor.u32 1.1754944e-38, %v622
  %v624 = vsel %vm621, %v623, %v619
  %v625 = vmul.f32 1.0, %v624
  %v626 = vrcp.pop %v492
  %v627 = vmul.f32 %v492, %v626
  %v628 = vsub.f32 1.0, %v627
  %v629 = vmul.f32 %v626, %v628
  %v630 = vadd.f32 %v626, %v629
  %vm631 = vweird.f32 %v492
  %vm632 = vweird.f32 %v626
  %vm633 = vmor %vm631, %vm632
  %v634 = vsel %vm633, %v626, %v630
  %v635 = vand.u32 2147483647, %v492
  %vm636 = vcmp.eq.f32.partialorder %v635, 8.507059e+37
  %v637 = vand.u32 %v492, 2147483648
  %v638 = vor.u32 1.1754944e-38, %v637
  %v639 = vsel %vm636, %v638, %v634
  %v640 = vmul.f32 1.0, %v639
  %v641 = vrcp.pop %v493
  %v642 = vmul.f32 %v493, %v641
  %v643 = vsub.f32 1.0, %v642
  %v644 = vmul.f32 %v641, %v643
  %v645 = vadd.f32 %v641, %v644
  %vm646 = vweird.f32 %v493
  %vm647 = vweird.f32 %v641
  %vm648 = vmor %vm646, %vm647
  %v649 = vsel %vm648, %v641, %v645
  %v650 = vand.u32 2147483647, %v493
  %vm651 = vcmp.eq.f32.partialorder %v650, 8.507059e+37
  %v652 = vand.u32 %v493, 2147483648
  %v653 = vor.u32 1.1754944e-38, %v652
  %v654 = vsel %vm651, %v653, %v649
  %v655 = vmul.f32 1.0, %v654
  %v656 = vrcp.pop %v494
  %v657 = vmul.f32 %v494, %v656
  %v658 = vsub.f32 1.0, %v657
  %v659 = vmul.f32 %v656, %v658
  %v660 = vadd.f32 %v656, %v659
  %vm661 = vweird.f32 %v494
  %vm662 = vweird.f32 %v656
  %vm663 = vmor %vm661, %vm662
  %v664 = vsel %vm663, %v656, %v660
  %v665 = vand.u32 2147483647, %v494
  %vm666 = vcmp.eq.f32.partialorder %v665, 8.507059e+37
  %v667 = vand.u32 %v494, 2147483648
  %v668 = vor.u32 1.1754944e-38, %v667
  %v669 = vsel %vm666, %v668, %v664
  %v670 = vmul.f32 1.0, %v669
  %v671 = vrcp.pop %v495
  %v672 = vmul.f32 %v495, %v671
  %v673 = vsub.f32 1.0, %v672
  %v674 = vmul.f32 %v671, %v673
  %v675 = vadd.f32 %v671, %v674
  %vm676 = vweird.f32 %v495
  %vm677 = vweird.f32 %v671
  %vm678 = vmor %vm676, %vm677
  %v679 = vsel %vm678, %v671, %v675
  %v680 = vand.u32 2147483647, %v495
  %vm681 = vcmp.eq.f32.partialorder %v680, 8.507059e+37
  %v682 = vand.u32 %v495, 2147483648
  %v683 = vor.u32 1.1754944e-38, %v682
  %v684 = vsel %vm681, %v683, %v679
  %v685 = vmul.f32 1.0, %v684
  %v686 = vrcp.pop %v496
  %v687 = vmul.f32 %v496, %v686
  %v688 = vsub.f32 1.0, %v687
  %v689 = vmul.f32 %v686, %v688
  %v690 = vadd.f32 %v686, %v689
  %vm691 = vweird.f32 %v496
  %vm692 = vweird.f32 %v686
  %vm693 = vmor %vm691, %vm692
  %v694 = vsel %vm693, %v686, %v690
  %v695 = vand.u32 2147483647, %v496
  %vm696 = vcmp.eq.f32.partialorder %v695, 8.507059e+37
  %v697 = vand.u32 %v496, 2147483648
  %v698 = vor.u32 1.1754944e-38, %v697
  %v699 = vsel %vm696, %v698, %v694
  %v700 = vmul.f32 1.0, %v699
  %v701 = vrcp.pop %v497
  %v702 = vmul.f32 %v497, %v701
  %v703 = vsub.f32 1.0, %v702
  %v704 = vmul.f32 %v701, %v703
  %v705 = vadd.f32 %v701, %v704
  %vm706 = vweird.f32 %v497
  %vm707 = vweird.f32 %v701
  %vm708 = vmor %vm706, %vm707
  %v709 = vsel %vm708, %v701, %v705
  %v710 = vand.u32 2147483647, %v497
  %vm711 = vcmp.eq.f32.partialorder %v710, 8.507059e+37
  %v712 = vand.u32 %v497, 2147483648
  %v713 = vor.u32 1.1754944e-38, %v712
  %v714 = vsel %vm711, %v713, %v709
  %v715 = vmul.f32 1.0, %v714
  %v716 = vrcp.pop %v498
  %v717 = vmul.f32 %v498, %v716
  %v718 = vsub.f32 1.0, %v717
  %v719 = vmul.f32 %v716, %v718
  %v720 = vadd.f32 %v716, %v719
  %vm721 = vweird.f32 %v498
  %vm722 = vweird.f32 %v716
  %vm723 = vmor %vm721, %vm722
  %v724 = vsel %vm723, %v716, %v720
  %v725 = vand.u32 2147483647, %v498
  %vm726 = vcmp.eq.f32.partialorder %v725, 8.507059e+37
  %v727 = vand.u32 %v498, 2147483648
  %v728 = vor.u32 1.1754944e-38, %v727
  %v729 = vsel %vm726, %v728, %v724
  %v730 = vmul.f32 1.0, %v729
  %v731 = vrcp.pop %v499
  %v732 = vmul.f32 %v499, %v731
  %v733 = vsub.f32 1.0, %v732
  %v734 = vmul.f32 %v731, %v733
  %v735 = vadd.f32 %v731, %v734
  %vm736 = vweird.f32 %v499
  %vm737 = vweird.f32 %v731
  %vm738 = vmor %vm736, %vm737
  %v739 = vsel %vm738, %v731, %v735
  %v740 = vand.u32 2147483647, %v499
  %vm741 = vcmp.eq.f32.partialorder %v740, 8.507059e+37
  %v742 = vand.u32 %v499, 2147483648
  %v743 = vor.u32 1.1754944e-38, %v742
  %v744 = vsel %vm741, %v743, %v739
  %v745 = vmul.f32 1.0, %v744
  %v746 = vrcp.pop %v500
  %v747 = vmul.f32 %v500, %v746
  %v748 = vsub.f32 1.0, %v747
  %v749 = vmul.f32 %v746, %v748
  %v750 = vadd.f32 %v746, %v749
  %vm751 = vweird.f32 %v500
  %vm752 = vweird.f32 %v746
  %vm753 = vmor %vm751, %vm752
  %v754 = vsel %vm753, %v746, %v750
  %v755 = vand.u32 2147483647, %v500
  %vm756 = vcmp.eq.f32.partialorder %v755, 8.507059e+37
  %v757 = vand.u32 %v500, 2147483648
  %v758 = vor.u32 1.1754944e-38, %v757
  %v759 = vsel %vm756, %v758, %v754
  %v760 = vmul.f32 1.0, %v759
  %v761 = vrcp.pop %v501
  %v762 = vmul.f32 %v501, %v761
  %v763 = vsub.f32 1.0, %v762
  %v764 = vmul.f32 %v761, %v763
  %v765 = vadd.f32 %v761, %v764
  %vm766 = vweird.f32 %v501
  %vm767 = vweird.f32 %v761
  %vm768 = vmor %vm766, %vm767
  %v769 = vsel %vm768, %v761, %v765
  %v770 = vand.u32 2147483647, %v501
  %vm771 = vcmp.eq.f32.partialorder %v770, 8.507059e+37
  %v772 = vand.u32 %v501, 2147483648
  %v773 = vor.u32 1.1754944e-38, %v772
  %v774 = vsel %vm771, %v773, %v769
  %v775 = vmul.f32 1.0, %v774
  %v776 = vrcp.pop %v502
  %v777 = vmul.f32 %v502, %v776
  %v778 = vsub.f32 1.0, %v777
  %v779 = vmul.f32 %v776, %v778
  %v780 = vadd.f32 %v776, %v779
  %vm781 = vweird.f32 %v502
  %vm782 = vweird.f32 %v776
  %vm783 = vmor %vm781, %vm782
  %v784 = vsel %vm783, %v776, %v780
  %v785 = vand.u32 2147483647, %v502
  %vm786 = vcmp.eq.f32.partialorder %v785, 8.507059e+37
  %v787 = vand.u32 %v502, 2147483648
  %v788 = vor.u32 1.1754944e-38, %v787
  %v789 = vsel %vm786, %v788, %v784
  %v790 = vmul.f32 1.0, %v789
  %v791 = vrcp.pop %v503
  %v792 = vmul.f32 %v503, %v791
  %v793 = vsub.f32 1.0, %v792
  %v794 = vmul.f32 %v791, %v793
  %v795 = vadd.f32 %v791, %v794
  %vm796 = vweird.f32 %v503
  %vm797 = vweird.f32 %v791
  %vm798 = vmor %vm796, %vm797
  %v799 = vsel %vm798, %v791, %v795
  %v800 = vand.u32 2147483647, %v503
  %vm801 = vcmp.eq.f32.partialorder %v800, 8.507059e+37
  %v802 = vand.u32 %v503, 2147483648
  %v803 = vor.u32 1.1754944e-38, %v802
  %v804 = vsel %vm801, %v803, %v799
  %v805 = vmul.f32 1.0, %v804
  %v806 = vrcp.pop %v504
  %v807 = vmul.f32 %v504, %v806
  %v808 = vsub.f32 1.0, %v807
  %v809 = vmul.f32 %v806, %v808
  %v810 = vadd.f32 %v806, %v809
  %vm811 = vweird.f32 %v504
  %vm812 = vweird.f32 %v806
  %vm813 = vmor %vm811, %vm812
  %v814 = vsel %vm813, %v806, %v810
  %v815 = vand.u32 2147483647, %v504
  %vm816 = vcmp.eq.f32.partialorder %v815, 8.507059e+37
  %v817 = vand.u32 %v504, 2147483648
  %v818 = vor.u32 1.1754944e-38, %v817
  %v819 = vsel %vm816, %v818, %v814
  %v820 = vmul.f32 1.0, %v819
  %v821 = vrcp.pop %v505
  %v822 = vmul.f32 %v505, %v821
  %v823 = vsub.f32 1.0, %v822
  %v824 = vmul.f32 %v821, %v823
  %v825 = vadd.f32 %v821, %v824
  %vm826 = vweird.f32 %v505
  %vm827 = vweird.f32 %v821
  %vm828 = vmor %vm826, %vm827
  %v829 = vsel %vm828, %v821, %v825
  %v830 = vand.u32 2147483647, %v505
  %vm831 = vcmp.eq.f32.partialorder %v830, 8.507059e+37
  %v832 = vand.u32 %v505, 2147483648
  %v833 = vor.u32 1.1754944e-38, %v832
  %v834 = vsel %vm831, %v833, %v829
  %v835 = vmul.f32 1.0, %v834
  %v836 = vrcp.pop %v506
  %v837 = vmul.f32 %v506, %v836
  %v838 = vsub.f32 1.0, %v837
  %v839 = vmul.f32 %v836, %v838
  %v840 = vadd.f32 %v836, %v839
  %vm841 = vweird.f32 %v506
  %vm842 = vweird.f32 %v836
  %vm843 = vmor %vm841, %vm842
  %v844 = vsel %vm843, %v836, %v840
  %v845 = vand.u32 2147483647, %v506
  %vm846 = vcmp.eq.f32.partialorder %v845, 8.507059e+37
  %v847 = vand.u32 %v506, 2147483648
  %v848 = vor.u32 1.1754944e-38, %v847
  %v849 = vsel %vm846, %v848, %v844
  %v850 = vmul.f32 1.0, %v849
  %v851 = vrcp.pop %v507
  %v852 = vmul.f32 %v507, %v851
  %v853 = vsub.f32 1.0, %v852
  %v854 = vmul.f32 %v851, %v853
  %v855 = vadd.f32 %v851, %v854
  %vm856 = vweird.f32 %v507
  %vm857 = vweird.f32 %v851
  %vm858 = vmor %vm856, %vm857
  %v859 = vsel %vm858, %v851, %v855
  %v860 = vand.u32 2147483647, %v507
  %vm861 = vcmp.eq.f32.partialorder %v860, 8.507059e+37
  %v862 = vand.u32 %v507, 2147483648
  %v863 = vor.u32 1.1754944e-38, %v862
  %v864 = vsel %vm861, %v863, %v859
  %v865 = vmul.f32 1.0, %v864
  %v866 = vrcp.pop %v508
  %v867 = vmul.f32 %v508, %v866
  %v868 = vsub.f32 1.0, %v867
  %v869 = vmul.f32 %v866, %v868
  %v870 = vadd.f32 %v866, %v869
  %vm871 = vweird.f32 %v508
  %vm872 = vweird.f32 %v866
  %vm873 = vmor %vm871, %vm872
  %v874 = vsel %vm873, %v866, %v870
  %v875 = vand.u32 2147483647, %v508
  %vm876 = vcmp.eq.f32.partialorder %v875, 8.507059e+37
  %v877 = vand.u32 %v508, 2147483648
  %v878 = vor.u32 1.1754944e-38, %v877
  %v879 = vsel %vm876, %v878, %v874
  %v880 = vmul.f32 1.0, %v879
  %v881 = vrcp.pop %v509
  %v882 = vmul.f32 %v509, %v881
  %v883 = vsub.f32 1.0, %v882
  %v884 = vmul.f32 %v881, %v883
  %v885 = vadd.f32 %v881, %v884
  %vm886 = vweird.f32 %v509
  %vm887 = vweird.f32 %v881
  %vm888 = vmor %vm886, %vm887
  %v889 = vsel %vm888, %v881, %v885
  %v890 = vand.u32 2147483647, %v509
  %vm891 = vcmp.eq.f32.partialorder %v890, 8.507059e+37
  %v892 = vand.u32 %v509, 2147483648
  %v893 = vor.u32 1.1754944e-38, %v892
  %v894 = vsel %vm891, %v893, %v889
  %v895 = vmul.f32 1.0, %v894
  %v896 = vrcp.pop %v510
  %v897 = vmul.f32 %v510, %v896
  %v898 = vsub.f32 1.0, %v897
  %v899 = vmul.f32 %v896, %v898
  %v900 = vadd.f32 %v896, %v899
  %vm901 = vweird.f32 %v510
  %vm902 = vweird.f32 %v896
  %vm903 = vmor %vm901, %vm902
  %v904 = vsel %vm903, %v896, %v900
  %v905 = vand.u32 2147483647, %v510
  %vm906 = vcmp.eq.f32.partialorder %v905, 8.507059e+37
  %v907 = vand.u32 %v510, 2147483648
  %v908 = vor.u32 1.1754944e-38, %v907
  %v909 = vsel %vm906, %v908, %v904
  %v910 = vmul.f32 1.0, %v909
  %v911 = vrcp.pop %v511
  %v912 = vmul.f32 %v511, %v911
  %v913 = vsub.f32 1.0, %v912
  %v914 = vmul.f32 %v911, %v913
  %v915 = vadd.f32 %v911, %v914
  %vm916 = vweird.f32 %v511
  %vm917 = vweird.f32 %v911
  %vm918 = vmor %vm916, %vm917
  %v919 = vsel %vm918, %v911, %v915
  %v920 = vand.u32 2147483647, %v511
  %vm921 = vcmp.eq.f32.partialorder %v920, 8.507059e+37
  %v922 = vand.u32 %v511, 2147483648
  %v923 = vor.u32 1.1754944e-38, %v922
  %v924 = vsel %vm921, %v923, %v919
  %v925 = vmul.f32 1.0, %v924
  %v926 = vrcp.pop %v512
  %v927 = vmul.f32 %v512, %v926
  %v928 = vsub.f32 1.0, %v927
  %v929 = vmul.f32 %v926, %v928
  %v930 = vadd.f32 %v926, %v929
  %vm931 = vweird.f32 %v512
  %vm932 = vweird.f32 %v926
  %vm933 = vmor %vm931, %vm932
  %v934 = vsel %vm933, %v926, %v930
  %v935 = vand.u32 2147483647, %v512
  %vm936 = vcmp.eq.f32.partialorder %v935, 8.507059e+37
  %v937 = vand.u32 %v512, 2147483648
  %v938 = vor.u32 1.1754944e-38, %v937
  %v939 = vsel %vm936, %v938, %v934
  %v940 = vmul.f32 1.0, %v939
  %v941 = vrcp.pop %v513
  %v942 = vmul.f32 %v513, %v941
  %v943 = vsub.f32 1.0, %v942
  %v944 = vmul.f32 %v941, %v943
  %v945 = vadd.f32 %v941, %v944
  %vm946 = vweird.f32 %v513
  %vm947 = vweird.f32 %v941
  %vm948 = vmor %vm946, %vm947
  %v949 = vsel %vm948, %v941, %v945
  %v950 = vand.u32 2147483647, %v513
  %vm951 = vcmp.eq.f32.partialorder %v950, 8.507059e+37
  %v952 = vand.u32 %v513, 2147483648
  %v953 = vor.u32 1.1754944e-38, %v952
  %v954 = vsel %vm951, %v953, %v949
  %v955 = vmul.f32 1.0, %v954
  %v956 = vrcp.pop %v514
  %v957 = vmul.f32 %v514, %v956
  %v958 = vsub.f32 1.0, %v957
  %v959 = vmul.f32 %v956, %v958
  %v960 = vadd.f32 %v956, %v959
  %vm961 = vweird.f32 %v514
  %vm962 = vweird.f32 %v956
  %vm963 = vmor %vm961, %vm962
  %v964 = vsel %vm963, %v956, %v960
  %v965 = vand.u32 2147483647, %v514
  %vm966 = vcmp.eq.f32.partialorder %v965, 8.507059e+37
  %v967 = vand.u32 %v514, 2147483648
  %v968 = vor.u32 1.1754944e-38, %v967
  %v969 = vsel %vm966, %v968, %v964
  %v970 = vmul.f32 1.0, %v969
  %v971 = vrcp.pop %v515
  %v972 = vmul.f32 %v515, %v971
  %v973 = vsub.f32 1.0, %v972
  %v974 = vmul.f32 %v971, %v973
  %v975 = vadd.f32 %v971, %v974
  %vm976 = vweird.f32 %v515
  %vm977 = vweird.f32 %v971
  %vm978 = vmor %vm976, %vm977
  %v979 = vsel %vm978, %v971, %v975
  %v980 = vand.u32 2147483647, %v515
  %vm981 = vcmp.eq.f32.partialorder %v980, 8.507059e+37
  %v982 = vand.u32 %v515, 2147483648
  %v983 = vor.u32 1.1754944e-38, %v982
  %v984 = vsel %vm981, %v983, %v979
  %v985 = vmul.f32 1.0, %v984
  %v986 = vrcp.pop %v516
  %v987 = vmul.f32 %v516, %v986
  %v988 = vsub.f32 1.0, %v987
  %v989 = vmul.f32 %v986, %v988
  %v990 = vadd.f32 %v986, %v989
  %vm991 = vweird.f32 %v516
  %vm992 = vweird.f32 %v986
  %vm993 = vmor %vm991, %vm992
  %v994 = vsel %vm993, %v986, %v990
  %v995 = vand.u32 2147483647, %v516
  %vm996 = vcmp.eq.f32.partialorder %v995, 8.507059e+37
  %v997 = vand.u32 %v516, 2147483648
  %v998 = vor.u32 1.1754944e-38, %v997
  %v999 = vsel %vm996, %v998, %v994
  %v1000 = vmul.f32 1.0, %v999
  %v1001 = vrcp.pop %v517
  %v1002 = vmul.f32 %v517, %v1001
  %v1003 = vsub.f32 1.0, %v1002
  %v1004 = vmul.f32 %v1001, %v1003
  %v1005 = vadd.f32 %v1001, %v1004
  %vm1006 = vweird.f32 %v517
  %vm1007 = vweird.f32 %v1001
  %vm1008 = vmor %vm1006, %vm1007
  %v1009 = vsel %vm1008, %v1001, %v1005
  %v1010 = vand.u32 2147483647, %v517
  %vm1011 = vcmp.eq.f32.partialorder %v1010, 8.507059e+37
  %v1012 = vand.u32 %v517, 2147483648
  %v1013 = vor.u32 1.1754944e-38, %v1012
  %v1014 = vsel %vm1011, %v1013, %v1009
  %v1015 = vmul.f32 1.0, %v1014
  %v1016 = vrcp.pop %v518
  %v1017 = vmul.f32 %v518, %v1016
  %v1018 = vsub.f32 1.0, %v1017
  %v1019 = vmul.f32 %v1016, %v1018
  %v1020 = vadd.f32 %v1016, %v1019
  %vm1021 = vweird.f32 %v518
  %vm1022 = vweird.f32 %v1016
  %vm1023 = vmor %vm1021, %vm1022
  %v1024 = vsel %vm1023, %v1016, %v1020
  %v1025 = vand.u32 2147483647, %v518
  %vm1026 = vcmp.eq.f32.partialorder %v1025, 8.507059e+37
  %v1027 = vand.u32 %v518, 2147483648
  %v1028 = vor.u32 1.1754944e-38, %v1027
  %v1029 = vsel %vm1026, %v1028, %v1024
  %v1030 = vmul.f32 1.0, %v1029
  %v1031 = vrcp.pop %v519
  %v1032 = vmul.f32 %v519, %v1031
  %v1033 = vsub.f32 1.0, %v1032
  %v1034 = vmul.f32 %v1031, %v1033
  %v1035 = vadd.f32 %v1031, %v1034
  %vm1036 = vweird.f32 %v519
  %vm1037 = vweird.f32 %v1031
  %vm1038 = vmor %vm1036, %vm1037
  %v1039 = vsel %vm1038, %v1031, %v1035
  %v1040 = vand.u32 2147483647, %v519
  %vm1041 = vcmp.eq.f32.partialorder %v1040, 8.507059e+37
  %v1042 = vand.u32 %v519, 2147483648
  %v1043 = vor.u32 1.1754944e-38, %v1042
  %v1044 = vsel %vm1041, %v1043, %v1039
  %v1045 = vmul.f32 1.0, %v1044
  %v1046 = vrcp.pop %v520
  %v1047 = vmul.f32 %v520, %v1046
  %v1048 = vsub.f32 1.0, %v1047
  %v1049 = vmul.f32 %v1046, %v1048
  %v1050 = vadd.f32 %v1046, %v1049
  %vm1051 = vweird.f32 %v520
  %vm1052 = vweird.f32 %v1046
  %vm1053 = vmor %vm1051, %vm1052
  %v1054 = vsel %vm1053, %v1046, %v1050
  %v1055 = vand.u32 2147483647, %v520
  %vm1056 = vcmp.eq.f32.partialorder %v1055, 8.507059e+37
  %v1057 = vand.u32 %v520, 2147483648
  %v1058 = vor.u32 1.1754944e-38, %v1057
  %v1059 = vsel %vm1056, %v1058, %v1054
  %v1060 = vmul.f32 1.0, %v1059
  %v1061 = vrcp.pop %v521
  %v1062 = vmul.f32 %v521, %v1061
  %v1063 = vsub.f32 1.0, %v1062
  %v1064 = vmul.f32 %v1061, %v1063
  %v1065 = vadd.f32 %v1061, %v1064
  %vm1066 = vweird.f32 %v521
  %vm1067 = vweird.f32 %v1061
  %vm1068 = vmor %vm1066, %vm1067
  %v1069 = vsel %vm1068, %v1061, %v1065
  %v1070 = vand.u32 2147483647, %v521
  %vm1071 = vcmp.eq.f32.partialorder %v1070, 8.507059e+37
  %v1072 = vand.u32 %v521, 2147483648
  %v1073 = vor.u32 1.1754944e-38, %v1072
  %v1074 = vsel %vm1071, %v1073, %v1069
  %v1075 = vmul.f32 1.0, %v1074
  %v1076 = vrcp.pop %v522
  %v1077 = vmul.f32 %v522, %v1076
  %v1078 = vsub.f32 1.0, %v1077
  %v1079 = vmul.f32 %v1076, %v1078
  %v1080 = vadd.f32 %v1076, %v1079
  %vm1081 = vweird.f32 %v522
  %vm1082 = vweird.f32 %v1076
  %vm1083 = vmor %vm1081, %vm1082
  %v1084 = vsel %vm1083, %v1076, %v1080
  %v1085 = vand.u32 2147483647, %v522
  %vm1086 = vcmp.eq.f32.partialorder %v1085, 8.507059e+37
  %v1087 = vand.u32 %v522, 2147483648
  %v1088 = vor.u32 1.1754944e-38, %v1087
  %v1089 = vsel %vm1086, %v1088, %v1084
  %v1090 = vmul.f32 1.0, %v1089
  %v1091 = vrcp.pop %v523
  %v1092 = vmul.f32 %v523, %v1091
  %v1093 = vsub.f32 1.0, %v1092
  %v1094 = vmul.f32 %v1091, %v1093
  %v1095 = vadd.f32 %v1091, %v1094
  %vm1096 = vweird.f32 %v523
  %vm1097 = vweird.f32 %v1091
  %vm1098 = vmor %vm1096, %vm1097
  %v1099 = vsel %vm1098, %v1091, %v1095
  %v1100 = vand.u32 2147483647, %v523
  %vm1101 = vcmp.eq.f32.partialorder %v1100, 8.507059e+37
  %v1102 = vand.u32 %v523, 2147483648
  %v1103 = vor.u32 1.1754944e-38, %v1102
  %v1104 = vsel %vm1101, %v1103, %v1099
  %v1105 = vmul.f32 1.0, %v1104
  %v1106 = vrcp.pop %v524
  %v1107 = vmul.f32 %v524, %v1106
  %v1108 = vsub.f32 1.0, %v1107
  %v1109 = vmul.f32 %v1106, %v1108
  %v1110 = vadd.f32 %v1106, %v1109
  %vm1111 = vweird.f32 %v524
  %vm1112 = vweird.f32 %v1106
  %vm1113 = vmor %vm1111, %vm1112
  %v1114 = vsel %vm1113, %v1106, %v1110
  %v1115 = vand.u32 2147483647, %v524
  %vm1116 = vcmp.eq.f32.partialorder %v1115, 8.507059e+37
  %v1117 = vand.u32 %v524, 2147483648
  %v1118 = vor.u32 1.1754944e-38, %v1117
  %v1119 = vsel %vm1116, %v1118, %v1114
  %v1120 = vmul.f32 1.0, %v1119
  %v1121 = vrcp.pop %v525
  %v1122 = vmul.f32 %v525, %v1121
  %v1123 = vsub.f32 1.0, %v1122
  %v1124 = vmul.f32 %v1121, %v1123
  %v1125 = vadd.f32 %v1121, %v1124
  %vm1126 = vweird.f32 %v525
  %vm1127 = vweird.f32 %v1121
  %vm1128 = vmor %vm1126, %vm1127
  %v1129 = vsel %vm1128, %v1121, %v1125
  %v1130 = vand.u32 2147483647, %v525
  %vm1131 = vcmp.eq.f32.partialorder %v1130, 8.507059e+37
  %v1132 = vand.u32 %v525, 2147483648
  %v1133 = vor.u32 1.1754944e-38, %v1132
  %v1134 = vsel %vm1131, %v1133, %v1129
  %v1135 = vmul.f32 1.0, %v1134
  %v1136 = vrcp.pop %v526
  %v1137 = vmul.f32 %v526, %v1136
  %v1138 = vsub.f32 1.0, %v1137
  %v1139 = vmul.f32 %v1136, %v1138
  %v1140 = vadd.f32 %v1136, %v1139
  %vm1141 = vweird.f32 %v526
  %vm1142 = vweird.f32 %v1136
  %vm1143 = vmor %vm1141, %vm1142
  %v1144 = vsel %vm1143, %v1136, %v1140
  %v1145 = vand.u32 2147483647, %v526
  %vm1146 = vcmp.eq.f32.partialorder %v1145, 8.507059e+37
  %v1147 = vand.u32 %v526, 2147483648
  %v1148 = vor.u32 1.1754944e-38, %v1147
  %v1149 = vsel %vm1146, %v1148, %v1144
  %v1150 = vmul.f32 1.0, %v1149
  %v1151 = vrcp.pop %v527
  %v1152 = vmul.f32 %v527, %v1151
  %v1153 = vsub.f32 1.0, %v1152
  %v1154 = vmul.f32 %v1151, %v1153
  %v1155 = vadd.f32 %v1151, %v1154
  %vm1156 = vweird.f32 %v527
  %vm1157 = vweird.f32 %v1151
  %vm1158 = vmor %vm1156, %vm1157
  %v1159 = vsel %vm1158, %v1151, %v1155
  %v1160 = vand.u32 2147483647, %v527
  %vm1161 = vcmp.eq.f32.partialorder %v1160, 8.507059e+37
  %v1162 = vand.u32 %v527, 2147483648
  %v1163 = vor.u32 1.1754944e-38, %v1162
  %v1164 = vsel %vm1161, %v1163, %v1159
  %v1165 = vmul.f32 1.0, %v1164
  %v1166 = vrcp.pop %v528
  %v1167 = vmul.f32 %v528, %v1166
  %v1168 = vsub.f32 1.0, %v1167
  %v1169 = vmul.f32 %v1166, %v1168
  %v1170 = vadd.f32 %v1166, %v1169
  %vm1171 = vweird.f32 %v528
  %vm1172 = vweird.f32 %v1166
  %vm1173 = vmor %vm1171, %vm1172
  %v1174 = vsel %vm1173, %v1166, %v1170
  %v1175 = vand.u32 2147483647, %v528
  %vm1176 = vcmp.eq.f32.partialorder %v1175, 8.507059e+37
  %v1177 = vand.u32 %v528, 2147483648
  %v1178 = vor.u32 1.1754944e-38, %v1177
  %v1179 = vsel %vm1176, %v1178, %v1174
  %v1180 = vmul.f32 1.0, %v1179
  %v1181 = vrcp.pop %v529
  %v1182 = vmul.f32 %v529, %v1181
  %v1183 = vsub.f32 1.0, %v1182
  %v1184 = vmul.f32 %v1181, %v1183
  %v1185 = vadd.f32 %v1181, %v1184
  %vm1186 = vweird.f32 %v529
  %vm1187 = vweird.f32 %v1181
  %vm1188 = vmor %vm1186, %vm1187
  %v1189 = vsel %vm1188, %v1181, %v1185
  %v1190 = vand.u32 2147483647, %v529
  %vm1191 = vcmp.eq.f32.partialorder %v1190, 8.507059e+37
  %v1192 = vand.u32 %v529, 2147483648
  %v1193 = vor.u32 1.1754944e-38, %v1192
  %v1194 = vsel %vm1191, %v1193, %v1189
  %v1195 = vmul.f32 1.0, %v1194
  %v1196 = vrcp.pop %v530
  %v1197 = vmul.f32 %v530, %v1196
  %v1198 = vsub.f32 1.0, %v1197
  %v1199 = vmul.f32 %v1196, %v1198
  %v1200 = vadd.f32 %v1196, %v1199
  %vm1201 = vweird.f32 %v530
  %vm1202 = vweird.f32 %v1196
  %vm1203 = vmor %vm1201, %vm1202
  %v1204 = vsel %vm1203, %v1196, %v1200
  %v1205 = vand.u32 2147483647, %v530
  %vm1206 = vcmp.eq.f32.partialorder %v1205, 8.507059e+37
  %v1207 = vand.u32 %v530, 2147483648
  %v1208 = vor.u32 1.1754944e-38, %v1207
  %v1209 = vsel %vm1206, %v1208, %v1204
  %v1210 = vmul.f32 1.0, %v1209
  %v1211 = vrcp.pop %v531
  %v1212 = vmul.f32 %v531, %v1211
  %v1213 = vsub.f32 1.0, %v1212
  %v1214 = vmul.f32 %v1211, %v1213
  %v1215 = vadd.f32 %v1211, %v1214
  %vm1216 = vweird.f32 %v531
  %vm1217 = vweird.f32 %v1211
  %vm1218 = vmor %vm1216, %vm1217
  %v1219 = vsel %vm1218, %v1211, %v1215
  %v1220 = vand.u32 2147483647, %v531
  %vm1221 = vcmp.eq.f32.partialorder %v1220, 8.507059e+37
  %v1222 = vand.u32 %v531, 2147483648
  %v1223 = vor.u32 1.1754944e-38, %v1222
  %v1224 = vsel %vm1221, %v1223, %v1219
  %v1225 = vmul.f32 1.0, %v1224
  %v1226 = vrcp.pop %v532
  %v1227 = vmul.f32 %v532, %v1226
  %v1228 = vsub.f32 1.0, %v1227
  %v1229 = vmul.f32 %v1226, %v1228
  %v1230 = vadd.f32 %v1226, %v1229
  %vm1231 = vweird.f32 %v532
  %vm1232 = vweird.f32 %v1226
  %vm1233 = vmor %vm1231, %vm1232
  %v1234 = vsel %vm1233, %v1226, %v1230
  %v1235 = vand.u32 2147483647, %v532
  %vm1236 = vcmp.eq.f32.partialorder %v1235, 8.507059e+37
  %v1237 = vand.u32 %v532, 2147483648
  %v1238 = vor.u32 1.1754944e-38, %v1237
  %v1239 = vsel %vm1236, %v1238, %v1234
  %v1240 = vmul.f32 1.0, %v1239
  %v1241 = vrcp.pop %v533
  %v1242 = vmul.f32 %v533, %v1241
  %v1243 = vsub.f32 1.0, %v1242
  %v1244 = vmul.f32 %v1241, %v1243
  %v1245 = vadd.f32 %v1241, %v1244
  %vm1246 = vweird.f32 %v533
  %vm1247 = vweird.f32 %v1241
  %vm1248 = vmor %vm1246, %vm1247
  %v1249 = vsel %vm1248, %v1241, %v1245
  %v1250 = vand.u32 2147483647, %v533
  %vm1251 = vcmp.eq.f32.partialorder %v1250, 8.507059e+37
  %v1252 = vand.u32 %v533, 2147483648
  %v1253 = vor.u32 1.1754944e-38, %v1252
  %v1254 = vsel %vm1251, %v1253, %v1249
  %v1255 = vmul.f32 1.0, %v1254
  %v1256 = vrcp.pop %v534
  %v1257 = vmul.f32 %v534, %v1256
  %v1258 = vsub.f32 1.0, %v1257
  %v1259 = vmul.f32 %v1256, %v1258
  %v1260 = vadd.f32 %v1256, %v1259
  %vm1261 = vweird.f32 %v534
  %vm1262 = vweird.f32 %v1256
  %vm1263 = vmor %vm1261, %vm1262
  %v1264 = vsel %vm1263, %v1256, %v1260
  %v1265 = vand.u32 2147483647, %v534
  %vm1266 = vcmp.eq.f32.partialorder %v1265, 8.507059e+37
  %v1267 = vand.u32 %v534, 2147483648
  %v1268 = vor.u32 1.1754944e-38, %v1267
  %v1269 = vsel %vm1266, %v1268, %v1264
  %v1270 = vmul.f32 1.0, %v1269
  %v1271 = vrcp.pop %v535
  %v1272 = vmul.f32 %v535, %v1271
  %v1273 = vsub.f32 1.0, %v1272
  %v1274 = vmul.f32 %v1271, %v1273
  %v1275 = vadd.f32 %v1271, %v1274
  %vm1276 = vweird.f32 %v535
  %vm1277 = vweird.f32 %v1271
  %vm1278 = vmor %vm1276, %vm1277
  %v1279 = vsel %vm1278, %v1271, %v1275
  %v1280 = vand.u32 2147483647, %v535
  %vm1281 = vcmp.eq.f32.partialorder %v1280, 8.507059e+37
  %v1282 = vand.u32 %v535, 2147483648
  %v1283 = vor.u32 1.1754944e-38, %v1282
  %v1284 = vsel %vm1281, %v1283, %v1279
  %v1285 = vmul.f32 1.0, %v1284
  %v1286 = vrcp.pop %v536
  %v1287 = vmul.f32 %v536, %v1286
  %v1288 = vsub.f32 1.0, %v1287
  %v1289 = vmul.f32 %v1286, %v1288
  %v1290 = vadd.f32 %v1286, %v1289
  %vm1291 = vweird.f32 %v536
  %vm1292 = vweird.f32 %v1286
  %vm1293 = vmor %vm1291, %vm1292
  %v1294 = vsel %vm1293, %v1286, %v1290
  %v1295 = vand.u32 2147483647, %v536
  %vm1296 = vcmp.eq.f32.partialorder %v1295, 8.507059e+37
  %v1297 = vand.u32 %v536, 2147483648
  %v1298 = vor.u32 1.1754944e-38, %v1297
  %v1299 = vsel %vm1296, %v1298, %v1294
  %v1300 = vmul.f32 1.0, %v1299
  %v1301 = vrcp.pop %v537
  %v1302 = vmul.f32 %v537, %v1301
  %v1303 = vsub.f32 1.0, %v1302
  %v1304 = vmul.f32 %v1301, %v1303
  %v1305 = vadd.f32 %v1301, %v1304
  %vm1306 = vweird.f32 %v537
  %vm1307 = vweird.f32 %v1301
  %vm1308 = vmor %vm1306, %vm1307
  %v1309 = vsel %vm1308, %v1301, %v1305
  %v1310 = vand.u32 2147483647, %v537
  %vm1311 = vcmp.eq.f32.partialorder %v1310, 8.507059e+37
  %v1312 = vand.u32 %v537, 2147483648
  %v1313 = vor.u32 1.1754944e-38, %v1312
  %v1314 = vsel %vm1311, %v1313, %v1309
  %v1315 = vmul.f32 1.0, %v1314
  %v1316 = vrcp.pop %v538
  %v1317 = vmul.f32 %v538, %v1316
  %v1318 = vsub.f32 1.0, %v1317
  %v1319 = vmul.f32 %v1316, %v1318
  %v1320 = vadd.f32 %v1316, %v1319
  %vm1321 = vweird.f32 %v538
  %vm1322 = vweird.f32 %v1316
  %vm1323 = vmor %vm1321, %vm1322
  %v1324 = vsel %vm1323, %v1316, %v1320
  %v1325 = vand.u32 2147483647, %v538
  %vm1326 = vcmp.eq.f32.partialorder %v1325, 8.507059e+37
  %v1327 = vand.u32 %v538, 2147483648
  %v1328 = vor.u32 1.1754944e-38, %v1327
  %v1329 = vsel %vm1326, %v1328, %v1324
  %v1330 = vmul.f32 1.0, %v1329
  %v1331 = vrcp.pop %v539
  %v1332 = vmul.f32 %v539, %v1331
  %v1333 = vsub.f32 1.0, %v1332
  %v1334 = vmul.f32 %v1331, %v1333
  %v1335 = vadd.f32 %v1331, %v1334
  %vm1336 = vweird.f32 %v539
  %vm1337 = vweird.f32 %v1331
  %vm1338 = vmor %vm1336, %vm1337
  %v1339 = vsel %vm1338, %v1331, %v1335
  %v1340 = vand.u32 2147483647, %v539
  %vm1341 = vcmp.eq.f32.partialorder %v1340, 8.507059e+37
  %v1342 = vand.u32 %v539, 2147483648
  %v1343 = vor.u32 1.1754944e-38, %v1342
  %v1344 = vsel %vm1341, %v1343, %v1339
  %v1345 = vmul.f32 1.0, %v1344
  %v1346 = vrcp.pop %v540
  %v1347 = vmul.f32 %v540, %v1346
  %v1348 = vsub.f32 1.0, %v1347
  %v1349 = vmul.f32 %v1346, %v1348
  %v1350 = vadd.f32 %v1346, %v1349
  %vm1351 = vweird.f32 %v540
  %vm1352 = vweird.f32 %v1346
  %vm1353 = vmor %vm1351, %vm1352
  %v1354 = vsel %vm1353, %v1346, %v1350
  %v1355 = vand.u32 2147483647, %v540
  %vm1356 = vcmp.eq.f32.partialorder %v1355, 8.507059e+37
  %v1357 = vand.u32 %v540, 2147483648
  %v1358 = vor.u32 1.1754944e-38, %v1357
  %v1359 = vsel %vm1356, %v1358, %v1354
  %v1360 = vmul.f32 1.0, %v1359
  %v1361 = vrcp.pop %v541
  %v1362 = vmul.f32 %v541, %v1361
  %v1363 = vsub.f32 1.0, %v1362
  %v1364 = vmul.f32 %v1361, %v1363
  %v1365 = vadd.f32 %v1361, %v1364
  %vm1366 = vweird.f32 %v541
  %vm1367 = vweird.f32 %v1361
  %vm1368 = vmor %vm1366, %vm1367
  %v1369 = vsel %vm1368, %v1361, %v1365
  %v1370 = vand.u32 2147483647, %v541
  %vm1371 = vcmp.eq.f32.partialorder %v1370, 8.507059e+37
  %v1372 = vand.u32 %v541, 2147483648
  %v1373 = vor.u32 1.1754944e-38, %v1372
  %v1374 = vsel %vm1371, %v1373, %v1369
  %v1375 = vmul.f32 1.0, %v1374
  %v1376 = vrcp.pop %v542
  %v1377 = vmul.f32 %v542, %v1376
  %v1378 = vsub.f32 1.0, %v1377
  %v1379 = vmul.f32 %v1376, %v1378
  %v1380 = vadd.f32 %v1376, %v1379
  %vm1381 = vweird.f32 %v542
  %vm1382 = vweird.f32 %v1376
  %vm1383 = vmor %vm1381, %vm1382
  %v1384 = vsel %vm1383, %v1376, %v1380
  %v1385 = vand.u32 2147483647, %v542
  %vm1386 = vcmp.eq.f32.partialorder %v1385, 8.507059e+37
  %v1387 = vand.u32 %v542, 2147483648
  %v1388 = vor.u32 1.1754944e-38, %v1387
  %v1389 = vsel %vm1386, %v1388, %v1384
  %v1390 = vmul.f32 1.0, %v1389
  %v1391 = vrcp.pop %v543
  %v1392 = vmul.f32 %v543, %v1391
  %v1393 = vsub.f32 1.0, %v1392
  %v1394 = vmul.f32 %v1391, %v1393
  %v1395 = vadd.f32 %v1391, %v1394
  %vm1396 = vweird.f32 %v543
  %vm1397 = vweird.f32 %v1391
  %vm1398 = vmor %vm1396, %vm1397
  %v1399 = vsel %vm1398, %v1391, %v1395
  %v1400 = vand.u32 2147483647, %v543
  %vm1401 = vcmp.eq.f32.partialorder %v1400, 8.507059e+37
  %v1402 = vand.u32 %v543, 2147483648
  %v1403 = vor.u32 1.1754944e-38, %v1402
  %v1404 = vsel %vm1401, %v1403, %v1399
  %v1405 = vmul.f32 1.0, %v1404
  %v1406 = vrcp.pop %v544
  %v1407 = vmul.f32 %v544, %v1406
  %v1408 = vsub.f32 1.0, %v1407
  %v1409 = vmul.f32 %v1406, %v1408
  %v1410 = vadd.f32 %v1406, %v1409
  %vm1411 = vweird.f32 %v544
  %vm1412 = vweird.f32 %v1406
  %vm1413 = vmor %vm1411, %vm1412
  %v1414 = vsel %vm1413, %v1406, %v1410
  %v1415 = vand.u32 2147483647, %v544
  %vm1416 = vcmp.eq.f32.partialorder %v1415, 8.507059e+37
  %v1417 = vand.u32 %v544, 2147483648
  %v1418 = vor.u32 1.1754944e-38, %v1417
  %v1419 = vsel %vm1416, %v1418, %v1414
  %v1420 = vmul.f32 1.0, %v1419
  %v1421 = vrcp.pop %v545
  %v1422 = vmul.f32 %v545, %v1421
  %v1423 = vsub.f32 1.0, %v1422
  %v1424 = vmul.f32 %v1421, %v1423
  %v1425 = vadd.f32 %v1421, %v1424
  %vm1426 = vweird.f32 %v545
  %vm1427 = vweird.f32 %v1421
  %vm1428 = vmor %vm1426, %vm1427
  %v1429 = vsel %vm1428, %v1421, %v1425
  %v1430 = vand.u32 2147483647, %v545
  %vm1431 = vcmp.eq.f32.partialorder %v1430, 8.507059e+37
  %v1432 = vand.u32 %v545, 2147483648
  %v1433 = vor.u32 1.1754944e-38, %v1432
  %v1434 = vsel %vm1431, %v1433, %v1429
  %v1435 = vmul.f32 1.0, %v1434
  %v1436 = vrcp.pop %v546
  %v1437 = vmul.f32 %v546, %v1436
  %v1438 = vsub.f32 1.0, %v1437
  %v1439 = vmul.f32 %v1436, %v1438
  %v1440 = vadd.f32 %v1436, %v1439
  %vm1441 = vweird.f32 %v546
  %vm1442 = vweird.f32 %v1436
  %vm1443 = vmor %vm1441, %vm1442
  %v1444 = vsel %vm1443, %v1436, %v1440
  %v1445 = vand.u32 2147483647, %v546
  %vm1446 = vcmp.eq.f32.partialorder %v1445, 8.507059e+37
  %v1447 = vand.u32 %v546, 2147483648
  %v1448 = vor.u32 1.1754944e-38, %v1447
  %v1449 = vsel %vm1446, %v1448, %v1444
  %v1450 = vmul.f32 1.0, %v1449
  %v1451 = vrcp.pop %v547
  %v1452 = vmul.f32 %v547, %v1451
  %v1453 = vsub.f32 1.0, %v1452
  %v1454 = vmul.f32 %v1451, %v1453
  %v1455 = vadd.f32 %v1451, %v1454
  %vm1456 = vweird.f32 %v547
  %vm1457 = vweird.f32 %v1451
  %vm1458 = vmor %vm1456, %vm1457
  %v1459 = vsel %vm1458, %v1451, %v1455
  %v1460 = vand.u32 2147483647, %v547
  %vm1461 = vcmp.eq.f32.partialorder %v1460, 8.507059e+37
  %v1462 = vand.u32 %v547, 2147483648
  %v1463 = vor.u32 1.1754944e-38, %v1462
  %v1464 = vsel %vm1461, %v1463, %v1459
  %v1465 = vmul.f32 1.0, %v1464
  %v1466 = vrcp.pop %v548
  %v1467 = vmul.f32 %v548, %v1466
  %v1468 = vsub.f32 1.0, %v1467
  %v1469 = vmul.f32 %v1466, %v1468
  %v1470 = vadd.f32 %v1466, %v1469
  %vm1471 = vweird.f32 %v548
  %vm1472 = vweird.f32 %v1466
  %vm1473 = vmor %vm1471, %vm1472
  %v1474 = vsel %vm1473, %v1466, %v1470
  %v1475 = vand.u32 2147483647, %v548
  %vm1476 = vcmp.eq.f32.partialorder %v1475, 8.507059e+37
  %v1477 = vand.u32 %v548, 2147483648
  %v1478 = vor.u32 1.1754944e-38, %v1477
  %v1479 = vsel %vm1476, %v1478, %v1474
  %v1480 = vmul.f32 1.0, %v1479
  %v1481 = vrcp.pop %v549
  %v1482 = vmul.f32 %v549, %v1481
  %v1483 = vsub.f32 1.0, %v1482
  %v1484 = vmul.f32 %v1481, %v1483
  %v1485 = vadd.f32 %v1481, %v1484
  %vm1486 = vweird.f32 %v549
  %vm1487 = vweird.f32 %v1481
  %vm1488 = vmor %vm1486, %vm1487
  %v1489 = vsel %vm1488, %v1481, %v1485
  %v1490 = vand.u32 2147483647, %v549
  %vm1491 = vcmp.eq.f32.partialorder %v1490, 8.507059e+37
  %v1492 = vand.u32 %v549, 2147483648
  %v1493 = vor.u32 1.1754944e-38, %v1492
  %v1494 = vsel %vm1491, %v1493, %v1489
  %v1495 = vmul.f32 1.0, %v1494
  %v1496 = vrcp.pop %v550
  %v1497 = vmul.f32 %v550, %v1496
  %v1498 = vsub.f32 1.0, %v1497
  %v1499 = vmul.f32 %v1496, %v1498
  %v1500 = vadd.f32 %v1496, %v1499
  %vm1501 = vweird.f32 %v550
  %vm1502 = vweird.f32 %v1496
  %vm1503 = vmor %vm1501, %vm1502
  %v1504 = vsel %vm1503, %v1496, %v1500
  %v1505 = vand.u32 2147483647, %v550
  %vm1506 = vcmp.eq.f32.partialorder %v1505, 8.507059e+37
  %v1507 = vand.u32 %v550, 2147483648
  %v1508 = vor.u32 1.1754944e-38, %v1507
  %v1509 = vsel %vm1506, %v1508, %v1504
  %v1510 = vmul.f32 1.0, %v1509
  %v1511 = vrcp.pop %v551
  %v1512 = vmul.f32 %v551, %v1511
  %v1513 = vsub.f32 1.0, %v1512
  %v1514 = vmul.f32 %v1511, %v1513
  %v1515 = vadd.f32 %v1511, %v1514
  %vm1516 = vweird.f32 %v551
  %vm1517 = vweird.f32 %v1511
  %vm1518 = vmor %vm1516, %vm1517
  %v1519 = vsel %vm1518, %v1511, %v1515
  %v1520 = vand.u32 2147483647, %v551
  %vm1521 = vcmp.eq.f32.partialorder %v1520, 8.507059e+37
  %v1522 = vand.u32 %v551, 2147483648
  %v1523 = vor.u32 1.1754944e-38, %v1522
  %v1524 = vsel %vm1521, %v1523, %v1519
  %v1525 = vmul.f32 1.0, %v1524
  %v1526 = vrcp.pop %v552
  %v1527 = vmul.f32 %v552, %v1526
  %v1528 = vsub.f32 1.0, %v1527
  %v1529 = vmul.f32 %v1526, %v1528
  %v1530 = vadd.f32 %v1526, %v1529
  %vm1531 = vweird.f32 %v552
  %vm1532 = vweird.f32 %v1526
  %vm1533 = vmor %vm1531, %vm1532
  %v1534 = vsel %vm1533, %v1526, %v1530
  %v1535 = vand.u32 2147483647, %v552
  %vm1536 = vcmp.eq.f32.partialorder %v1535, 8.507059e+37
  %v1537 = vand.u32 %v552, 2147483648
  %v1538 = vor.u32 1.1754944e-38, %v1537
  %v1539 = vsel %vm1536, %v1538, %v1534
  %v1540 = vmul.f32 1.0, %v1539
  %v1541 = vrcp.pop %v553
  %v1542 = vmul.f32 %v553, %v1541
  %v1543 = vsub.f32 1.0, %v1542
  %v1544 = vmul.f32 %v1541, %v1543
  %v1545 = vadd.f32 %v1541, %v1544
  %vm1546 = vweird.f32 %v553
  %vm1547 = vweird.f32 %v1541
  %vm1548 = vmor %vm1546, %vm1547
  %v1549 = vsel %vm1548, %v1541, %v1545
  %v1550 = vand.u32 2147483647, %v553
  %vm1551 = vcmp.eq.f32.partialorder %v1550, 8.507059e+37
  %v1552 = vand.u32 %v553, 2147483648
  %v1553 = vor.u32 1.1754944e-38, %v1552
  %v1554 = vsel %vm1551, %v1553, %v1549
  %v1555 = vmul.f32 1.0, %v1554
  %v1556 = vrcp.pop %v554
  %v1557 = vmul.f32 %v554, %v1556
  %v1558 = vsub.f32 1.0, %v1557
  %v1559 = vmul.f32 %v1556, %v1558
  %v1560 = vadd.f32 %v1556, %v1559
  %vm1561 = vweird.f32 %v554
  %vm1562 = vweird.f32 %v1556
  %vm1563 = vmor %vm1561, %vm1562
  %v1564 = vsel %vm1563, %v1556, %v1560
  %v1565 = vand.u32 2147483647, %v554
  %vm1566 = vcmp.eq.f32.partialorder %v1565, 8.507059e+37
  %v1567 = vand.u32 %v554, 2147483648
  %v1568 = vor.u32 1.1754944e-38, %v1567
  %v1569 = vsel %vm1566, %v1568, %v1564
  %v1570 = vmul.f32 1.0, %v1569
  %v1571 = vrcp.pop %v555
  %v1572 = vmul.f32 %v555, %v1571
  %v1573 = vsub.f32 1.0, %v1572
  %v1574 = vmul.f32 %v1571, %v1573
  %v1575 = vadd.f32 %v1571, %v1574
  %vm1576 = vweird.f32 %v555
  %vm1577 = vweird.f32 %v1571
  %vm1578 = vmor %vm1576, %vm1577
  %v1579 = vsel %vm1578, %v1571, %v1575
  %v1580 = vand.u32 2147483647, %v555
  %vm1581 = vcmp.eq.f32.partialorder %v1580, 8.507059e+37
  %v1582 = vand.u32 %v555, 2147483648
  %v1583 = vor.u32 1.1754944e-38, %v1582
  %v1584 = vsel %vm1581, %v1583, %v1579
  %v1585 = vmul.f32 1.0, %v1584
  %v1586 = vrcp.pop %v556
  %v1587 = vmul.f32 %v556, %v1586
  %v1588 = vsub.f32 1.0, %v1587
  %v1589 = vmul.f32 %v1586, %v1588
  %v1590 = vadd.f32 %v1586, %v1589
  %vm1591 = vweird.f32 %v556
  %vm1592 = vweird.f32 %v1586
  %vm1593 = vmor %vm1591, %vm1592
  %v1594 = vsel %vm1593, %v1586, %v1590
  %v1595 = vand.u32 2147483647, %v556
  %vm1596 = vcmp.eq.f32.partialorder %v1595, 8.507059e+37
  %v1597 = vand.u32 %v556, 2147483648
  %v1598 = vor.u32 1.1754944e-38, %v1597
  %v1599 = vsel %vm1596, %v1598, %v1594
  %v1600 = vmul.f32 1.0, %v1599
  %v1601 = vrcp.pop %v557
  %v1602 = vmul.f32 %v557, %v1601
  %v1603 = vsub.f32 1.0, %v1602
  %v1604 = vmul.f32 %v1601, %v1603
  %v1605 = vadd.f32 %v1601, %v1604
  %vm1606 = vweird.f32 %v557
  %vm1607 = vweird.f32 %v1601
  %vm1608 = vmor %vm1606, %vm1607
  %v1609 = vsel %vm1608, %v1601, %v1605
  %v1610 = vand.u32 2147483647, %v557
  %vm1611 = vcmp.eq.f32.partialorder %v1610, 8.507059e+37
  %v1612 = vand.u32 %v557, 2147483648
  %v1613 = vor.u32 1.1754944e-38, %v1612
  %v1614 = vsel %vm1611, %v1613, %v1609
  %v1615 = vmul.f32 1.0, %v1614
  %v1616 = vrcp.pop %v558
  %v1617 = vmul.f32 %v558, %v1616
  %v1618 = vsub.f32 1.0, %v1617
  %v1619 = vmul.f32 %v1616, %v1618
  %v1620 = vadd.f32 %v1616, %v1619
  %vm1621 = vweird.f32 %v558
  %vm1622 = vweird.f32 %v1616
  %vm1623 = vmor %vm1621, %vm1622
  %v1624 = vsel %vm1623, %v1616, %v1620
  %v1625 = vand.u32 2147483647, %v558
  %vm1626 = vcmp.eq.f32.partialorder %v1625, 8.507059e+37
  %v1627 = vand.u32 %v558, 2147483648
  %v1628 = vor.u32 1.1754944e-38, %v1627
  %v1629 = vsel %vm1626, %v1628, %v1624
  %v1630 = vmul.f32 1.0, %v1629
  %v1631 = vrcp.pop %v559
  %v1632 = vmul.f32 %v559, %v1631
  %v1633 = vsub.f32 1.0, %v1632
  %v1634 = vmul.f32 %v1631, %v1633
  %v1635 = vadd.f32 %v1631, %v1634
  %vm1636 = vweird.f32 %v559
  %vm1637 = vweird.f32 %v1631
  %vm1638 = vmor %vm1636, %vm1637
  %v1639 = vsel %vm1638, %v1631, %v1635
  %v1640 = vand.u32 2147483647, %v559
  %vm1641 = vcmp.eq.f32.partialorder %v1640, 8.507059e+37
  %v1642 = vand.u32 %v559, 2147483648
  %v1643 = vor.u32 1.1754944e-38, %v1642
  %v1644 = vsel %vm1641, %v1643, %v1639
  %v1645 = vmul.f32 1.0, %v1644
  %v1646 = vrcp.pop %v560
  %v1647 = vmul.f32 %v560, %v1646
  %v1648 = vsub.f32 1.0, %v1647
  %v1649 = vmul.f32 %v1646, %v1648
  %v1650 = vadd.f32 %v1646, %v1649
  %vm1651 = vweird.f32 %v560
  %vm1652 = vweird.f32 %v1646
  %vm1653 = vmor %vm1651, %vm1652
  %v1654 = vsel %vm1653, %v1646, %v1650
  %v1655 = vand.u32 2147483647, %v560
  %vm1656 = vcmp.eq.f32.partialorder %v1655, 8.507059e+37
  %v1657 = vand.u32 %v560, 2147483648
  %v1658 = vor.u32 1.1754944e-38, %v1657
  %v1659 = vsel %vm1656, %v1658, %v1654
  %v1660 = vmul.f32 1.0, %v1659
  %v1661 = vrcp.pop %v561
  %v1662 = vmul.f32 %v561, %v1661
  %v1663 = vsub.f32 1.0, %v1662
  %v1664 = vmul.f32 %v1661, %v1663
  %v1665 = vadd.f32 %v1661, %v1664
  %vm1666 = vweird.f32 %v561
  %vm1667 = vweird.f32 %v1661
  %vm1668 = vmor %vm1666, %vm1667
  %v1669 = vsel %vm1668, %v1661, %v1665
  %v1670 = vand.u32 2147483647, %v561
  %vm1671 = vcmp.eq.f32.partialorder %v1670, 8.507059e+37
  %v1672 = vand.u32 %v561, 2147483648
  %v1673 = vor.u32 1.1754944e-38, %v1672
  %v1674 = vsel %vm1671, %v1673, %v1669
  %v1675 = vmul.f32 1.0, %v1674
  %v1676 = vrcp.pop %v562
  %v1677 = vmul.f32 %v562, %v1676
  %v1678 = vsub.f32 1.0, %v1677
  %v1679 = vmul.f32 %v1676, %v1678
  %v1680 = vadd.f32 %v1676, %v1679
  %vm1681 = vweird.f32 %v562
  %vm1682 = vweird.f32 %v1676
  %vm1683 = vmor %vm1681, %vm1682
  %v1684 = vsel %vm1683, %v1676, %v1680
  %v1685 = vand.u32 2147483647, %v562
  %vm1686 = vcmp.eq.f32.partialorder %v1685, 8.507059e+37
  %v1687 = vand.u32 %v562, 2147483648
  %v1688 = vor.u32 1.1754944e-38, %v1687
  %v1689 = vsel %vm1686, %v1688, %v1684
  %v1690 = vmul.f32 1.0, %v1689
  %v1691 = vrcp.pop %v563
  %v1692 = vmul.f32 %v563, %v1691
  %v1693 = vsub.f32 1.0, %v1692
  %v1694 = vmul.f32 %v1691, %v1693
  %v1695 = vadd.f32 %v1691, %v1694
  %vm1696 = vweird.f32 %v563
  %vm1697 = vweird.f32 %v1691
  %vm1698 = vmor %vm1696, %vm1697
  %v1699 = vsel %vm1698, %v1691, %v1695
  %v1700 = vand.u32 2147483647, %v563
  %vm1701 = vcmp.eq.f32.partialorder %v1700, 8.507059e+37
  %v1702 = vand.u32 %v563, 2147483648
  %v1703 = vor.u32 1.1754944e-38, %v1702
  %v1704 = vsel %vm1701, %v1703, %v1699
  %v1705 = vmul.f32 1.0, %v1704
  %v1706 = vrcp.pop %v564
  %v1707 = vmul.f32 %v564, %v1706
  %v1708 = vsub.f32 1.0, %v1707
  %v1709 = vmul.f32 %v1706, %v1708
  %v1710 = vadd.f32 %v1706, %v1709
  %vm1711 = vweird.f32 %v564
  %vm1712 = vweird.f32 %v1706
  %vm1713 = vmor %vm1711, %vm1712
  %v1714 = vsel %vm1713, %v1706, %v1710
  %v1715 = vand.u32 2147483647, %v564
  %vm1716 = vcmp.eq.f32.partialorder %v1715, 8.507059e+37
  %v1717 = vand.u32 %v564, 2147483648
  %v1718 = vor.u32 1.1754944e-38, %v1717
  %v1719 = vsel %vm1716, %v1718, %v1714
  %v1720 = vmul.f32 1.0, %v1719
  %v1721 = vrcp.pop %v565
  %v1722 = vmul.f32 %v565, %v1721
  %v1723 = vsub.f32 1.0, %v1722
  %v1724 = vmul.f32 %v1721, %v1723
  %v1725 = vadd.f32 %v1721, %v1724
  %vm1726 = vweird.f32 %v565
  %vm1727 = vweird.f32 %v1721
  %vm1728 = vmor %vm1726, %vm1727
  %v1729 = vsel %vm1728, %v1721, %v1725
  %v1730 = vand.u32 2147483647, %v565
  %vm1731 = vcmp.eq.f32.partialorder %v1730, 8.507059e+37
  %v1732 = vand.u32 %v565, 2147483648
  %v1733 = vor.u32 1.1754944e-38, %v1732
  %v1734 = vsel %vm1731, %v1733, %v1729
  %v1735 = vmul.f32 1.0, %v1734
  %v1736 = vrcp.pop %v566
  %v1737 = vmul.f32 %v566, %v1736
  %v1738 = vsub.f32 1.0, %v1737
  %v1739 = vmul.f32 %v1736, %v1738
  %v1740 = vadd.f32 %v1736, %v1739
  %vm1741 = vweird.f32 %v566
  %vm1742 = vweird.f32 %v1736
  %vm1743 = vmor %vm1741, %vm1742
  %v1744 = vsel %vm1743, %v1736, %v1740
  %v1745 = vand.u32 2147483647, %v566
  %vm1746 = vcmp.eq.f32.partialorder %v1745, 8.507059e+37
  %v1747 = vand.u32 %v566, 2147483648
  %v1748 = vor.u32 1.1754944e-38, %v1747
  %v1749 = vsel %vm1746, %v1748, %v1744
  %v1750 = vmul.f32 1.0, %v1749
  %v1751 = vrcp.pop %v567
  %v1752 = vmul.f32 %v567, %v1751
  %v1753 = vsub.f32 1.0, %v1752
  %v1754 = vmul.f32 %v1751, %v1753
  %v1755 = vadd.f32 %v1751, %v1754
  %vm1756 = vweird.f32 %v567
  %vm1757 = vweird.f32 %v1751
  %vm1758 = vmor %vm1756, %vm1757
  %v1759 = vsel %vm1758, %v1751, %v1755
  %v1760 = vand.u32 2147483647, %v567
  %vm1761 = vcmp.eq.f32.partialorder %v1760, 8.507059e+37
  %v1762 = vand.u32 %v567, 2147483648
  %v1763 = vor.u32 1.1754944e-38, %v1762
  %v1764 = vsel %vm1761, %v1763, %v1759
  %v1765 = vmul.f32 1.0, %v1764
  %v1766 = vrcp.pop %v568
  %v1767 = vmul.f32 %v568, %v1766
  %v1768 = vsub.f32 1.0, %v1767
  %v1769 = vmul.f32 %v1766, %v1768
  %v1770 = vadd.f32 %v1766, %v1769
  %vm1771 = vweird.f32 %v568
  %vm1772 = vweird.f32 %v1766
  %vm1773 = vmor %vm1771, %vm1772
  %v1774 = vsel %vm1773, %v1766, %v1770
  %v1775 = vand.u32 2147483647, %v568
  %vm1776 = vcmp.eq.f32.partialorder %v1775, 8.507059e+37
  %v1777 = vand.u32 %v568, 2147483648
  %v1778 = vor.u32 1.1754944e-38, %v1777
  %v1779 = vsel %vm1776, %v1778, %v1774
  %v1780 = vmul.f32 1.0, %v1779
  %v1781 = vrcp.pop %v569
  %v1782 = vmul.f32 %v569, %v1781
  %v1783 = vsub.f32 1.0, %v1782
  %v1784 = vmul.f32 %v1781, %v1783
  %v1785 = vadd.f32 %v1781, %v1784
  %vm1786 = vweird.f32 %v569
  %vm1787 = vweird.f32 %v1781
  %vm1788 = vmor %vm1786, %vm1787
  %v1789 = vsel %vm1788, %v1781, %v1785
  %v1790 = vand.u32 2147483647, %v569
  %vm1791 = vcmp.eq.f32.partialorder %v1790, 8.507059e+37
  %v1792 = vand.u32 %v569, 2147483648
  %v1793 = vor.u32 1.1754944e-38, %v1792
  %v1794 = vsel %vm1791, %v1793, %v1789
  %v1795 = vmul.f32 1.0, %v1794
  %v1796 = vrcp.pop %v570
  %v1797 = vmul.f32 %v570, %v1796
  %v1798 = vsub.f32 1.0, %v1797
  %v1799 = vmul.f32 %v1796, %v1798
  %v1800 = vadd.f32 %v1796, %v1799
  %vm1801 = vweird.f32 %v570
  %vm1802 = vweird.f32 %v1796
  %vm1803 = vmor %vm1801, %vm1802
  %v1804 = vsel %vm1803, %v1796, %v1800
  %v1805 = vand.u32 2147483647, %v570
  %vm1806 = vcmp.eq.f32.partialorder %v1805, 8.507059e+37
  %v1807 = vand.u32 %v570, 2147483648
  %v1808 = vor.u32 1.1754944e-38, %v1807
  %v1809 = vsel %vm1806, %v1808, %v1804
  %v1810 = vmul.f32 1.0, %v1809
  %v1811 = vrcp.pop %v571
  %v1812 = vmul.f32 %v571, %v1811
  %v1813 = vsub.f32 1.0, %v1812
  %v1814 = vmul.f32 %v1811, %v1813
  %v1815 = vadd.f32 %v1811, %v1814
  %vm1816 = vweird.f32 %v571
  %vm1817 = vweird.f32 %v1811
  %vm1818 = vmor %vm1816, %vm1817
  %v1819 = vsel %vm1818, %v1811, %v1815
  %v1820 = vand.u32 2147483647, %v571
  %vm1821 = vcmp.eq.f32.partialorder %v1820, 8.507059e+37
  %v1822 = vand.u32 %v571, 2147483648
  %v1823 = vor.u32 1.1754944e-38, %v1822
  %v1824 = vsel %vm1821, %v1823, %v1819
  %v1825 = vmul.f32 1.0, %v1824
  %v1826 = vrcp.pop %v572
  %v1827 = vmul.f32 %v572, %v1826
  %v1828 = vsub.f32 1.0, %v1827
  %v1829 = vmul.f32 %v1826, %v1828
  %v1830 = vadd.f32 %v1826, %v1829
  %vm1831 = vweird.f32 %v572
  %vm1832 = vweird.f32 %v1826
  %vm1833 = vmor %vm1831, %vm1832
  %v1834 = vsel %vm1833, %v1826, %v1830
  %v1835 = vand.u32 2147483647, %v572
  %vm1836 = vcmp.eq.f32.partialorder %v1835, 8.507059e+37
  %v1837 = vand.u32 %v572, 2147483648
  %v1838 = vor.u32 1.1754944e-38, %v1837
  %v1839 = vsel %vm1836, %v1838, %v1834
  %v1840 = vmul.f32 1.0, %v1839
  %v1841 = vrcp.pop %v573
  %v1842 = vmul.f32 %v573, %v1841
  %v1843 = vsub.f32 1.0, %v1842
  %v1844 = vmul.f32 %v1841, %v1843
  %v1845 = vadd.f32 %v1841, %v1844
  %vm1846 = vweird.f32 %v573
  %vm1847 = vweird.f32 %v1841
  %vm1848 = vmor %vm1846, %vm1847
  %v1849 = vsel %vm1848, %v1841, %v1845
  %v1850 = vand.u32 2147483647, %v573
  %vm1851 = vcmp.eq.f32.partialorder %v1850, 8.507059e+37
  %v1852 = vand.u32 %v573, 2147483648
  %v1853 = vor.u32 1.1754944e-38, %v1852
  %v1854 = vsel %vm1851, %v1853, %v1849
  %v1855 = vmul.f32 1.0, %v1854
  %v1856 = vrcp.pop %v574
  %v1857 = vmul.f32 %v574, %v1856
  %v1858 = vsub.f32 1.0, %v1857
  %v1859 = vmul.f32 %v1856, %v1858
  %v1860 = vadd.f32 %v1856, %v1859
  %vm1861 = vweird.f32 %v574
  %vm1862 = vweird.f32 %v1856
  %vm1863 = vmor %vm1861, %vm1862
  %v1864 = vsel %vm1863, %v1856, %v1860
  %v1865 = vand.u32 2147483647, %v574
  %vm1866 = vcmp.eq.f32.partialorder %v1865, 8.507059e+37
  %v1867 = vand.u32 %v574, 2147483648
  %v1868 = vor.u32 1.1754944e-38, %v1867
  %v1869 = vsel %vm1866, %v1868, %v1864
  %v1870 = vmul.f32 1.0, %v1869
  %v1871 = vrcp.pop %v575
  %v1872 = vmul.f32 %v575, %v1871
  %v1873 = vsub.f32 1.0, %v1872
  %v1874 = vmul.f32 %v1871, %v1873
  %v1875 = vadd.f32 %v1871, %v1874
  %vm1876 = vweird.f32 %v575
  %vm1877 = vweird.f32 %v1871
  %vm1878 = vmor %vm1876, %vm1877
  %v1879 = vsel %vm1878, %v1871, %v1875
  %v1880 = vand.u32 2147483647, %v575
  %vm1881 = vcmp.eq.f32.partialorder %v1880, 8.507059e+37
  %v1882 = vand.u32 %v575, 2147483648
  %v1883 = vor.u32 1.1754944e-38, %v1882
  %v1884 = vsel %vm1881, %v1883, %v1879
  %v1885 = vmul.f32 1.0, %v1884
  %v1886 = vrcp.pop %v576
  %v1887 = vmul.f32 %v576, %v1886
  %v1888 = vsub.f32 1.0, %v1887
  %v1889 = vmul.f32 %v1886, %v1888
  %v1890 = vadd.f32 %v1886, %v1889
  %vm1891 = vweird.f32 %v576
  %vm1892 = vweird.f32 %v1886
  %vm1893 = vmor %vm1891, %vm1892
  %v1894 = vsel %vm1893, %v1886, %v1890
  %v1895 = vand.u32 2147483647, %v576
  %vm1896 = vcmp.eq.f32.partialorder %v1895, 8.507059e+37
  %v1897 = vand.u32 %v576, 2147483648
  %v1898 = vor.u32 1.1754944e-38, %v1897
  %v1899 = vsel %vm1896, %v1898, %v1894
  %v1900 = vmul.f32 1.0, %v1899
  %v1901 = vrcp.pop %v577
  %v1902 = vmul.f32 %v577, %v1901
  %v1903 = vsub.f32 1.0, %v1902
  %v1904 = vmul.f32 %v1901, %v1903
  %v1905 = vadd.f32 %v1901, %v1904
  %vm1906 = vweird.f32 %v577
  %vm1907 = vweird.f32 %v1901
  %vm1908 = vmor %vm1906, %vm1907
  %v1909 = vsel %vm1908, %v1901, %v1905
  %v1910 = vand.u32 2147483647, %v577
  %vm1911 = vcmp.eq.f32.partialorder %v1910, 8.507059e+37
  %v1912 = vand.u32 %v577, 2147483648
  %v1913 = vor.u32 1.1754944e-38, %v1912
  %v1914 = vsel %vm1911, %v1913, %v1909
  %v1915 = vmul.f32 1.0, %v1914
  %v1916 = vrcp.pop %v578
  %v1917 = vmul.f32 %v578, %v1916
  %v1918 = vsub.f32 1.0, %v1917
  %v1919 = vmul.f32 %v1916, %v1918
  %v1920 = vadd.f32 %v1916, %v1919
  %vm1921 = vweird.f32 %v578
  %vm1922 = vweird.f32 %v1916
  %vm1923 = vmor %vm1921, %vm1922
  %v1924 = vsel %vm1923, %v1916, %v1920
  %v1925 = vand.u32 2147483647, %v578
  %vm1926 = vcmp.eq.f32.partialorder %v1925, 8.507059e+37
  %v1927 = vand.u32 %v578, 2147483648
  %v1928 = vor.u32 1.1754944e-38, %v1927
  %v1929 = vsel %vm1926, %v1928, %v1924
  %v1930 = vmul.f32 1.0, %v1929
  %v1931 = vrcp.pop %v579
  %v1932 = vmul.f32 %v579, %v1931
  %v1933 = vsub.f32 1.0, %v1932
  %v1934 = vmul.f32 %v1931, %v1933
  %v1935 = vadd.f32 %v1931, %v1934
  %vm1936 = vweird.f32 %v579
  %vm1937 = vweird.f32 %v1931
  %vm1938 = vmor %vm1936, %vm1937
  %v1939 = vsel %vm1938, %v1931, %v1935
  %v1940 = vand.u32 2147483647, %v579
  %vm1941 = vcmp.eq.f32.partialorder %v1940, 8.507059e+37
  %v1942 = vand.u32 %v579, 2147483648
  %v1943 = vor.u32 1.1754944e-38, %v1942
  %v1944 = vsel %vm1941, %v1943, %v1939
  %v1945 = vmul.f32 1.0, %v1944
  %v1946 = vrcp.pop %v580
  %v1947 = vmul.f32 %v580, %v1946
  %v1948 = vsub.f32 1.0, %v1947
  %v1949 = vmul.f32 %v1946, %v1948
  %v1950 = vadd.f32 %v1946, %v1949
  %vm1951 = vweird.f32 %v580
  %vm1952 = vweird.f32 %v1946
  %vm1953 = vmor %vm1951, %vm1952
  %v1954 = vsel %vm1953, %v1946, %v1950
  %v1955 = vand.u32 2147483647, %v580
  %vm1956 = vcmp.eq.f32.partialorder %v1955, 8.507059e+37
  %v1957 = vand.u32 %v580, 2147483648
  %v1958 = vor.u32 1.1754944e-38, %v1957
  %v1959 = vsel %vm1956, %v1958, %v1954
  %v1960 = vmul.f32 1.0, %v1959
  %v1961 = vrcp.pop %v581
  %v1962 = vmul.f32 %v581, %v1961
  %v1963 = vsub.f32 1.0, %v1962
  %v1964 = vmul.f32 %v1961, %v1963
  %v1965 = vadd.f32 %v1961, %v1964
  %vm1966 = vweird.f32 %v581
  %vm1967 = vweird.f32 %v1961
  %vm1968 = vmor %vm1966, %vm1967
  %v1969 = vsel %vm1968, %v1961, %v1965
  %v1970 = vand.u32 2147483647, %v581
  %vm1971 = vcmp.eq.f32.partialorder %v1970, 8.507059e+37
  %v1972 = vand.u32 %v581, 2147483648
  %v1973 = vor.u32 1.1754944e-38, %v1972
  %v1974 = vsel %vm1971, %v1973, %v1969
  %v1975 = vmul.f32 1.0, %v1974
  %v1976 = vrcp.pop %v582
  %v1977 = vmul.f32 %v582, %v1976
  %v1978 = vsub.f32 1.0, %v1977
  %v1979 = vmul.f32 %v1976, %v1978
  %v1980 = vadd.f32 %v1976, %v1979
  %vm1981 = vweird.f32 %v582
  %vm1982 = vweird.f32 %v1976
  %vm1983 = vmor %vm1981, %vm1982
  %v1984 = vsel %vm1983, %v1976, %v1980
  %v1985 = vand.u32 2147483647, %v582
  %vm1986 = vcmp.eq.f32.partialorder %v1985, 8.507059e+37
  %v1987 = vand.u32 %v582, 2147483648
  %v1988 = vor.u32 1.1754944e-38, %v1987
  %v1989 = vsel %vm1986, %v1988, %v1984
  %v1990 = vmul.f32 1.0, %v1989
  %v1991 = vrcp.pop %v583
  %v1992 = vmul.f32 %v583, %v1991
  %v1993 = vsub.f32 1.0, %v1992
  %v1994 = vmul.f32 %v1991, %v1993
  %v1995 = vadd.f32 %v1991, %v1994
  %vm1996 = vweird.f32 %v583
  %vm1997 = vweird.f32 %v1991
  %vm1998 = vmor %vm1996, %vm1997
  %v1999 = vsel %vm1998, %v1991, %v1995
  %v2000 = vand.u32 2147483647, %v583
  %vm2001 = vcmp.eq.f32.partialorder %v2000, 8.507059e+37
  %v2002 = vand.u32 %v583, 2147483648
  %v2003 = vor.u32 1.1754944e-38, %v2002
  %v2004 = vsel %vm2001, %v2003, %v1999
  %v2005 = vmul.f32 1.0, %v2004
  %v2006 = vrcp.pop %v584
  %v2007 = vmul.f32 %v584, %v2006
  %v2008 = vsub.f32 1.0, %v2007
  %v2009 = vmul.f32 %v2006, %v2008
  %v2010 = vadd.f32 %v2006, %v2009
  %vm2011 = vweird.f32 %v584
  %vm2012 = vweird.f32 %v2006
  %vm2013 = vmor %vm2011, %vm2012
  %v2014 = vsel %vm2013, %v2006, %v2010
  %v2015 = vand.u32 2147483647, %v584
  %vm2016 = vcmp.eq.f32.partialorder %v2015, 8.507059e+37
  %v2017 = vand.u32 %v584, 2147483648
  %v2018 = vor.u32 1.1754944e-38, %v2017
  %v2019 = vsel %vm2016, %v2018, %v2014
  %v2020 = vmul.f32 1.0, %v2019
  %v2021 = vrcp.pop %v585
  %v2022 = vmul.f32 %v585, %v2021
  %v2023 = vsub.f32 1.0, %v2022
  %v2024 = vmul.f32 %v2021, %v2023
  %v2025 = vadd.f32 %v2021, %v2024
  %vm2026 = vweird.f32 %v585
  %vm2027 = vweird.f32 %v2021
  %vm2028 = vmor %vm2026, %vm2027
  %v2029 = vsel %vm2028, %v2021, %v2025
  %v2030 = vand.u32 2147483647, %v585
  %vm2031 = vcmp.eq.f32.partialorder %v2030, 8.507059e+37
  %v2032 = vand.u32 %v585, 2147483648
  %v2033 = vor.u32 1.1754944e-38, %v2032
  %v2034 = vsel %vm2031, %v2033, %v2029
  %v2035 = vmul.f32 1.0, %v2034
  %v2036 = vrcp.pop %v586
  %v2037 = vmul.f32 %v586, %v2036
  %v2038 = vsub.f32 1.0, %v2037
  %v2039 = vmul.f32 %v2036, %v2038
  %v2040 = vadd.f32 %v2036, %v2039
  %vm2041 = vweird.f32 %v586
  %vm2042 = vweird.f32 %v2036
  %vm2043 = vmor %vm2041, %vm2042
  %v2044 = vsel %vm2043, %v2036, %v2040
  %v2045 = vand.u32 2147483647, %v586
  %vm2046 = vcmp.eq.f32.partialorder %v2045, 8.507059e+37
  %v2047 = vand.u32 %v586, 2147483648
  %v2048 = vor.u32 1.1754944e-38, %v2047
  %v2049 = vsel %vm2046, %v2048, %v2044
  %v2050 = vmul.f32 1.0, %v2049
  %v2051 = vrcp.pop %v587
  %v2052 = vmul.f32 %v587, %v2051
  %v2053 = vsub.f32 1.0, %v2052
  %v2054 = vmul.f32 %v2051, %v2053
  %v2055 = vadd.f32 %v2051, %v2054
  %vm2056 = vweird.f32 %v587
  %vm2057 = vweird.f32 %v2051
  %vm2058 = vmor %vm2056, %vm2057
  %v2059 = vsel %vm2058, %v2051, %v2055
  %v2060 = vand.u32 2147483647, %v587
  %vm2061 = vcmp.eq.f32.partialorder %v2060, 8.507059e+37
  %v2062 = vand.u32 %v587, 2147483648
  %v2063 = vor.u32 1.1754944e-38, %v2062
  %v2064 = vsel %vm2061, %v2063, %v2059
  %v2065 = vmul.f32 1.0, %v2064
  %v2066 = vrcp.pop %v588
  %v2067 = vmul.f32 %v588, %v2066
  %v2068 = vsub.f32 1.0, %v2067
  %v2069 = vmul.f32 %v2066, %v2068
  %v2070 = vadd.f32 %v2066, %v2069
  %vm2071 = vweird.f32 %v588
  %vm2072 = vweird.f32 %v2066
  %vm2073 = vmor %vm2071, %vm2072
  %v2074 = vsel %vm2073, %v2066, %v2070
  %v2075 = vand.u32 2147483647, %v588
  %vm2076 = vcmp.eq.f32.partialorder %v2075, 8.507059e+37
  %v2077 = vand.u32 %v588, 2147483648
  %v2078 = vor.u32 1.1754944e-38, %v2077
  %v2079 = vsel %vm2076, %v2078, %v2074
  %v2080 = vmul.f32 1.0, %v2079
  %v2081 = vrcp.pop %v589
  %v2082 = vmul.f32 %v589, %v2081
  %v2083 = vsub.f32 1.0, %v2082
  %v2084 = vmul.f32 %v2081, %v2083
  %v2085 = vadd.f32 %v2081, %v2084
  %vm2086 = vweird.f32 %v589
  %vm2087 = vweird.f32 %v2081
  %vm2088 = vmor %vm2086, %vm2087
  %v2089 = vsel %vm2088, %v2081, %v2085
  %v2090 = vand.u32 2147483647, %v589
  %vm2091 = vcmp.eq.f32.partialorder %v2090, 8.507059e+37
  %v2092 = vand.u32 %v589, 2147483648
  %v2093 = vor.u32 1.1754944e-38, %v2092
  %v2094 = vsel %vm2091, %v2093, %v2089
  %v2095 = vmul.f32 1.0, %v2094
  %v2096 = vrcp.pop %v590
  %v2097 = vmul.f32 %v590, %v2096
  %v2098 = vsub.f32 1.0, %v2097
  %v2099 = vmul.f32 %v2096, %v2098
  %v2100 = vadd.f32 %v2096, %v2099
  %vm2101 = vweird.f32 %v590
  %vm2102 = vweird.f32 %v2096
  %vm2103 = vmor %vm2101, %vm2102
  %v2104 = vsel %vm2103, %v2096, %v2100
  %v2105 = vand.u32 2147483647, %v590
  %vm2106 = vcmp.eq.f32.partialorder %v2105, 8.507059e+37
  %v2107 = vand.u32 %v590, 2147483648
  %v2108 = vor.u32 1.1754944e-38, %v2107
  %v2109 = vsel %vm2106, %v2108, %v2104
  %v2110 = vmul.f32 1.0, %v2109
  %v2111 = vrcp.pop %v591
  %v2112 = vmul.f32 %v591, %v2111
  %v2113 = vsub.f32 1.0, %v2112
  %v2114 = vmul.f32 %v2111, %v2113
  %v2115 = vadd.f32 %v2111, %v2114
  %vm2116 = vweird.f32 %v591
  %vm2117 = vweird.f32 %v2111
  %vm2118 = vmor %vm2116, %vm2117
  %v2119 = vsel %vm2118, %v2111, %v2115
  %v2120 = vand.u32 2147483647, %v591
  %vm2121 = vcmp.eq.f32.partialorder %v2120, 8.507059e+37
  %v2122 = vand.u32 %v591, 2147483648
  %v2123 = vor.u32 1.1754944e-38, %v2122
  %v2124 = vsel %vm2121, %v2123, %v2119
  %v2125 = vmul.f32 1.0, %v2124
  %v2126 = vrcp.pop %v592
  %v2127 = vmul.f32 %v592, %v2126
  %v2128 = vsub.f32 1.0, %v2127
  %v2129 = vmul.f32 %v2126, %v2128
  %v2130 = vadd.f32 %v2126, %v2129
  %vm2131 = vweird.f32 %v592
  %vm2132 = vweird.f32 %v2126
  %vm2133 = vmor %vm2131, %vm2132
  %v2134 = vsel %vm2133, %v2126, %v2130
  %v2135 = vand.u32 2147483647, %v592
  %vm2136 = vcmp.eq.f32.partialorder %v2135, 8.507059e+37
  %v2137 = vand.u32 %v592, 2147483648
  %v2138 = vor.u32 1.1754944e-38, %v2137
  %v2139 = vsel %vm2136, %v2138, %v2134
  %v2140 = vmul.f32 1.0, %v2139
  %v2141 = vrcp.pop %v593
  %v2142 = vmul.f32 %v593, %v2141
  %v2143 = vsub.f32 1.0, %v2142
  %v2144 = vmul.f32 %v2141, %v2143
  %v2145 = vadd.f32 %v2141, %v2144
  %vm2146 = vweird.f32 %v593
  %vm2147 = vweird.f32 %v2141
  %vm2148 = vmor %vm2146, %vm2147
  %v2149 = vsel %vm2148, %v2141, %v2145
  %v2150 = vand.u32 2147483647, %v593
  %vm2151 = vcmp.eq.f32.partialorder %v2150, 8.507059e+37
  %v2152 = vand.u32 %v593, 2147483648
  %v2153 = vor.u32 1.1754944e-38, %v2152
  %v2154 = vsel %vm2151, %v2153, %v2149
  %v2155 = vmul.f32 1.0, %v2154
  %v2156 = vrcp.pop %v594
  %v2157 = vmul.f32 %v594, %v2156
  %v2158 = vsub.f32 1.0, %v2157
  %v2159 = vmul.f32 %v2156, %v2158
  %v2160 = vadd.f32 %v2156, %v2159
  %vm2161 = vweird.f32 %v594
  %vm2162 = vweird.f32 %v2156
  %vm2163 = vmor %vm2161, %vm2162
  %v2164 = vsel %vm2163, %v2156, %v2160
  %v2165 = vand.u32 2147483647, %v594
  %vm2166 = vcmp.eq.f32.partialorder %v2165, 8.507059e+37
  %v2167 = vand.u32 %v594, 2147483648
  %v2168 = vor.u32 1.1754944e-38, %v2167
  %v2169 = vsel %vm2166, %v2168, %v2164
  %v2170 = vmul.f32 1.0, %v2169
  %v2171 = vrcp.pop %v595
  %v2172 = vmul.f32 %v595, %v2171
  %v2173 = vsub.f32 1.0, %v2172
  %v2174 = vmul.f32 %v2171, %v2173
  %v2175 = vadd.f32 %v2171, %v2174
  %vm2176 = vweird.f32 %v595
  %vm2177 = vweird.f32 %v2171
  %vm2178 = vmor %vm2176, %vm2177
  %v2179 = vsel %vm2178, %v2171, %v2175
  %v2180 = vand.u32 2147483647, %v595
  %vm2181 = vcmp.eq.f32.partialorder %v2180, 8.507059e+37
  %v2182 = vand.u32 %v595, 2147483648
  %v2183 = vor.u32 1.1754944e-38, %v2182
  %v2184 = vsel %vm2181, %v2183, %v2179
  %v2185 = vmul.f32 1.0, %v2184
  %v2186 = vrcp.pop %v596
  %v2187 = vmul.f32 %v596, %v2186
  %v2188 = vsub.f32 1.0, %v2187
  %v2189 = vmul.f32 %v2186, %v2188
  %v2190 = vadd.f32 %v2186, %v2189
  %vm2191 = vweird.f32 %v596
  %vm2192 = vweird.f32 %v2186
  %vm2193 = vmor %vm2191, %vm2192
  %v2194 = vsel %vm2193, %v2186, %v2190
  %v2195 = vand.u32 2147483647, %v596
  %vm2196 = vcmp.eq.f32.partialorder %v2195, 8.507059e+37
  %v2197 = vand.u32 %v596, 2147483648
  %v2198 = vor.u32 1.1754944e-38, %v2197
  %v2199 = vsel %vm2196, %v2198, %v2194
  %v2200 = vmul.f32 1.0, %v2199
  %v2201 = vrcp.pop %v597
  %v2202 = vmul.f32 %v597, %v2201
  %v2203 = vsub.f32 1.0, %v2202
  %v2204 = vmul.f32 %v2201, %v2203
  %v2205 = vadd.f32 %v2201, %v2204
  %vm2206 = vweird.f32 %v597
  %vm2207 = vweird.f32 %v2201
  %vm2208 = vmor %vm2206, %vm2207
  %v2209 = vsel %vm2208, %v2201, %v2205
  %v2210 = vand.u32 2147483647, %v597
  %vm2211 = vcmp.eq.f32.partialorder %v2210, 8.507059e+37
  %v2212 = vand.u32 %v597, 2147483648
  %v2213 = vor.u32 1.1754944e-38, %v2212
  %v2214 = vsel %vm2211, %v2213, %v2209
  %v2215 = vmul.f32 1.0, %v2214
  %v2216 = vrcp.pop %v598
  %v2217 = vmul.f32 %v598, %v2216
  %v2218 = vsub.f32 1.0, %v2217
  %v2219 = vmul.f32 %v2216, %v2218
  %v2220 = vadd.f32 %v2216, %v2219
  %vm2221 = vweird.f32 %v598
  %vm2222 = vweird.f32 %v2216
  %vm2223 = vmor %vm2221, %vm2222
  %v2224 = vsel %vm2223, %v2216, %v2220
  %v2225 = vand.u32 2147483647, %v598
  %vm2226 = vcmp.eq.f32.partialorder %v2225, 8.507059e+37
  %v2227 = vand.u32 %v598, 2147483648
  %v2228 = vor.u32 1.1754944e-38, %v2227
  %v2229 = vsel %vm2226, %v2228, %v2224
  %v2230 = vmul.f32 1.0, %v2229
  %v2231 = vrcp.pop %v599
  %v2232 = vmul.f32 %v599, %v2231
  %v2233 = vsub.f32 1.0, %v2232
  %v2234 = vmul.f32 %v2231, %v2233
  %v2235 = vadd.f32 %v2231, %v2234
  %vm2236 = vweird.f32 %v599
  %vm2237 = vweird.f32 %v2231
  %vm2238 = vmor %vm2236, %vm2237
  %v2239 = vsel %vm2238, %v2231, %v2235
  %v2240 = vand.u32 2147483647, %v599
  %vm2241 = vcmp.eq.f32.partialorder %v2240, 8.507059e+37
  %v2242 = vand.u32 %v599, 2147483648
  %v2243 = vor.u32 1.1754944e-38, %v2242
  %v2244 = vsel %vm2241, %v2243, %v2239
  %v2245 = vmul.f32 1.0, %v2244
  %v2246 = vrcp.pop %v600
  %v2247 = vmul.f32 %v600, %v2246
  %v2248 = vsub.f32 1.0, %v2247
  %v2249 = vmul.f32 %v2246, %v2248
  %v2250 = vadd.f32 %v2246, %v2249
  %vm2251 = vweird.f32 %v600
  %vm2252 = vweird.f32 %v2246
  %vm2253 = vmor %vm2251, %vm2252
  %v2254 = vsel %vm2253, %v2246, %v2250
  %v2255 = vand.u32 2147483647, %v600
  %vm2256 = vcmp.eq.f32.partialorder %v2255, 8.507059e+37
  %v2257 = vand.u32 %v600, 2147483648
  %v2258 = vor.u32 1.1754944e-38, %v2257
  %v2259 = vsel %vm2256, %v2258, %v2254
  %v2260 = vmul.f32 1.0, %v2259
  %v2261 = vrcp.pop %v601
  %v2262 = vmul.f32 %v601, %v2261
  %v2263 = vsub.f32 1.0, %v2262
  %v2264 = vmul.f32 %v2261, %v2263
  %v2265 = vadd.f32 %v2261, %v2264
  %vm2266 = vweird.f32 %v601
  %vm2267 = vweird.f32 %v2261
  %vm2268 = vmor %vm2266, %vm2267
  %v2269 = vsel %vm2268, %v2261, %v2265
  %v2270 = vand.u32 2147483647, %v601
  %vm2271 = vcmp.eq.f32.partialorder %v2270, 8.507059e+37
  %v2272 = vand.u32 %v601, 2147483648
  %v2273 = vor.u32 1.1754944e-38, %v2272
  %v2274 = vsel %vm2271, %v2273, %v2269
  %v2275 = vmul.f32 1.0, %v2274
  %v2276 = vrcp.pop %v602
  %v2277 = vmul.f32 %v602, %v2276
  %v2278 = vsub.f32 1.0, %v2277
  %v2279 = vmul.f32 %v2276, %v2278
  %v2280 = vadd.f32 %v2276, %v2279
  %vm2281 = vweird.f32 %v602
  %vm2282 = vweird.f32 %v2276
  %vm2283 = vmor %vm2281, %vm2282
  %v2284 = vsel %vm2283, %v2276, %v2280
  %v2285 = vand.u32 2147483647, %v602
  %vm2286 = vcmp.eq.f32.partialorder %v2285, 8.507059e+37
  %v2287 = vand.u32 %v602, 2147483648
  %v2288 = vor.u32 1.1754944e-38, %v2287
  %v2289 = vsel %vm2286, %v2288, %v2284
  %v2290 = vmul.f32 1.0, %v2289
  %v2291 = vrcp.pop %v603
  %v2292 = vmul.f32 %v603, %v2291
  %v2293 = vsub.f32 1.0, %v2292
  %v2294 = vmul.f32 %v2291, %v2293
  %v2295 = vadd.f32 %v2291, %v2294
  %vm2296 = vweird.f32 %v603
  %vm2297 = vweird.f32 %v2291
  %vm2298 = vmor %vm2296, %vm2297
  %v2299 = vsel %vm2298, %v2291, %v2295
  %v2300 = vand.u32 2147483647, %v603
  %vm2301 = vcmp.eq.f32.partialorder %v2300, 8.507059e+37
  %v2302 = vand.u32 %v603, 2147483648
  %v2303 = vor.u32 1.1754944e-38, %v2302
  %v2304 = vsel %vm2301, %v2303, %v2299
  %v2305 = vmul.f32 1.0, %v2304
  %v2306 = vrcp.pop %v604
  %v2307 = vmul.f32 %v604, %v2306
  %v2308 = vsub.f32 1.0, %v2307
  %v2309 = vmul.f32 %v2306, %v2308
  %v2310 = vadd.f32 %v2306, %v2309
  %vm2311 = vweird.f32 %v604
  %vm2312 = vweird.f32 %v2306
  %vm2313 = vmor %vm2311, %vm2312
  %v2314 = vsel %vm2313, %v2306, %v2310
  %v2315 = vand.u32 2147483647, %v604
  %vm2316 = vcmp.eq.f32.partialorder %v2315, 8.507059e+37
  %v2317 = vand.u32 %v604, 2147483648
  %v2318 = vor.u32 1.1754944e-38, %v2317
  %v2319 = vsel %vm2316, %v2318, %v2314
  %v2320 = vmul.f32 1.0, %v2319
  %v2321 = vrcp.pop %v605
  %v2322 = vmul.f32 %v605, %v2321
  %v2323 = vsub.f32 1.0, %v2322
  %v2324 = vmul.f32 %v2321, %v2323
  %v2325 = vadd.f32 %v2321, %v2324
  %vm2326 = vweird.f32 %v605
  %vm2327 = vweird.f32 %v2321
  %vm2328 = vmor %vm2326, %vm2327
  %v2329 = vsel %vm2328, %v2321, %v2325
  %v2330 = vand.u32 2147483647, %v605
  %vm2331 = vcmp.eq.f32.partialorder %v2330, 8.507059e+37
  %v2332 = vand.u32 %v605, 2147483648
  %v2333 = vor.u32 1.1754944e-38, %v2332
  %v2334 = vsel %vm2331, %v2333, %v2329
  %v2335 = vmul.f32 1.0, %v2334
  %v2336 = vrcp.pop %v606
  %v2337 = vmul.f32 %v606, %v2336
  %v2338 = vsub.f32 1.0, %v2337
  %v2339 = vmul.f32 %v2336, %v2338
  %v2340 = vadd.f32 %v2336, %v2339
  %vm2341 = vweird.f32 %v606
  %vm2342 = vweird.f32 %v2336
  %vm2343 = vmor %vm2341, %vm2342
  %v2344 = vsel %vm2343, %v2336, %v2340
  %v2345 = vand.u32 2147483647, %v606
  %vm2346 = vcmp.eq.f32.partialorder %v2345, 8.507059e+37
  %v2347 = vand.u32 %v606, 2147483648
  %v2348 = vor.u32 1.1754944e-38, %v2347
  %v2349 = vsel %vm2346, %v2348, %v2344
  %v2350 = vmul.f32 1.0, %v2349
  %v2351 = vrcp.pop %v607
  %v2352 = vmul.f32 %v607, %v2351
  %v2353 = vsub.f32 1.0, %v2352
  %v2354 = vmul.f32 %v2351, %v2353
  %v2355 = vadd.f32 %v2351, %v2354
  %vm2356 = vweird.f32 %v607
  %vm2357 = vweird.f32 %v2351
  %vm2358 = vmor %vm2356, %vm2357
  %v2359 = vsel %vm2358, %v2351, %v2355
  %v2360 = vand.u32 2147483647, %v607
  %vm2361 = vcmp.eq.f32.partialorder %v2360, 8.507059e+37
  %v2362 = vand.u32 %v607, 2147483648
  %v2363 = vor.u32 1.1754944e-38, %v2362
  %v2364 = vsel %vm2361, %v2363, %v2359
  %v2365 = vmul.f32 1.0, %v2364
  %v2366 = vrcp.pop %v608
  %v2367 = vmul.f32 %v608, %v2366
  %v2368 = vsub.f32 1.0, %v2367
  %v2369 = vmul.f32 %v2366, %v2368
  %v2370 = vadd.f32 %v2366, %v2369
  %vm2371 = vweird.f32 %v608
  %vm2372 = vweird.f32 %v2366
  %vm2373 = vmor %vm2371, %vm2372
  %v2374 = vsel %vm2373, %v2366, %v2370
  %v2375 = vand.u32 2147483647, %v608
  %vm2376 = vcmp.eq.f32.partialorder %v2375, 8.507059e+37
  %v2377 = vand.u32 %v608, 2147483648
  %v2378 = vor.u32 1.1754944e-38, %v2377
  %v2379 = vsel %vm2376, %v2378, %v2374
  %v2380 = vmul.f32 1.0, %v2379
  %v2381 = vrcp.pop %v609
  %v2382 = vmul.f32 %v609, %v2381
  %v2383 = vsub.f32 1.0, %v2382
  %v2384 = vmul.f32 %v2381, %v2383
  %v2385 = vadd.f32 %v2381, %v2384
  %vm2386 = vweird.f32 %v609
  %vm2387 = vweird.f32 %v2381
  %vm2388 = vmor %vm2386, %vm2387
  %v2389 = vsel %vm2388, %v2381, %v2385
  %v2390 = vand.u32 2147483647, %v609
  %vm2391 = vcmp.eq.f32.partialorder %v2390, 8.507059e+37
  %v2392 = vand.u32 %v609, 2147483648
  %v2393 = vor.u32 1.1754944e-38, %v2392
  %v2394 = vsel %vm2391, %v2393, %v2389
  %v2395 = vmul.f32 1.0, %v2394
  %v2396 = vrcp.pop %v610
  %v2397 = vmul.f32 %v610, %v2396
  %v2398 = vsub.f32 1.0, %v2397
  %v2399 = vmul.f32 %v2396, %v2398
  %v2400 = vadd.f32 %v2396, %v2399
  %vm2401 = vweird.f32 %v610
  %vm2402 = vweird.f32 %v2396
  %vm2403 = vmor %vm2401, %vm2402
  %v2404 = vsel %vm2403, %v2396, %v2400
  %v2405 = vand.u32 2147483647, %v610
  %vm2406 = vcmp.eq.f32.partialorder %v2405, 8.507059e+37
  %v2407 = vand.u32 %v610, 2147483648
  %v2408 = vor.u32 1.1754944e-38, %v2407
  %v2409 = vsel %vm2406, %v2408, %v2404
  %v2410 = vmul.f32 1.0, %v2409
  %v2411 = vld [vmem:[%s1] sm:$0xff]
  %v2412 = vld [vmem:[%s1 + $0x8] sm:$0xff]
  %v2413 = vld [vmem:[%s1 + $0x10] sm:$0xff]
  %v2414 = vld [vmem:[%s1 + $0x18] sm:$0xff]
  %v2415 = vld [vmem:[%s1 + $0x20] sm:$0xff]
  %v2416 = vld [vmem:[%s1 + $0x28] sm:$0xff]
  %v2417 = vld [vmem:[%s1 + $0x30] sm:$0xff]
  %v2418 = vld [vmem:[%s1 + $0x38] sm:$0xff]
  %v2419 = vld [vmem:[%s1 + $0x40] sm:$0xff]
  %v2420 = vld [vmem:[%s1 + $0x48] sm:$0xff]
  %v2421 = vld [vmem:[%s1 + $0x50] sm:$0xff]
  %v2422 = vld [vmem:[%s1 + $0x58] sm:$0xff]
  %v2423 = vld [vmem:[%s1 + $0x60] sm:$0xff]
  %v2424 = vld [vmem:[%s1 + $0x68] sm:$0xff]
  %v2425 = vld [vmem:[%s1 + $0x70] sm:$0xff]
  %v2426 = vld [vmem:[%s1 + $0x78] sm:$0xff]
  %v2427 = vld [vmem:[%s1 + $0x80] sm:$0xff]
  %v2428 = vld [vmem:[%s1 + $0x88] sm:$0xff]
  %v2429 = vld [vmem:[%s1 + $0x90] sm:$0xff]
  %v2430 = vld [vmem:[%s1 + $0x98] sm:$0xff]
  %v2431 = vld [vmem:[%s1 + $0xa0] sm:$0xff]
  %v2432 = vld [vmem:[%s1 + $0xa8] sm:$0xff]
  %v2433 = vld [vmem:[%s1 + $0xb0] sm:$0xff]
  %v2434 = vld [vmem:[%s1 + $0xb8] sm:$0xff]
  %v2435 = vld [vmem:[%s1 + $0xc0] sm:$0xff]
  %v2436 = vld [vmem:[%s1 + $0xc8] sm:$0xff]
  %v2437 = vld [vmem:[%s1 + $0xd0] sm:$0xff]
  %v2438 = vld [vmem:[%s1 + $0xd8] sm:$0xff]
  %v2439 = vld [vmem:[%s1 + $0xe0] sm:$0xff]
  %v2440 = vld [vmem:[%s1 + $0xe8] sm:$0xff]
  %v2441 = vld [vmem:[%s1 + $0xf0] sm:$0xff]
  %v2442 = vld [vmem:[%s1 + $0xf8] sm:$0xff]
  %v2443 = vld [vmem:[%s1 + $0x100] sm:$0xff]
  %v2444 = vld [vmem:[%s1 + $0x108] sm:$0xff]
  %v2445 = vld [vmem:[%s1 + $0x110] sm:$0xff]
  %v2446 = vld [vmem:[%s1 + $0x118] sm:$0xff]
  %v2447 = vld [vmem:[%s1 + $0x120] sm:$0xff]
  %v2448 = vld [vmem:[%s1 + $0x128] sm:$0xff]
  %v2449 = vld [vmem:[%s1 + $0x130] sm:$0xff]
  %v2450 = vld [vmem:[%s1 + $0x138] sm:$0xff]
  %v2451 = vld [vmem:[%s1 + $0x140] sm:$0xff]
  %v2452 = vld [vmem:[%s1 + $0x148] sm:$0xff]
  %v2453 = vld [vmem:[%s1 + $0x150] sm:$0xff]
  %v2454 = vld [vmem:[%s1 + $0x158] sm:$0xff]
  %v2455 = vld [vmem:[%s1 + $0x160] sm:$0xff]
  %v2456 = vld [vmem:[%s1 + $0x168] sm:$0xff]
  %v2457 = vld [vmem:[%s1 + $0x170] sm:$0xff]
  %v2458 = vld [vmem:[%s1 + $0x178] sm:$0xff]
  %v2459 = vld [vmem:[%s1 + $0x180] sm:$0xff]
  %v2460 = vld [vmem:[%s1 + $0x188] sm:$0xff]
  %v2461 = vld [vmem:[%s1 + $0x190] sm:$0xff]
  %v2462 = vld [vmem:[%s1 + $0x198] sm:$0xff]
  %v2463 = vld [vmem:[%s1 + $0x1a0] sm:$0xff]
  %v2464 = vld [vmem:[%s1 + $0x1a8] sm:$0xff]
  %v2465 = vld [vmem:[%s1 + $0x1b0] sm:$0xff]
  %v2466 = vld [vmem:[%s1 + $0x1b8] sm:$0xff]
  %v2467 = vld [vmem:[%s1 + $0x1c0] sm:$0xff]
  %v2468 = vld [vmem:[%s1 + $0x1c8] sm:$0xff]
  %v2469 = vld [vmem:[%s1 + $0x1d0] sm:$0xff]
  %v2470 = vld [vmem:[%s1 + $0x1d8] sm:$0xff]
  %v2471 = vld [vmem:[%s1 + $0x1e0] sm:$0xff]
  %v2472 = vld [vmem:[%s1 + $0x1e8] sm:$0xff]
  %v2473 = vld [vmem:[%s1 + $0x1f0] sm:$0xff]
  %v2474 = vld [vmem:[%s1 + $0x1f8] sm:$0xff]
  %v2475 = vld [vmem:[%s1 + $0x200] sm:$0xff]
  %v2476 = vld [vmem:[%s1 + $0x208] sm:$0xff]
  %v2477 = vld [vmem:[%s1 + $0x210] sm:$0xff]
  %v2478 = vld [vmem:[%s1 + $0x218] sm:$0xff]
  %v2479 = vld [vmem:[%s1 + $0x220] sm:$0xff]
  %v2480 = vld [vmem:[%s1 + $0x228] sm:$0xff]
  %v2481 = vld [vmem:[%s1 + $0x230] sm:$0xff]
  %v2482 = vld [vmem:[%s1 + $0x238] sm:$0xff]
  %v2483 = vld [vmem:[%s1 + $0x240] sm:$0xff]
  %v2484 = vld [vmem:[%s1 + $0x248] sm:$0xff]
  %v2485 = vld [vmem:[%s1 + $0x250] sm:$0xff]
  %v2486 = vld [vmem:[%s1 + $0x258] sm:$0xff]
  %v2487 = vld [vmem:[%s1 + $0x260] sm:$0xff]
  %v2488 = vld [vmem:[%s1 + $0x268] sm:$0xff]
  %v2489 = vld [vmem:[%s1 + $0x270] sm:$0xff]
  %v2490 = vld [vmem:[%s1 + $0x278] sm:$0xff]
  %v2491 = vld [vmem:[%s1 + $0x280] sm:$0xff]
  %v2492 = vld [vmem:[%s1 + $0x288] sm:$0xff]
  %v2493 = vld [vmem:[%s1 + $0x290] sm:$0xff]
  %v2494 = vld [vmem:[%s1 + $0x298] sm:$0xff]
  %v2495 = vld [vmem:[%s1 + $0x2a0] sm:$0xff]
  %v2496 = vld [vmem:[%s1 + $0x2a8] sm:$0xff]
  %v2497 = vld [vmem:[%s1 + $0x2b0] sm:$0xff]
  %v2498 = vld [vmem:[%s1 + $0x2b8] sm:$0xff]
  %v2499 = vld [vmem:[%s1 + $0x2c0] sm:$0xff]
  %v2500 = vld [vmem:[%s1 + $0x2c8] sm:$0xff]
  %v2501 = vld [vmem:[%s1 + $0x2d0] sm:$0xff]
  %v2502 = vld [vmem:[%s1 + $0x2d8] sm:$0xff]
  %v2503 = vld [vmem:[%s1 + $0x2e0] sm:$0xff]
  %v2504 = vld [vmem:[%s1 + $0x2e8] sm:$0xff]
  %v2505 = vld [vmem:[%s1 + $0x2f0] sm:$0xff]
  %v2506 = vld [vmem:[%s1 + $0x2f8] sm:$0xff]
  %v2507 = vld [vmem:[%s1 + $0x300] sm:$0xff]
  %v2508 = vld [vmem:[%s1 + $0x308] sm:$0xff]
  %v2509 = vld [vmem:[%s1 + $0x310] sm:$0xff]
  %v2510 = vld [vmem:[%s1 + $0x318] sm:$0xff]
  %v2511 = vld [vmem:[%s1 + $0x320] sm:$0xff]
  %v2512 = vld [vmem:[%s1 + $0x328] sm:$0xff]
  %v2513 = vld [vmem:[%s1 + $0x330] sm:$0xff]
  %v2514 = vld [vmem:[%s1 + $0x338] sm:$0xff]
  %v2515 = vld [vmem:[%s1 + $0x340] sm:$0xff]
  %v2516 = vld [vmem:[%s1 + $0x348] sm:$0xff]
  %v2517 = vld [vmem:[%s1 + $0x350] sm:$0xff]
  %v2518 = vld [vmem:[%s1 + $0x358] sm:$0xff]
  %v2519 = vld [vmem:[%s1 + $0x360] sm:$0xff]
  %v2520 = vld [vmem:[%s1 + $0x368] sm:$0xff]
  %v2521 = vld [vmem:[%s1 + $0x370] sm:$0xff]
  %v2522 = vld [vmem:[%s1 + $0x378] sm:$0xff]
  %v2523 = vld [vmem:[%s1 + $0x380] sm:$0xff]
  %v2524 = vld [vmem:[%s1 + $0x388] sm:$0xff]
  %v2525 = vld [vmem:[%s1 + $0x390] sm:$0xff]
  %v2526 = vld [vmem:[%s1 + $0x398] sm:$0xff]
  %v2527 = vld [vmem:[%s1 + $0x3a0] sm:$0xff]
  %v2528 = vld [vmem:[%s1 + $0x3a8] sm:$0xff]
  %v2529 = vld [vmem:[%s1 + $0x3b0] sm:$0xff]
  %v2530 = vld [vmem:[%s1 + $0x3b8] sm:$0xff]
  %v2531 = vld [vmem:[%s1 + $0x3c0] sm:$0xff]
  %v2532 = vld [vmem:[%s1 + $0x3c8] sm:$0xff]
  %v2533 = vld [vmem:[%s1 + $0x3d0] sm:$0xff]
  %v2534 = vld [vmem:[%s1 + $0x3d8] sm:$0xff]
  %v2535 = vld [vmem:[%s1 + $0x3e0] sm:$0xff]
  %v2536 = vld [vmem:[%s1 + $0x3e8] sm:$0xff]
  %v2537 = vld [vmem:[%s1 + $0x3f0] sm:$0xff]
  %v2538 = vld [vmem:[%s1 + $0x3f8] sm:$0xff]
  %v2539 = vld [vmem:[%s1 + $0x400] sm:$0xff]
  %v2540 = vld [vmem:[%s1 + $0x408] sm:$0xff]
  %v2541 = vld [vmem:[%s1 + $0x410] sm:$0xff]
  %v2542 = vld [vmem:[%s1 + $0x418] sm:$0xff]
  %v2543 = vld [vmem:[%s1 + $0x420] sm:$0xff]
  %v2544 = vld [vmem:[%s1 + $0x428] sm:$0xff]
  %v2545 = vld [vmem:[%s1 + $0x430] sm:$0xff]
  %v2546 = vld [vmem:[%s1 + $0x438] sm:$0xff]
  %v2547 = vld [vmem:[%s1 + $0x440] sm:$0xff]
  %v2548 = vld [vmem:[%s1 + $0x448] sm:$0xff]
  %v2549 = vld [vmem:[%s1 + $0x450] sm:$0xff]
  %v2550 = vld [vmem:[%s1 + $0x458] sm:$0xff]
  %v2551 = vld [vmem:[%s1 + $0x460] sm:$0xff]
  %v2552 = vld [vmem:[%s1 + $0x468] sm:$0xff]
  %v2553 = vld [vmem:[%s1 + $0x470] sm:$0xff]
  %v2554 = vld [vmem:[%s1 + $0x478] sm:$0xff]
  %v2555 = vld [vmem:[%s1 + $0x480] sm:$0xff]
  %v2556 = vld [vmem:[%s1 + $0x488] sm:$0xff]
  %v2557 = vld [vmem:[%s1 + $0x490] sm:$0xff]
  %v2558 = vld [vmem:[%s1 + $0x498] sm:$0xff]
  %v2559 = vld [vmem:[%s1 + $0x4a0] sm:$0xff]
  %v2560 = vld [vmem:[%s1 + $0x4a8] sm:$0xff]
  %v2561 = vld [vmem:[%s1 + $0x4b0] sm:$0xff]
  %v2562 = vld [vmem:[%s1 + $0x4b8] sm:$0xff]
  %v2563 = vld [vmem:[%s1 + $0x4c0] sm:$0xff]
  %v2564 = vld [vmem:[%s1 + $0x4c8] sm:$0xff]
  %v2565 = vld [vmem:[%s1 + $0x4d0] sm:$0xff]
  %v2566 = vld [vmem:[%s1 + $0x4d8] sm:$0xff]
  %v2567 = vld [vmem:[%s1 + $0x4e0] sm:$0xff]
  %v2568 = vld [vmem:[%s1 + $0x4e8] sm:$0xff]
  %v2569 = vld [vmem:[%s1 + $0x4f0] sm:$0xff]
  %v2570 = vld [vmem:[%s1 + $0x4f8] sm:$0xff]
  %v2571 = vld [vmem:[%s1 + $0x500] sm:$0xff]
  %v2572 = vld [vmem:[%s1 + $0x508] sm:$0xff]
  %v2573 = vld [vmem:[%s1 + $0x510] sm:$0xff]
  %v2574 = vld [vmem:[%s1 + $0x518] sm:$0xff]
  %v2575 = vld [vmem:[%s1 + $0x520] sm:$0xff]
  %v2576 = vld [vmem:[%s1 + $0x528] sm:$0xff]
  %v2577 = vld [vmem:[%s1 + $0x530] sm:$0xff]
  %v2578 = vld [vmem:[%s1 + $0x538] sm:$0xff]
  %v2579 = vld [vmem:[%s1 + $0x540] sm:$0xff]
  %v2580 = vld [vmem:[%s1 + $0x548] sm:$0xff]
  %v2581 = vld [vmem:[%s1 + $0x550] sm:$0xff]
  %v2582 = vld [vmem:[%s1 + $0x558] sm:$0xff]
  %v2583 = vld [vmem:[%s1 + $0x560] sm:$0xff]
  %v2584 = vld [vmem:[%s1 + $0x568] sm:$0xff]
  %v2585 = vld [vmem:[%s1 + $0x570] sm:$0xff]
  %v2586 = vld [vmem:[%s1 + $0x578] sm:$0xff]
  %v2587 = vld [vmem:[%s1 + $0x580] sm:$0xff]
  %v2588 = vld [vmem:[%s1 + $0x588] sm:$0xff]
  %v2589 = vld [vmem:[%s1 + $0x590] sm:$0xff]
  %v2590 = vld [vmem:[%s1 + $0x598] sm:$0xff]
  %v2591 = vld [vmem:[%s1 + $0x5a0] sm:$0xff]
  %v2592 = vld [vmem:[%s1 + $0x5a8] sm:$0xff]
  %v2593 = vld [vmem:[%s1 + $0x5b0] sm:$0xff]
  %v2594 = vld [vmem:[%s1 + $0x5b8] sm:$0xff]
  %v2595 = vld [vmem:[%s1 + $0x5c0] sm:$0xff]
  %v2596 = vld [vmem:[%s1 + $0x5c8] sm:$0xff]
  %v2597 = vld [vmem:[%s1 + $0x5d0] sm:$0xff]
  %v2598 = vld [vmem:[%s1 + $0x5d8] sm:$0xff]
  %v2599 = vld [vmem:[%s1 + $0x5e0] sm:$0xff]
  %v2600 = vld [vmem:[%s1 + $0x5e8] sm:$0xff]
  %v2601 = vld [vmem:[%s1 + $0x5f0] sm:$0xff]
  %v2602 = vld [vmem:[%s1 + $0x5f8] sm:$0xff]
  %v2603 = vld [vmem:[%s1 + $0x600] sm:$0xff]
  %v2604 = vld [vmem:[%s1 + $0x608] sm:$0xff]
  %v2605 = vld [vmem:[%s1 + $0x610] sm:$0xff]
  %v2606 = vld [vmem:[%s1 + $0x618] sm:$0xff]
  %v2607 = vld [vmem:[%s1 + $0x620] sm:$0xff]
  %v2608 = vld [vmem:[%s1 + $0x628] sm:$0xff]
  %v2609 = vld [vmem:[%s1 + $0x630] sm:$0xff]
  %v2610 = vld [vmem:[%s1 + $0x638] sm:$0xff]
  %v2611 = vld [vmem:[%s1 + $0x640] sm:$0xff]
  %v2612 = vld [vmem:[%s1 + $0x648] sm:$0xff]
  %v2613 = vld [vmem:[%s1 + $0x650] sm:$0xff]
  %v2614 = vld [vmem:[%s1 + $0x658] sm:$0xff]
  %v2615 = vld [vmem:[%s1 + $0x660] sm:$0xff]
  %v2616 = vld [vmem:[%s1 + $0x668] sm:$0xff]
  %v2617 = vld [vmem:[%s1 + $0x670] sm:$0xff]
  %v2618 = vld [vmem:[%s1 + $0x678] sm:$0xff]
  %v2619 = vld [vmem:[%s1 + $0x680] sm:$0xff]
  %v2620 = vld [vmem:[%s1 + $0x688] sm:$0xff]
  %v2621 = vld [vmem:[%s1 + $0x690] sm:$0xff]
  %v2622 = vld [vmem:[%s1 + $0x698] sm:$0xff]
  %v2623 = vld [vmem:[%s1 + $0x6a0] sm:$0xff]
  %v2624 = vld [vmem:[%s1 + $0x6a8] sm:$0xff]
  %v2625 = vld [vmem:[%s1 + $0x6b0] sm:$0xff]
  %v2626 = vld [vmem:[%s1 + $0x6b8] sm:$0xff]
  %v2627 = vld [vmem:[%s1 + $0x6c0] sm:$0xff]
  %v2628 = vld [vmem:[%s1 + $0x6c8] sm:$0xff]
  %v2629 = vld [vmem:[%s1 + $0x6d0] sm:$0xff]
  %v2630 = vld [vmem:[%s1 + $0x6d8] sm:$0xff]
  %v2631 = vld [vmem:[%s1 + $0x6e0] sm:$0xff]
  %v2632 = vld [vmem:[%s1 + $0x6e8] sm:$0xff]
  %v2633 = vld [vmem:[%s1 + $0x6f0] sm:$0xff]
  %v2634 = vld [vmem:[%s1 + $0x6f8] sm:$0xff]
  %v2635 = vld [vmem:[%s1 + $0x700] sm:$0xff]
  %v2636 = vld [vmem:[%s1 + $0x708] sm:$0xff]
  %v2637 = vld [vmem:[%s1 + $0x710] sm:$0xff]
  %v2638 = vld [vmem:[%s1 + $0x718] sm:$0xff]
  %v2639 = vld [vmem:[%s1 + $0x720] sm:$0xff]
  %v2640 = vld [vmem:[%s1 + $0x728] sm:$0xff]
  %v2641 = vld [vmem:[%s1 + $0x730] sm:$0xff]
  %v2642 = vld [vmem:[%s1 + $0x738] sm:$0xff]
  %v2643 = vld [vmem:[%s1 + $0x740] sm:$0xff]
  %v2644 = vld [vmem:[%s1 + $0x748] sm:$0xff]
  %v2645 = vld [vmem:[%s1 + $0x750] sm:$0xff]
  %v2646 = vld [vmem:[%s1 + $0x758] sm:$0xff]
  %v2647 = vld [vmem:[%s1 + $0x760] sm:$0xff]
  %v2648 = vld [vmem:[%s1 + $0x768] sm:$0xff]
  %v2649 = vld [vmem:[%s1 + $0x770] sm:$0xff]
  %v2650 = vld [vmem:[%s1 + $0x778] sm:$0xff]
  %2652 = vset.pattern.permute.xlu0 0
  %2653 = vperm.xlu0 %2652, %v625
  %v2654 = vpop.permute.xlu0 %2653
  %2657 = vset.pattern.permute.xlu0 0
  %2658 = vperm.xlu0 %2657, %v640
  %v2659 = vpop.permute.xlu0 %2658
  %2662 = vset.pattern.permute.xlu0 0
  %2663 = vperm.xlu0 %2662, %v655
  %v2664 = vpop.permute.xlu0 %2663
  %2667 = vset.pattern.permute.xlu0 0
  %2668 = vperm.xlu0 %2667, %v670
  %v2669 = vpop.permute.xlu0 %2668
  %2672 = vset.pattern.permute.xlu0 0
  %2673 = vperm.xlu0 %2672, %v685
  %v2674 = vpop.permute.xlu0 %2673
  %2677 = vset.pattern.permute.xlu0 0
  %2678 = vperm.xlu0 %2677, %v700
  %v2679 = vpop.permute.xlu0 %2678
  %2682 = vset.pattern.permute.xlu0 0
  %2683 = vperm.xlu0 %2682, %v715
  %v2684 = vpop.permute.xlu0 %2683
  %2687 = vset.pattern.permute.xlu0 0
  %2688 = vperm.xlu0 %2687, %v730
  %v2689 = vpop.permute.xlu0 %2688
  %2692 = vset.pattern.permute.xlu0 0
  %2693 = vperm.xlu0 %2692, %v745
  %v2694 = vpop.permute.xlu0 %2693
  %2697 = vset.pattern.permute.xlu0 0
  %2698 = vperm.xlu0 %2697, %v760
  %v2699 = vpop.permute.xlu0 %2698
  %2702 = vset.pattern.permute.xlu0 0
  %2703 = vperm.xlu0 %2702, %v775
  %v2704 = vpop.permute.xlu0 %2703
  %2707 = vset.pattern.permute.xlu0 0
  %2708 = vperm.xlu0 %2707, %v790
  %v2709 = vpop.permute.xlu0 %2708
  %2712 = vset.pattern.permute.xlu0 0
  %2713 = vperm.xlu0 %2712, %v805
  %v2714 = vpop.permute.xlu0 %2713
  %2717 = vset.pattern.permute.xlu0 0
  %2718 = vperm.xlu0 %2717, %v820
  %v2719 = vpop.permute.xlu0 %2718
  %2722 = vset.pattern.permute.xlu0 0
  %2723 = vperm.xlu0 %2722, %v835
  %v2724 = vpop.permute.xlu0 %2723
  %2727 = vset.pattern.permute.xlu0 0
  %2728 = vperm.xlu0 %2727, %v850
  %v2729 = vpop.permute.xlu0 %2728
  %2732 = vset.pattern.permute.xlu0 0
  %2733 = vperm.xlu0 %2732, %v865
  %v2734 = vpop.permute.xlu0 %2733
  %2737 = vset.pattern.permute.xlu0 0
  %2738 = vperm.xlu0 %2737, %v880
  %v2739 = vpop.permute.xlu0 %2738
  %2742 = vset.pattern.permute.xlu0 0
  %2743 = vperm.xlu0 %2742, %v895
  %v2744 = vpop.permute.xlu0 %2743
  %2747 = vset.pattern.permute.xlu0 0
  %2748 = vperm.xlu0 %2747, %v910
  %v2749 = vpop.permute.xlu0 %2748
  %2752 = vset.pattern.permute.xlu0 0
  %2753 = vperm.xlu0 %2752, %v925
  %v2754 = vpop.permute.xlu0 %2753
  %2757 = vset.pattern.permute.xlu0 0
  %2758 = vperm.xlu0 %2757, %v940
  %v2759 = vpop.permute.xlu0 %2758
  %2762 = vset.pattern.permute.xlu0 0
  %2763 = vperm.xlu0 %2762, %v955
  %v2764 = vpop.permute.xlu0 %2763
  %2767 = vset.pattern.permute.xlu0 0
  %2768 = vperm.xlu0 %2767, %v970
  %v2769 = vpop.permute.xlu0 %2768
  %2772 = vset.pattern.permute.xlu0 0
  %2773 = vperm.xlu0 %2772, %v985
  %v2774 = vpop.permute.xlu0 %2773
  %2777 = vset.pattern.permute.xlu0 0
  %2778 = vperm.xlu0 %2777, %v1000
  %v2779 = vpop.permute.xlu0 %2778
  %2782 = vset.pattern.permute.xlu0 0
  %2783 = vperm.xlu0 %2782, %v1015
  %v2784 = vpop.permute.xlu0 %2783
  %2787 = vset.pattern.permute.xlu0 0
  %2788 = vperm.xlu0 %2787, %v1030
  %v2789 = vpop.permute.xlu0 %2788
  %2792 = vset.pattern.permute.xlu0 0
  %2793 = vperm.xlu0 %2792, %v1045
  %v2794 = vpop.permute.xlu0 %2793
  %2797 = vset.pattern.permute.xlu0 0
  %2798 = vperm.xlu0 %2797, %v1060
  %v2799 = vpop.permute.xlu0 %2798
  %2802 = vset.pattern.permute.xlu0 0
  %2803 = vperm.xlu0 %2802, %v1075
  %v2804 = vpop.permute.xlu0 %2803
  %2807 = vset.pattern.permute.xlu0 0
  %2808 = vperm.xlu0 %2807, %v1090
  %v2809 = vpop.permute.xlu0 %2808
  %2812 = vset.pattern.permute.xlu0 0
  %2813 = vperm.xlu0 %2812, %v1105
  %v2814 = vpop.permute.xlu0 %2813
  %2817 = vset.pattern.permute.xlu0 0
  %2818 = vperm.xlu0 %2817, %v1120
  %v2819 = vpop.permute.xlu0 %2818
  %2822 = vset.pattern.permute.xlu0 0
  %2823 = vperm.xlu0 %2822, %v1135
  %v2824 = vpop.permute.xlu0 %2823
  %2827 = vset.pattern.permute.xlu0 0
  %2828 = vperm.xlu0 %2827, %v1150
  %v2829 = vpop.permute.xlu0 %2828
  %2832 = vset.pattern.permute.xlu0 0
  %2833 = vperm.xlu0 %2832, %v1165
  %v2834 = vpop.permute.xlu0 %2833
  %2837 = vset.pattern.permute.xlu0 0
  %2838 = vperm.xlu0 %2837, %v1180
  %v2839 = vpop.permute.xlu0 %2838
  %2842 = vset.pattern.permute.xlu0 0
  %2843 = vperm.xlu0 %2842, %v1195
  %v2844 = vpop.permute.xlu0 %2843
  %2847 = vset.pattern.permute.xlu0 0
  %2848 = vperm.xlu0 %2847, %v1210
  %v2849 = vpop.permute.xlu0 %2848
  %2852 = vset.pattern.permute.xlu0 0
  %2853 = vperm.xlu0 %2852, %v1225
  %v2854 = vpop.permute.xlu0 %2853
  %2857 = vset.pattern.permute.xlu0 0
  %2858 = vperm.xlu0 %2857, %v1240
  %v2859 = vpop.permute.xlu0 %2858
  %2862 = vset.pattern.permute.xlu0 0
  %2863 = vperm.xlu0 %2862, %v1255
  %v2864 = vpop.permute.xlu0 %2863
  %2867 = vset.pattern.permute.xlu0 0
  %2868 = vperm.xlu0 %2867, %v1270
  %v2869 = vpop.permute.xlu0 %2868
  %2872 = vset.pattern.permute.xlu0 0
  %2873 = vperm.xlu0 %2872, %v1285
  %v2874 = vpop.permute.xlu0 %2873
  %2877 = vset.pattern.permute.xlu0 0
  %2878 = vperm.xlu0 %2877, %v1300
  %v2879 = vpop.permute.xlu0 %2878
  %2882 = vset.pattern.permute.xlu0 0
  %2883 = vperm.xlu0 %2882, %v1315
  %v2884 = vpop.permute.xlu0 %2883
  %2887 = vset.pattern.permute.xlu0 0
  %2888 = vperm.xlu0 %2887, %v1330
  %v2889 = vpop.permute.xlu0 %2888
  %2892 = vset.pattern.permute.xlu0 0
  %2893 = vperm.xlu0 %2892, %v1345
  %v2894 = vpop.permute.xlu0 %2893
  %2897 = vset.pattern.permute.xlu0 0
  %2898 = vperm.xlu0 %2897, %v1360
  %v2899 = vpop.permute.xlu0 %2898
  %2902 = vset.pattern.permute.xlu0 0
  %2903 = vperm.xlu0 %2902, %v1375
  %v2904 = vpop.permute.xlu0 %2903
  %2907 = vset.pattern.permute.xlu0 0
  %2908 = vperm.xlu0 %2907, %v1390
  %v2909 = vpop.permute.xlu0 %2908
  %2912 = vset.pattern.permute.xlu0 0
  %2913 = vperm.xlu0 %2912, %v1405
  %v2914 = vpop.permute.xlu0 %2913
  %2917 = vset.pattern.permute.xlu0 0
  %2918 = vperm.xlu0 %2917, %v1420
  %v2919 = vpop.permute.xlu0 %2918
  %2922 = vset.pattern.permute.xlu0 0
  %2923 = vperm.xlu0 %2922, %v1435
  %v2924 = vpop.permute.xlu0 %2923
  %2927 = vset.pattern.permute.xlu0 0
  %2928 = vperm.xlu0 %2927, %v1450
  %v2929 = vpop.permute.xlu0 %2928
  %2932 = vset.pattern.permute.xlu0 0
  %2933 = vperm.xlu0 %2932, %v1465
  %v2934 = vpop.permute.xlu0 %2933
  %2937 = vset.pattern.permute.xlu0 0
  %2938 = vperm.xlu0 %2937, %v1480
  %v2939 = vpop.permute.xlu0 %2938
  %2942 = vset.pattern.permute.xlu0 0
  %2943 = vperm.xlu0 %2942, %v1495
  %v2944 = vpop.permute.xlu0 %2943
  %2947 = vset.pattern.permute.xlu0 0
  %2948 = vperm.xlu0 %2947, %v1510
  %v2949 = vpop.permute.xlu0 %2948
  %2952 = vset.pattern.permute.xlu0 0
  %2953 = vperm.xlu0 %2952, %v1525
  %v2954 = vpop.permute.xlu0 %2953
  %2957 = vset.pattern.permute.xlu0 0
  %2958 = vperm.xlu0 %2957, %v1540
  %v2959 = vpop.permute.xlu0 %2958
  %2962 = vset.pattern.permute.xlu0 0
  %2963 = vperm.xlu0 %2962, %v1555
  %v2964 = vpop.permute.xlu0 %2963
  %2967 = vset.pattern.permute.xlu0 0
  %2968 = vperm.xlu0 %2967, %v1570
  %v2969 = vpop.permute.xlu0 %2968
  %2972 = vset.pattern.permute.xlu0 0
  %2973 = vperm.xlu0 %2972, %v1585
  %v2974 = vpop.permute.xlu0 %2973
  %2977 = vset.pattern.permute.xlu0 0
  %2978 = vperm.xlu0 %2977, %v1600
  %v2979 = vpop.permute.xlu0 %2978
  %2982 = vset.pattern.permute.xlu0 0
  %2983 = vperm.xlu0 %2982, %v1615
  %v2984 = vpop.permute.xlu0 %2983
  %2987 = vset.pattern.permute.xlu0 0
  %2988 = vperm.xlu0 %2987, %v1630
  %v2989 = vpop.permute.xlu0 %2988
  %2992 = vset.pattern.permute.xlu0 0
  %2993 = vperm.xlu0 %2992, %v1645
  %v2994 = vpop.permute.xlu0 %2993
  %2997 = vset.pattern.permute.xlu0 0
  %2998 = vperm.xlu0 %2997, %v1660
  %v2999 = vpop.permute.xlu0 %2998
  %3002 = vset.pattern.permute.xlu0 0
  %3003 = vperm.xlu0 %3002, %v1675
  %v3004 = vpop.permute.xlu0 %3003
  %3007 = vset.pattern.permute.xlu0 0
  %3008 = vperm.xlu0 %3007, %v1690
  %v3009 = vpop.permute.xlu0 %3008
  %3012 = vset.pattern.permute.xlu0 0
  %3013 = vperm.xlu0 %3012, %v1705
  %v3014 = vpop.permute.xlu0 %3013
  %3017 = vset.pattern.permute.xlu0 0
  %3018 = vperm.xlu0 %3017, %v1720
  %v3019 = vpop.permute.xlu0 %3018
  %3022 = vset.pattern.permute.xlu0 0
  %3023 = vperm.xlu0 %3022, %v1735
  %v3024 = vpop.permute.xlu0 %3023
  %3027 = vset.pattern.permute.xlu0 0
  %3028 = vperm.xlu0 %3027, %v1750
  %v3029 = vpop.permute.xlu0 %3028
  %3032 = vset.pattern.permute.xlu0 0
  %3033 = vperm.xlu0 %3032, %v1765
  %v3034 = vpop.permute.xlu0 %3033
  %3037 = vset.pattern.permute.xlu0 0
  %3038 = vperm.xlu0 %3037, %v1780
  %v3039 = vpop.permute.xlu0 %3038
  %3042 = vset.pattern.permute.xlu0 0
  %3043 = vperm.xlu0 %3042, %v1795
  %v3044 = vpop.permute.xlu0 %3043
  %3047 = vset.pattern.permute.xlu0 0
  %3048 = vperm.xlu0 %3047, %v1810
  %v3049 = vpop.permute.xlu0 %3048
  %3052 = vset.pattern.permute.xlu0 0
  %3053 = vperm.xlu0 %3052, %v1825
  %v3054 = vpop.permute.xlu0 %3053
  %3057 = vset.pattern.permute.xlu0 0
  %3058 = vperm.xlu0 %3057, %v1840
  %v3059 = vpop.permute.xlu0 %3058
  %3062 = vset.pattern.permute.xlu0 0
  %3063 = vperm.xlu0 %3062, %v1855
  %v3064 = vpop.permute.xlu0 %3063
  %3067 = vset.pattern.permute.xlu0 0
  %3068 = vperm.xlu0 %3067, %v1870
  %v3069 = vpop.permute.xlu0 %3068
  %3072 = vset.pattern.permute.xlu0 0
  %3073 = vperm.xlu0 %3072, %v1885
  %v3074 = vpop.permute.xlu0 %3073
  %3077 = vset.pattern.permute.xlu0 0
  %3078 = vperm.xlu0 %3077, %v1900
  %v3079 = vpop.permute.xlu0 %3078
  %3082 = vset.pattern.permute.xlu0 0
  %3083 = vperm.xlu0 %3082, %v1915
  %v3084 = vpop.permute.xlu0 %3083
  %3087 = vset.pattern.permute.xlu0 0
  %3088 = vperm.xlu0 %3087, %v1930
  %v3089 = vpop.permute.xlu0 %3088
  %3092 = vset.pattern.permute.xlu0 0
  %3093 = vperm.xlu0 %3092, %v1945
  %v3094 = vpop.permute.xlu0 %3093
  %3097 = vset.pattern.permute.xlu0 0
  %3098 = vperm.xlu0 %3097, %v1960
  %v3099 = vpop.permute.xlu0 %3098
  %3102 = vset.pattern.permute.xlu0 0
  %3103 = vperm.xlu0 %3102, %v1975
  %v3104 = vpop.permute.xlu0 %3103
  %3107 = vset.pattern.permute.xlu0 0
  %3108 = vperm.xlu0 %3107, %v1990
  %v3109 = vpop.permute.xlu0 %3108
  %3112 = vset.pattern.permute.xlu0 0
  %3113 = vperm.xlu0 %3112, %v2005
  %v3114 = vpop.permute.xlu0 %3113
  %3117 = vset.pattern.permute.xlu0 0
  %3118 = vperm.xlu0 %3117, %v2020
  %v3119 = vpop.permute.xlu0 %3118
  %3122 = vset.pattern.permute.xlu0 0
  %3123 = vperm.xlu0 %3122, %v2035
  %v3124 = vpop.permute.xlu0 %3123
  %3127 = vset.pattern.permute.xlu0 0
  %3128 = vperm.xlu0 %3127, %v2050
  %v3129 = vpop.permute.xlu0 %3128
  %3132 = vset.pattern.permute.xlu0 0
  %3133 = vperm.xlu0 %3132, %v2065
  %v3134 = vpop.permute.xlu0 %3133
  %3137 = vset.pattern.permute.xlu0 0
  %3138 = vperm.xlu0 %3137, %v2080
  %v3139 = vpop.permute.xlu0 %3138
  %3142 = vset.pattern.permute.xlu0 0
  %3143 = vperm.xlu0 %3142, %v2095
  %v3144 = vpop.permute.xlu0 %3143
  %3147 = vset.pattern.permute.xlu0 0
  %3148 = vperm.xlu0 %3147, %v2110
  %v3149 = vpop.permute.xlu0 %3148
  %3152 = vset.pattern.permute.xlu0 0
  %3153 = vperm.xlu0 %3152, %v2125
  %v3154 = vpop.permute.xlu0 %3153
  %3157 = vset.pattern.permute.xlu0 0
  %3158 = vperm.xlu0 %3157, %v2140
  %v3159 = vpop.permute.xlu0 %3158
  %3162 = vset.pattern.permute.xlu0 0
  %3163 = vperm.xlu0 %3162, %v2155
  %v3164 = vpop.permute.xlu0 %3163
  %3167 = vset.pattern.permute.xlu0 0
  %3168 = vperm.xlu0 %3167, %v2170
  %v3169 = vpop.permute.xlu0 %3168
  %3172 = vset.pattern.permute.xlu0 0
  %3173 = vperm.xlu0 %3172, %v2185
  %v3174 = vpop.permute.xlu0 %3173
  %3177 = vset.pattern.permute.xlu0 0
  %3178 = vperm.xlu0 %3177, %v2200
  %v3179 = vpop.permute.xlu0 %3178
  %3182 = vset.pattern.permute.xlu0 0
  %3183 = vperm.xlu0 %3182, %v2215
  %v3184 = vpop.permute.xlu0 %3183
  %3187 = vset.pattern.permute.xlu0 0
  %3188 = vperm.xlu0 %3187, %v2230
  %v3189 = vpop.permute.xlu0 %3188
  %3192 = vset.pattern.permute.xlu0 0
  %3193 = vperm.xlu0 %3192, %v2245
  %v3194 = vpop.permute.xlu0 %3193
  %3197 = vset.pattern.permute.xlu0 0
  %3198 = vperm.xlu0 %3197, %v2260
  %v3199 = vpop.permute.xlu0 %3198
  %3202 = vset.pattern.permute.xlu0 0
  %3203 = vperm.xlu0 %3202, %v2275
  %v3204 = vpop.permute.xlu0 %3203
  %3207 = vset.pattern.permute.xlu0 0
  %3208 = vperm.xlu0 %3207, %v2290
  %v3209 = vpop.permute.xlu0 %3208
  %3212 = vset.pattern.permute.xlu0 0
  %3213 = vperm.xlu0 %3212, %v2305
  %v3214 = vpop.permute.xlu0 %3213
  %3217 = vset.pattern.permute.xlu0 0
  %3218 = vperm.xlu0 %3217, %v2320
  %v3219 = vpop.permute.xlu0 %3218
  %3222 = vset.pattern.permute.xlu0 0
  %3223 = vperm.xlu0 %3222, %v2335
  %v3224 = vpop.permute.xlu0 %3223
  %3227 = vset.pattern.permute.xlu0 0
  %3228 = vperm.xlu0 %3227, %v2350
  %v3229 = vpop.permute.xlu0 %3228
  %3232 = vset.pattern.permute.xlu0 0
  %3233 = vperm.xlu0 %3232, %v2365
  %v3234 = vpop.permute.xlu0 %3233
  %3237 = vset.pattern.permute.xlu0 0
  %3238 = vperm.xlu0 %3237, %v2380
  %v3239 = vpop.permute.xlu0 %3238
  %3242 = vset.pattern.permute.xlu0 0
  %3243 = vperm.xlu0 %3242, %v2395
  %v3244 = vpop.permute.xlu0 %3243
  %3247 = vset.pattern.permute.xlu0 0
  %3248 = vperm.xlu0 %3247, %v2410
  %v3249 = vpop.permute.xlu0 %3248
  %v3251 = vmul.f32 %v2654, %v2411
  %v3252 = vmul.f32 %v2654, %v2412
  %v3253 = vmul.f32 %v2659, %v2413
  %v3254 = vmul.f32 %v2659, %v2414
  %v3255 = vmul.f32 %v2664, %v2415
  %v3256 = vmul.f32 %v2664, %v2416
  %v3257 = vmul.f32 %v2669, %v2417
  %v3258 = vmul.f32 %v2669, %v2418
  %v3259 = vmul.f32 %v2674, %v2419
  %v3260 = vmul.f32 %v2674, %v2420
  %v3261 = vmul.f32 %v2679, %v2421
  %v3262 = vmul.f32 %v2679, %v2422
  %v3263 = vmul.f32 %v2684, %v2423
  %v3264 = vmul.f32 %v2684, %v2424
  %v3265 = vmul.f32 %v2689, %v2425
  %v3266 = vmul.f32 %v2689, %v2426
  %v3267 = vmul.f32 %v2694, %v2427
  %v3268 = vmul.f32 %v2694, %v2428
  %v3269 = vmul.f32 %v2699, %v2429
  %v3270 = vmul.f32 %v2699, %v2430
  %v3271 = vmul.f32 %v2704, %v2431
  %v3272 = vmul.f32 %v2704, %v2432
  %v3273 = vmul.f32 %v2709, %v2433
  %v3274 = vmul.f32 %v2709, %v2434
  %v3275 = vmul.f32 %v2714, %v2435
  %v3276 = vmul.f32 %v2714, %v2436
  %v3277 = vmul.f32 %v2719, %v2437
  %v3278 = vmul.f32 %v2719, %v2438
  %v3279 = vmul.f32 %v2724, %v2439
  %v3280 = vmul.f32 %v2724, %v2440
  %v3281 = vmul.f32 %v2729, %v2441
  %v3282 = vmul.f32 %v2729, %v2442
  %v3283 = vmul.f32 %v2734, %v2443
  %v3284 = vmul.f32 %v2734, %v2444
  %v3285 = vmul.f32 %v2739, %v2445
  %v3286 = vmul.f32 %v2739, %v2446
  %v3287 = vmul.f32 %v2744, %v2447
  %v3288 = vmul.f32 %v2744, %v2448
  %v3289 = vmul.f32 %v2749, %v2449
  %v3290 = vmul.f32 %v2749, %v2450
  %v3291 = vmul.f32 %v2754, %v2451
  %v3292 = vmul.f32 %v2754, %v2452
  %v3293 = vmul.f32 %v2759, %v2453
  %v3294 = vmul.f32 %v2759, %v2454
  %v3295 = vmul.f32 %v2764, %v2455
  %v3296 = vmul.f32 %v2764, %v2456
  %v3297 = vmul.f32 %v2769, %v2457
  %v3298 = vmul.f32 %v2769, %v2458
  %v3299 = vmul.f32 %v2774, %v2459
  %v3300 = vmul.f32 %v2774, %v2460
  %v3301 = vmul.f32 %v2779, %v2461
  %v3302 = vmul.f32 %v2779, %v2462
  %v3303 = vmul.f32 %v2784, %v2463
  %v3304 = vmul.f32 %v2784, %v2464
  %v3305 = vmul.f32 %v2789, %v2465
  %v3306 = vmul.f32 %v2789, %v2466
  %v3307 = vmul.f32 %v2794, %v2467
  %v3308 = vmul.f32 %v2794, %v2468
  %v3309 = vmul.f32 %v2799, %v2469
  %v3310 = vmul.f32 %v2799, %v2470
  %v3311 = vmul.f32 %v2804, %v2471
  %v3312 = vmul.f32 %v2804, %v2472
  %v3313 = vmul.f32 %v2809, %v2473
  %v3314 = vmul.f32 %v2809, %v2474
  %v3315 = vmul.f32 %v2814, %v2475
  %v3316 = vmul.f32 %v2814, %v2476
  %v3317 = vmul.f32 %v2819, %v2477
  %v3318 = vmul.f32 %v2819, %v2478
  %v3319 = vmul.f32 %v2824, %v2479
  %v3320 = vmul.f32 %v2824, %v2480
  %v3321 = vmul.f32 %v2829, %v2481
  %v3322 = vmul.f32 %v2829, %v2482
  %v3323 = vmul.f32 %v2834, %v2483
  %v3324 = vmul.f32 %v2834, %v2484
  %v3325 = vmul.f32 %v2839, %v2485
  %v3326 = vmul.f32 %v2839, %v2486
  %v3327 = vmul.f32 %v2844, %v2487
  %v3328 = vmul.f32 %v2844, %v2488
  %v3329 = vmul.f32 %v2849, %v2489
  %v3330 = vmul.f32 %v2849, %v2490
  %v3331 = vmul.f32 %v2854, %v2491
  %v3332 = vmul.f32 %v2854, %v2492
  %v3333 = vmul.f32 %v2859, %v2493
  %v3334 = vmul.f32 %v2859, %v2494
  %v3335 = vmul.f32 %v2864, %v2495
  %v3336 = vmul.f32 %v2864, %v2496
  %v3337 = vmul.f32 %v2869, %v2497
  %v3338 = vmul.f32 %v2869, %v2498
  %v3339 = vmul.f32 %v2874, %v2499
  %v3340 = vmul.f32 %v2874, %v2500
  %v3341 = vmul.f32 %v2879, %v2501
  %v3342 = vmul.f32 %v2879, %v2502
  %v3343 = vmul.f32 %v2884, %v2503
  %v3344 = vmul.f32 %v2884, %v2504
  %v3345 = vmul.f32 %v2889, %v2505
  %v3346 = vmul.f32 %v2889, %v2506
  %v3347 = vmul.f32 %v2894, %v2507
  %v3348 = vmul.f32 %v2894, %v2508
  %v3349 = vmul.f32 %v2899, %v2509
  %v3350 = vmul.f32 %v2899, %v2510
  %v3351 = vmul.f32 %v2904, %v2511
  %v3352 = vmul.f32 %v2904, %v2512
  %v3353 = vmul.f32 %v2909, %v2513
  %v3354 = vmul.f32 %v2909, %v2514
  %v3355 = vmul.f32 %v2914, %v2515
  %v3356 = vmul.f32 %v2914, %v2516
  %v3357 = vmul.f32 %v2919, %v2517
  %v3358 = vmul.f32 %v2919, %v2518
  %v3359 = vmul.f32 %v2924, %v2519
  %v3360 = vmul.f32 %v2924, %v2520
  %v3361 = vmul.f32 %v2929, %v2521
  %v3362 = vmul.f32 %v2929, %v2522
  %v3363 = vmul.f32 %v2934, %v2523
  %v3364 = vmul.f32 %v2934, %v2524
  %v3365 = vmul.f32 %v2939, %v2525
  %v3366 = vmul.f32 %v2939, %v2526
  %v3367 = vmul.f32 %v2944, %v2527
  %v3368 = vmul.f32 %v2944, %v2528
  %v3369 = vmul.f32 %v2949, %v2529
  %v3370 = vmul.f32 %v2949, %v2530
  %v3371 = vmul.f32 %v2954, %v2531
  %v3372 = vmul.f32 %v2954, %v2532
  %v3373 = vmul.f32 %v2959, %v2533
  %v3374 = vmul.f32 %v2959, %v2534
  %v3375 = vmul.f32 %v2964, %v2535
  %v3376 = vmul.f32 %v2964, %v2536
  %v3377 = vmul.f32 %v2969, %v2537
  %v3378 = vmul.f32 %v2969, %v2538
  %v3379 = vmul.f32 %v2974, %v2539
  %v3380 = vmul.f32 %v2974, %v2540
  %v3381 = vmul.f32 %v2979, %v2541
  %v3382 = vmul.f32 %v2979, %v2542
  %v3383 = vmul.f32 %v2984, %v2543
  %v3384 = vmul.f32 %v2984, %v2544
  %v3385 = vmul.f32 %v2989, %v2545
  %v3386 = vmul.f32 %v2989, %v2546
  %v3387 = vmul.f32 %v2994, %v2547
  %v3388 = vmul.f32 %v2994, %v2548
  %v3389 = vmul.f32 %v2999, %v2549
  %v3390 = vmul.f32 %v2999, %v2550
  %v3391 = vmul.f32 %v3004, %v2551
  %v3392 = vmul.f32 %v3004, %v2552
  %v3393 = vmul.f32 %v3009, %v2553
  %v3394 = vmul.f32 %v3009, %v2554
  %v3395 = vmul.f32 %v3014, %v2555
  %v3396 = vmul.f32 %v3014, %v2556
  %v3397 = vmul.f32 %v3019, %v2557
  %v3398 = vmul.f32 %v3019, %v2558
  %v3399 = vmul.f32 %v3024, %v2559
  %v3400 = vmul.f32 %v3024, %v2560
  %v3401 = vmul.f32 %v3029, %v2561
  %v3402 = vmul.f32 %v3029, %v2562
  %v3403 = vmul.f32 %v3034, %v2563
  %v3404 = vmul.f32 %v3034, %v2564
  %v3405 = vmul.f32 %v3039, %v2565
  %v3406 = vmul.f32 %v3039, %v2566
  %v3407 = vmul.f32 %v3044, %v2567
  %v3408 = vmul.f32 %v3044, %v2568
  %v3409 = vmul.f32 %v3049, %v2569
  %v3410 = vmul.f32 %v3049, %v2570
  %v3411 = vmul.f32 %v3054, %v2571
  %v3412 = vmul.f32 %v3054, %v2572
  %v3413 = vmul.f32 %v3059, %v2573
  %v3414 = vmul.f32 %v3059, %v2574
  %v3415 = vmul.f32 %v3064, %v2575
  %v3416 = vmul.f32 %v3064, %v2576
  %v3417 = vmul.f32 %v3069, %v2577
  %v3418 = vmul.f32 %v3069, %v2578
  %v3419 = vmul.f32 %v3074, %v2579
  %v3420 = vmul.f32 %v3074, %v2580
  %v3421 = vmul.f32 %v3079, %v2581
  %v3422 = vmul.f32 %v3079, %v2582
  %v3423 = vmul.f32 %v3084, %v2583
  %v3424 = vmul.f32 %v3084, %v2584
  %v3425 = vmul.f32 %v3089, %v2585
  %v3426 = vmul.f32 %v3089, %v2586
  %v3427 = vmul.f32 %v3094, %v2587
  %v3428 = vmul.f32 %v3094, %v2588
  %v3429 = vmul.f32 %v3099, %v2589
  %v3430 = vmul.f32 %v3099, %v2590
  %v3431 = vmul.f32 %v3104, %v2591
  %v3432 = vmul.f32 %v3104, %v2592
  %v3433 = vmul.f32 %v3109, %v2593
  %v3434 = vmul.f32 %v3109, %v2594
  %v3435 = vmul.f32 %v3114, %v2595
  %v3436 = vmul.f32 %v3114, %v2596
  %v3437 = vmul.f32 %v3119, %v2597
  %v3438 = vmul.f32 %v3119, %v2598
  %v3439 = vmul.f32 %v3124, %v2599
  %v3440 = vmul.f32 %v3124, %v2600
  %v3441 = vmul.f32 %v3129, %v2601
  %v3442 = vmul.f32 %v3129, %v2602
  %v3443 = vmul.f32 %v3134, %v2603
  %v3444 = vmul.f32 %v3134, %v2604
  %v3445 = vmul.f32 %v3139, %v2605
  %v3446 = vmul.f32 %v3139, %v2606
  %v3447 = vmul.f32 %v3144, %v2607
  %v3448 = vmul.f32 %v3144, %v2608
  %v3449 = vmul.f32 %v3149, %v2609
  %v3450 = vmul.f32 %v3149, %v2610
  %v3451 = vmul.f32 %v3154, %v2611
  %v3452 = vmul.f32 %v3154, %v2612
  %v3453 = vmul.f32 %v3159, %v2613
  %v3454 = vmul.f32 %v3159, %v2614
  %v3455 = vmul.f32 %v3164, %v2615
  %v3456 = vmul.f32 %v3164, %v2616
  %v3457 = vmul.f32 %v3169, %v2617
  %v3458 = vmul.f32 %v3169, %v2618
  %v3459 = vmul.f32 %v3174, %v2619
  %v3460 = vmul.f32 %v3174, %v2620
  %v3461 = vmul.f32 %v3179, %v2621
  %v3462 = vmul.f32 %v3179, %v2622
  %v3463 = vmul.f32 %v3184, %v2623
  %v3464 = vmul.f32 %v3184, %v2624
  %v3465 = vmul.f32 %v3189, %v2625
  %v3466 = vmul.f32 %v3189, %v2626
  %v3467 = vmul.f32 %v3194, %v2627
  %v3468 = vmul.f32 %v3194, %v2628
  %v3469 = vmul.f32 %v3199, %v2629
  %v3470 = vmul.f32 %v3199, %v2630
  %v3471 = vmul.f32 %v3204, %v2631
  %v3472 = vmul.f32 %v3204, %v2632
  %v3473 = vmul.f32 %v3209, %v2633
  %v3474 = vmul.f32 %v3209, %v2634
  %v3475 = vmul.f32 %v3214, %v2635
  %v3476 = vmul.f32 %v3214, %v2636
  %v3477 = vmul.f32 %v3219, %v2637
  %v3478 = vmul.f32 %v3219, %v2638
  %v3479 = vmul.f32 %v3224, %v2639
  %v3480 = vmul.f32 %v3224, %v2640
  %v3481 = vmul.f32 %v3229, %v2641
  %v3482 = vmul.f32 %v3229, %v2642
  %v3483 = vmul.f32 %v3234, %v2643
  %v3484 = vmul.f32 %v3234, %v2644
  %v3485 = vmul.f32 %v3239, %v2645
  %v3486 = vmul.f32 %v3239, %v2646
  %v3487 = vmul.f32 %v3244, %v2647
  %v3488 = vmul.f32 %v3244, %v2648
  %v3489 = vmul.f32 %v3249, %v2649
  %v3490 = vmul.f32 %v3249, %v2650
  %3491 = vst [vmem:[%s2] sm:$0xff] %v3251
  %vm3492 = vcmask 556032
  %3493 = vst.msk [vmem:[%s2 + $0x8] sm:$0xff] %vm3492, %v3252
  %3494 = vst [vmem:[%s2 + $0x10] sm:$0xff] %v3253
  %3495 = vst.msk [vmem:[%s2 + $0x18] sm:$0xff] %vm3492, %v3254
  %3496 = vst [vmem:[%s2 + $0x20] sm:$0xff] %v3255
  %3497 = vst.msk [vmem:[%s2 + $0x28] sm:$0xff] %vm3492, %v3256
  %3498 = vst [vmem:[%s2 + $0x30] sm:$0xff] %v3257
  %3499 = vst.msk [vmem:[%s2 + $0x38] sm:$0xff] %vm3492, %v3258
  %3500 = vst [vmem:[%s2 + $0x40] sm:$0xff] %v3259
  %3501 = vst.msk [vmem:[%s2 + $0x48] sm:$0xff] %vm3492, %v3260
  %3502 = vst [vmem:[%s2 + $0x50] sm:$0xff] %v3261
  %3503 = vst.msk [vmem:[%s2 + $0x58] sm:$0xff] %vm3492, %v3262
  %3504 = vst [vmem:[%s2 + $0x60] sm:$0xff] %v3263
  %3505 = vst.msk [vmem:[%s2 + $0x68] sm:$0xff] %vm3492, %v3264
  %3506 = vst [vmem:[%s2 + $0x70] sm:$0xff] %v3265
  %3507 = vst.msk [vmem:[%s2 + $0x78] sm:$0xff] %vm3492, %v3266
  %3508 = vst [vmem:[%s2 + $0x80] sm:$0xff] %v3267
  %3509 = vst.msk [vmem:[%s2 + $0x88] sm:$0xff] %vm3492, %v3268
  %3510 = vst [vmem:[%s2 + $0x90] sm:$0xff] %v3269
  %3511 = vst.msk [vmem:[%s2 + $0x98] sm:$0xff] %vm3492, %v3270
  %3512 = vst [vmem:[%s2 + $0xa0] sm:$0xff] %v3271
  %3513 = vst.msk [vmem:[%s2 + $0xa8] sm:$0xff] %vm3492, %v3272
  %3514 = vst [vmem:[%s2 + $0xb0] sm:$0xff] %v3273
  %3515 = vst.msk [vmem:[%s2 + $0xb8] sm:$0xff] %vm3492, %v3274
  %3516 = vst [vmem:[%s2 + $0xc0] sm:$0xff] %v3275
  %3517 = vst.msk [vmem:[%s2 + $0xc8] sm:$0xff] %vm3492, %v3276
  %3518 = vst [vmem:[%s2 + $0xd0] sm:$0xff] %v3277
  %3519 = vst.msk [vmem:[%s2 + $0xd8] sm:$0xff] %vm3492, %v3278
  %3520 = vst [vmem:[%s2 + $0xe0] sm:$0xff] %v3279
  %3521 = vst.msk [vmem:[%s2 + $0xe8] sm:$0xff] %vm3492, %v3280
  %3522 = vst [vmem:[%s2 + $0xf0] sm:$0xff] %v3281
  %3523 = vst.msk [vmem:[%s2 + $0xf8] sm:$0xff] %vm3492, %v3282
  %3524 = vst [vmem:[%s2 + $0x100] sm:$0xff] %v3283
  %3525 = vst.msk [vmem:[%s2 + $0x108] sm:$0xff] %vm3492, %v3284
  %3526 = vst [vmem:[%s2 + $0x110] sm:$0xff] %v3285
  %3527 = vst.msk [vmem:[%s2 + $0x118] sm:$0xff] %vm3492, %v3286
  %3528 = vst [vmem:[%s2 + $0x120] sm:$0xff] %v3287
  %3529 = vst.msk [vmem:[%s2 + $0x128] sm:$0xff] %vm3492, %v3288
  %3530 = vst [vmem:[%s2 + $0x130] sm:$0xff] %v3289
  %3531 = vst.msk [vmem:[%s2 + $0x138] sm:$0xff] %vm3492, %v3290
  %3532 = vst [vmem:[%s2 + $0x140] sm:$0xff] %v3291
  %3533 = vst.msk [vmem:[%s2 + $0x148] sm:$0xff] %vm3492, %v3292
  %3534 = vst [vmem:[%s2 + $0x150] sm:$0xff] %v3293
  %3535 = vst.msk [vmem:[%s2 + $0x158] sm:$0xff] %vm3492, %v3294
  %3536 = vst [vmem:[%s2 + $0x160] sm:$0xff] %v3295
  %3537 = vst.msk [vmem:[%s2 + $0x168] sm:$0xff] %vm3492, %v3296
  %3538 = vst [vmem:[%s2 + $0x170] sm:$0xff] %v3297
  %3539 = vst.msk [vmem:[%s2 + $0x178] sm:$0xff] %vm3492, %v3298
  %3540 = vst [vmem:[%s2 + $0x180] sm:$0xff] %v3299
  %3541 = vst.msk [vmem:[%s2 + $0x188] sm:$0xff] %vm3492, %v3300
  %3542 = vst [vmem:[%s2 + $0x190] sm:$0xff] %v3301
  %3543 = vst.msk [vmem:[%s2 + $0x198] sm:$0xff] %vm3492, %v3302
  %3544 = vst [vmem:[%s2 + $0x1a0] sm:$0xff] %v3303
  %3545 = vst.msk [vmem:[%s2 + $0x1a8] sm:$0xff] %vm3492, %v3304
  %3546 = vst [vmem:[%s2 + $0x1b0] sm:$0xff] %v3305
  %3547 = vst.msk [vmem:[%s2 + $0x1b8] sm:$0xff] %vm3492, %v3306
  %3548 = vst [vmem:[%s2 + $0x1c0] sm:$0xff] %v3307
  %3549 = vst.msk [vmem:[%s2 + $0x1c8] sm:$0xff] %vm3492, %v3308
  %3550 = vst [vmem:[%s2 + $0x1d0] sm:$0xff] %v3309
  %3551 = vst.msk [vmem:[%s2 + $0x1d8] sm:$0xff] %vm3492, %v3310
  %3552 = vst [vmem:[%s2 + $0x1e0] sm:$0xff] %v3311
  %3553 = vst.msk [vmem:[%s2 + $0x1e8] sm:$0xff] %vm3492, %v3312
  %3554 = vst [vmem:[%s2 + $0x1f0] sm:$0xff] %v3313
  %3555 = vst.msk [vmem:[%s2 + $0x1f8] sm:$0xff] %vm3492, %v3314
  %3556 = vst [vmem:[%s2 + $0x200] sm:$0xff] %v3315
  %3557 = vst.msk [vmem:[%s2 + $0x208] sm:$0xff] %vm3492, %v3316
  %3558 = vst [vmem:[%s2 + $0x210] sm:$0xff] %v3317
  %3559 = vst.msk [vmem:[%s2 + $0x218] sm:$0xff] %vm3492, %v3318
  %3560 = vst [vmem:[%s2 + $0x220] sm:$0xff] %v3319
  %3561 = vst.msk [vmem:[%s2 + $0x228] sm:$0xff] %vm3492, %v3320
  %3562 = vst [vmem:[%s2 + $0x230] sm:$0xff] %v3321
  %3563 = vst.msk [vmem:[%s2 + $0x238] sm:$0xff] %vm3492, %v3322
  %3564 = vst [vmem:[%s2 + $0x240] sm:$0xff] %v3323
  %3565 = vst.msk [vmem:[%s2 + $0x248] sm:$0xff] %vm3492, %v3324
  %3566 = vst [vmem:[%s2 + $0x250] sm:$0xff] %v3325
  %3567 = vst.msk [vmem:[%s2 + $0x258] sm:$0xff] %vm3492, %v3326
  %3568 = vst [vmem:[%s2 + $0x260] sm:$0xff] %v3327
  %3569 = vst.msk [vmem:[%s2 + $0x268] sm:$0xff] %vm3492, %v3328
  %3570 = vst [vmem:[%s2 + $0x270] sm:$0xff] %v3329
  %3571 = vst.msk [vmem:[%s2 + $0x278] sm:$0xff] %vm3492, %v3330
  %3572 = vst [vmem:[%s2 + $0x280] sm:$0xff] %v3331
  %3573 = vst.msk [vmem:[%s2 + $0x288] sm:$0xff] %vm3492, %v3332
  %3574 = vst [vmem:[%s2 + $0x290] sm:$0xff] %v3333
  %3575 = vst.msk [vmem:[%s2 + $0x298] sm:$0xff] %vm3492, %v3334
  %3576 = vst [vmem:[%s2 + $0x2a0] sm:$0xff] %v3335
  %3577 = vst.msk [vmem:[%s2 + $0x2a8] sm:$0xff] %vm3492, %v3336
  %3578 = vst [vmem:[%s2 + $0x2b0] sm:$0xff] %v3337
  %3579 = vst.msk [vmem:[%s2 + $0x2b8] sm:$0xff] %vm3492, %v3338
  %3580 = vst [vmem:[%s2 + $0x2c0] sm:$0xff] %v3339
  %3581 = vst.msk [vmem:[%s2 + $0x2c8] sm:$0xff] %vm3492, %v3340
  %3582 = vst [vmem:[%s2 + $0x2d0] sm:$0xff] %v3341
  %3583 = vst.msk [vmem:[%s2 + $0x2d8] sm:$0xff] %vm3492, %v3342
  %3584 = vst [vmem:[%s2 + $0x2e0] sm:$0xff] %v3343
  %3585 = vst.msk [vmem:[%s2 + $0x2e8] sm:$0xff] %vm3492, %v3344
  %3586 = vst [vmem:[%s2 + $0x2f0] sm:$0xff] %v3345
  %3587 = vst.msk [vmem:[%s2 + $0x2f8] sm:$0xff] %vm3492, %v3346
  %3588 = vst [vmem:[%s2 + $0x300] sm:$0xff] %v3347
  %3589 = vst.msk [vmem:[%s2 + $0x308] sm:$0xff] %vm3492, %v3348
  %3590 = vst [vmem:[%s2 + $0x310] sm:$0xff] %v3349
  %3591 = vst.msk [vmem:[%s2 + $0x318] sm:$0xff] %vm3492, %v3350
  %3592 = vst [vmem:[%s2 + $0x320] sm:$0xff] %v3351
  %3593 = vst.msk [vmem:[%s2 + $0x328] sm:$0xff] %vm3492, %v3352
  %3594 = vst [vmem:[%s2 + $0x330] sm:$0xff] %v3353
  %3595 = vst.msk [vmem:[%s2 + $0x338] sm:$0xff] %vm3492, %v3354
  %3596 = vst [vmem:[%s2 + $0x340] sm:$0xff] %v3355
  %3597 = vst.msk [vmem:[%s2 + $0x348] sm:$0xff] %vm3492, %v3356
  %3598 = vst [vmem:[%s2 + $0x350] sm:$0xff] %v3357
  %3599 = vst.msk [vmem:[%s2 + $0x358] sm:$0xff] %vm3492, %v3358
  %3600 = vst [vmem:[%s2 + $0x360] sm:$0xff] %v3359
  %3601 = vst.msk [vmem:[%s2 + $0x368] sm:$0xff] %vm3492, %v3360
  %3602 = vst [vmem:[%s2 + $0x370] sm:$0xff] %v3361
  %3603 = vst.msk [vmem:[%s2 + $0x378] sm:$0xff] %vm3492, %v3362
  %3604 = vst [vmem:[%s2 + $0x380] sm:$0xff] %v3363
  %3605 = vst.msk [vmem:[%s2 + $0x388] sm:$0xff] %vm3492, %v3364
  %3606 = vst [vmem:[%s2 + $0x390] sm:$0xff] %v3365
  %3607 = vst.msk [vmem:[%s2 + $0x398] sm:$0xff] %vm3492, %v3366
  %3608 = vst [vmem:[%s2 + $0x3a0] sm:$0xff] %v3367
  %3609 = vst.msk [vmem:[%s2 + $0x3a8] sm:$0xff] %vm3492, %v3368
  %3610 = vst [vmem:[%s2 + $0x3b0] sm:$0xff] %v3369
  %3611 = vst.msk [vmem:[%s2 + $0x3b8] sm:$0xff] %vm3492, %v3370
  %3612 = vst [vmem:[%s2 + $0x3c0] sm:$0xff] %v3371
  %3613 = vst.msk [vmem:[%s2 + $0x3c8] sm:$0xff] %vm3492, %v3372
  %3614 = vst [vmem:[%s2 + $0x3d0] sm:$0xff] %v3373
  %3615 = vst.msk [vmem:[%s2 + $0x3d8] sm:$0xff] %vm3492, %v3374
  %3616 = vst [vmem:[%s2 + $0x3e0] sm:$0xff] %v3375
  %3617 = vst.msk [vmem:[%s2 + $0x3e8] sm:$0xff] %vm3492, %v3376
  %3618 = vst [vmem:[%s2 + $0x3f0] sm:$0xff] %v3377
  %3619 = vst.msk [vmem:[%s2 + $0x3f8] sm:$0xff] %vm3492, %v3378
  %3620 = vst [vmem:[%s2 + $0x400] sm:$0xff] %v3379
  %3621 = vst.msk [vmem:[%s2 + $0x408] sm:$0xff] %vm3492, %v3380
  %3622 = vst [vmem:[%s2 + $0x410] sm:$0xff] %v3381
  %3623 = vst.msk [vmem:[%s2 + $0x418] sm:$0xff] %vm3492, %v3382
  %3624 = vst [vmem:[%s2 + $0x420] sm:$0xff] %v3383
  %3625 = vst.msk [vmem:[%s2 + $0x428] sm:$0xff] %vm3492, %v3384
  %3626 = vst [vmem:[%s2 + $0x430] sm:$0xff] %v3385
  %3627 = vst.msk [vmem:[%s2 + $0x438] sm:$0xff] %vm3492, %v3386
  %3628 = vst [vmem:[%s2 + $0x440] sm:$0xff] %v3387
  %3629 = vst.msk [vmem:[%s2 + $0x448] sm:$0xff] %vm3492, %v3388
  %3630 = vst [vmem:[%s2 + $0x450] sm:$0xff] %v3389
  %3631 = vst.msk [vmem:[%s2 + $0x458] sm:$0xff] %vm3492, %v3390
  %3632 = vst [vmem:[%s2 + $0x460] sm:$0xff] %v3391
  %3633 = vst.msk [vmem:[%s2 + $0x468] sm:$0xff] %vm3492, %v3392
  %3634 = vst [vmem:[%s2 + $0x470] sm:$0xff] %v3393
  %3635 = vst.msk [vmem:[%s2 + $0x478] sm:$0xff] %vm3492, %v3394
  %3636 = vst [vmem:[%s2 + $0x480] sm:$0xff] %v3395
  %3637 = vst.msk [vmem:[%s2 + $0x488] sm:$0xff] %vm3492, %v3396
  %3638 = vst [vmem:[%s2 + $0x490] sm:$0xff] %v3397
  %3639 = vst.msk [vmem:[%s2 + $0x498] sm:$0xff] %vm3492, %v3398
  %3640 = vst [vmem:[%s2 + $0x4a0] sm:$0xff] %v3399
  %3641 = vst.msk [vmem:[%s2 + $0x4a8] sm:$0xff] %vm3492, %v3400
  %3642 = vst [vmem:[%s2 + $0x4b0] sm:$0xff] %v3401
  %3643 = vst.msk [vmem:[%s2 + $0x4b8] sm:$0xff] %vm3492, %v3402
  %3644 = vst [vmem:[%s2 + $0x4c0] sm:$0xff] %v3403
  %3645 = vst.msk [vmem:[%s2 + $0x4c8] sm:$0xff] %vm3492, %v3404
  %3646 = vst [vmem:[%s2 + $0x4d0] sm:$0xff] %v3405
  %3647 = vst.msk [vmem:[%s2 + $0x4d8] sm:$0xff] %vm3492, %v3406
  %3648 = vst [vmem:[%s2 + $0x4e0] sm:$0xff] %v3407
  %3649 = vst.msk [vmem:[%s2 + $0x4e8] sm:$0xff] %vm3492, %v3408
  %3650 = vst [vmem:[%s2 + $0x4f0] sm:$0xff] %v3409
  %3651 = vst.msk [vmem:[%s2 + $0x4f8] sm:$0xff] %vm3492, %v3410
  %3652 = vst [vmem:[%s2 + $0x500] sm:$0xff] %v3411
  %3653 = vst.msk [vmem:[%s2 + $0x508] sm:$0xff] %vm3492, %v3412
  %3654 = vst [vmem:[%s2 + $0x510] sm:$0xff] %v3413
  %3655 = vst.msk [vmem:[%s2 + $0x518] sm:$0xff] %vm3492, %v3414
  %3656 = vst [vmem:[%s2 + $0x520] sm:$0xff] %v3415
  %3657 = vst.msk [vmem:[%s2 + $0x528] sm:$0xff] %vm3492, %v3416
  %3658 = vst [vmem:[%s2 + $0x530] sm:$0xff] %v3417
  %3659 = vst.msk [vmem:[%s2 + $0x538] sm:$0xff] %vm3492, %v3418
  %3660 = vst [vmem:[%s2 + $0x540] sm:$0xff] %v3419
  %3661 = vst.msk [vmem:[%s2 + $0x548] sm:$0xff] %vm3492, %v3420
  %3662 = vst [vmem:[%s2 + $0x550] sm:$0xff] %v3421
  %3663 = vst.msk [vmem:[%s2 + $0x558] sm:$0xff] %vm3492, %v3422
  %3664 = vst [vmem:[%s2 + $0x560] sm:$0xff] %v3423
  %3665 = vst.msk [vmem:[%s2 + $0x568] sm:$0xff] %vm3492, %v3424
  %3666 = vst [vmem:[%s2 + $0x570] sm:$0xff] %v3425
  %3667 = vst.msk [vmem:[%s2 + $0x578] sm:$0xff] %vm3492, %v3426
  %3668 = vst [vmem:[%s2 + $0x580] sm:$0xff] %v3427
  %3669 = vst.msk [vmem:[%s2 + $0x588] sm:$0xff] %vm3492, %v3428
  %3670 = vst [vmem:[%s2 + $0x590] sm:$0xff] %v3429
  %3671 = vst.msk [vmem:[%s2 + $0x598] sm:$0xff] %vm3492, %v3430
  %3672 = vst [vmem:[%s2 + $0x5a0] sm:$0xff] %v3431
  %3673 = vst.msk [vmem:[%s2 + $0x5a8] sm:$0xff] %vm3492, %v3432
  %3674 = vst [vmem:[%s2 + $0x5b0] sm:$0xff] %v3433
  %3675 = vst.msk [vmem:[%s2 + $0x5b8] sm:$0xff] %vm3492, %v3434
  %3676 = vst [vmem:[%s2 + $0x5c0] sm:$0xff] %v3435
  %3677 = vst.msk [vmem:[%s2 + $0x5c8] sm:$0xff] %vm3492, %v3436
  %3678 = vst [vmem:[%s2 + $0x5d0] sm:$0xff] %v3437
  %3679 = vst.msk [vmem:[%s2 + $0x5d8] sm:$0xff] %vm3492, %v3438
  %3680 = vst [vmem:[%s2 + $0x5e0] sm:$0xff] %v3439
  %3681 = vst.msk [vmem:[%s2 + $0x5e8] sm:$0xff] %vm3492, %v3440
  %3682 = vst [vmem:[%s2 + $0x5f0] sm:$0xff] %v3441
  %3683 = vst.msk [vmem:[%s2 + $0x5f8] sm:$0xff] %vm3492, %v3442
  %3684 = vst [vmem:[%s2 + $0x600] sm:$0xff] %v3443
  %3685 = vst.msk [vmem:[%s2 + $0x608] sm:$0xff] %vm3492, %v3444
  %3686 = vst [vmem:[%s2 + $0x610] sm:$0xff] %v3445
  %3687 = vst.msk [vmem:[%s2 + $0x618] sm:$0xff] %vm3492, %v3446
  %3688 = vst [vmem:[%s2 + $0x620] sm:$0xff] %v3447
  %3689 = vst.msk [vmem:[%s2 + $0x628] sm:$0xff] %vm3492, %v3448
  %3690 = vst [vmem:[%s2 + $0x630] sm:$0xff] %v3449
  %3691 = vst.msk [vmem:[%s2 + $0x638] sm:$0xff] %vm3492, %v3450
  %3692 = vst [vmem:[%s2 + $0x640] sm:$0xff] %v3451
  %3693 = vst.msk [vmem:[%s2 + $0x648] sm:$0xff] %vm3492, %v3452
  %3694 = vst [vmem:[%s2 + $0x650] sm:$0xff] %v3453
  %3695 = vst.msk [vmem:[%s2 + $0x658] sm:$0xff] %vm3492, %v3454
  %3696 = vst [vmem:[%s2 + $0x660] sm:$0xff] %v3455
  %3697 = vst.msk [vmem:[%s2 + $0x668] sm:$0xff] %vm3492, %v3456
  %3698 = vst [vmem:[%s2 + $0x670] sm:$0xff] %v3457
  %3699 = vst.msk [vmem:[%s2 + $0x678] sm:$0xff] %vm3492, %v3458
  %3700 = vst [vmem:[%s2 + $0x680] sm:$0xff] %v3459
  %3701 = vst.msk [vmem:[%s2 + $0x688] sm:$0xff] %vm3492, %v3460
  %3702 = vst [vmem:[%s2 + $0x690] sm:$0xff] %v3461
  %3703 = vst.msk [vmem:[%s2 + $0x698] sm:$0xff] %vm3492, %v3462
  %3704 = vst [vmem:[%s2 + $0x6a0] sm:$0xff] %v3463
  %3705 = vst.msk [vmem:[%s2 + $0x6a8] sm:$0xff] %vm3492, %v3464
  %3706 = vst [vmem:[%s2 + $0x6b0] sm:$0xff] %v3465
  %3707 = vst.msk [vmem:[%s2 + $0x6b8] sm:$0xff] %vm3492, %v3466
  %3708 = vst [vmem:[%s2 + $0x6c0] sm:$0xff] %v3467
  %3709 = vst.msk [vmem:[%s2 + $0x6c8] sm:$0xff] %vm3492, %v3468
  %3710 = vst [vmem:[%s2 + $0x6d0] sm:$0xff] %v3469
  %3711 = vst.msk [vmem:[%s2 + $0x6d8] sm:$0xff] %vm3492, %v3470
  %3712 = vst [vmem:[%s2 + $0x6e0] sm:$0xff] %v3471
  %3713 = vst.msk [vmem:[%s2 + $0x6e8] sm:$0xff] %vm3492, %v3472
  %3714 = vst [vmem:[%s2 + $0x6f0] sm:$0xff] %v3473
  %3715 = vst.msk [vmem:[%s2 + $0x6f8] sm:$0xff] %vm3492, %v3474
  %3716 = vst [vmem:[%s2 + $0x700] sm:$0xff] %v3475
  %3717 = vst.msk [vmem:[%s2 + $0x708] sm:$0xff] %vm3492, %v3476
  %3718 = vst [vmem:[%s2 + $0x710] sm:$0xff] %v3477
  %3719 = vst.msk [vmem:[%s2 + $0x718] sm:$0xff] %vm3492, %v3478
  %3720 = vst [vmem:[%s2 + $0x720] sm:$0xff] %v3479
  %3721 = vst.msk [vmem:[%s2 + $0x728] sm:$0xff] %vm3492, %v3480
  %3722 = vst [vmem:[%s2 + $0x730] sm:$0xff] %v3481
  %3723 = vst.msk [vmem:[%s2 + $0x738] sm:$0xff] %vm3492, %v3482
  %3724 = vst [vmem:[%s2 + $0x740] sm:$0xff] %v3483
  %3725 = vst.msk [vmem:[%s2 + $0x748] sm:$0xff] %vm3492, %v3484
  %3726 = vst [vmem:[%s2 + $0x750] sm:$0xff] %v3485
  %3727 = vst.msk [vmem:[%s2 + $0x758] sm:$0xff] %vm3492, %v3486
  %3728 = vst [vmem:[%s2 + $0x760] sm:$0xff] %v3487
  %3729 = vst.msk [vmem:[%s2 + $0x768] sm:$0xff] %vm3492, %v3488
  %3730 = vst [vmem:[%s2 + $0x770] sm:$0xff] %v3489
  %3731 = vst.msk [vmem:[%s2 + $0x778] sm:$0xff] %vm3492, %v3490
  // Predicated region
  $region10: #{tpu_custom_call.1} parent=0 // pred_check
    _
  $region11: #{tpu_custom_call.1} parent=0 // pred_check_branch
    %3733 = sbr.rel (0) target = $region13
  $region12: #{tpu_custom_call.1} parent=0 // pred_region
    _
  $region13: #{tpu_custom_call.1} parent=0 // pred_fallthru
    _
  // Predicated region
  $region14: #{tpu_custom_call.1} parent=0 // pred_check
    _
  $region15: #{tpu_custom_call.1} parent=0 // pred_check_branch
    %3735 = sbr.rel (0) target = $region17
  $region16: #{tpu_custom_call.1} parent=0 // pred_region
    _
  $region17: #{tpu_custom_call.1} parent=0 // pred_fallthru
    _

</llo_original>
